<compile_context>
chip_gen: v6e
topology: v6e:2x2x1
jax: 0.10.0
libtpu: 0.0.40
codegen_flags: <defaults>
</compile_context>

<pallas_src>
import jax
import jax.numpy as jnp
from jax import lax
from jax.experimental import pallas as pl
from jax.experimental.pallas import tpu as pltpu

EPS = 1e-5  # nn.InstanceNorm2d defaults: eps=1e-5, affine=False, no running stats

_SUBPIX = ((0, 0), (0, 1), (1, 0), (1, 1))   # (dy, dx): output sub-pixel
_TAPS = ((0, 0), (0, 1), (1, 0), (1, 1))     # (a, b):  kernel tap group


def _round_up(v, m):
    return (v + m - 1) // m * m


def _unet_up_kernel(xp_ref, w_ref, y_ref, acc_ref):
    """One (sample, Cout-tile) grid step.

    xp_ref : (1, H+2, W+2, Cin_p)  bf16    spatially padded NHWC input
    w_ref  : (4, 4, Cin_p, CT)     bf16    per-(sub-pixel, tap) weight matrices
    y_ref  : (1, 4, HW, CT)        x.dtype normalized + ReLU'd conv-transpose out
    acc_ref: (4, HW, CT)           f32     scratch: un-normalized conv output
    """
    _, hp2, wp2, cin_p = xp_ref.shape
    h, w = hp2 - 2, wp2 - 2
    hw = h * w
    ct = w_ref.shape[-1]

    xp = xp_ref[0]                                    # (H+2, W+2, Cin_p) bf16

    # The 16 (sub-pixel, tap) pairs only use 9 distinct shifted windows of the
    # padded input; build each once in VMEM (this IS the im2col, without the
    # 16x HBM blow-up of materializing it outside the kernel).
    shifted = {}
    for p in range(3):
        for q in range(3):
            shifted[(p, q)] = xp[p:p + h, q:q + w, :].reshape(hw, cin_p)

    # ConvTranspose2d(k=4, s=2, p=1):
    #   out[2i+dy, 2j+dx] = sum_{a,b in {0,1}} x_pad[i+dy+a, j+dx+b] @ W[:, :, 3-dy-2a, 3-dx-2b]
    # Four MXU matmuls (K = Cin_p, f32 accumulation) per sub-pixel; the
    # InstanceNorm moments are accumulated in the same pass (single sweep).
    s_sum = jnp.zeros((1, ct), jnp.float32)
    s_sq = jnp.zeros((1, ct), jnp.float32)
    for s, (dy, dx) in enumerate(_SUBPIX):
        acc = jnp.zeros((hw, ct), jnp.float32)
        for t, (a, b) in enumerate(_TAPS):
            acc += jnp.dot(shifted[(dy + a, dx + b)], w_ref[s, t],
                           preferred_element_type=jnp.float32)
        acc_ref[s] = acc
        s_sum += jnp.sum(acc, axis=0, keepdims=True)
        s_sq += jnp.sum(acc * acc, axis=0, keepdims=True)

    # InstanceNorm2d (biased variance, eps inside rsqrt, no affine) + ReLU.
    inv_n = 1.0 / (4.0 * hw)                          # spatial count = (2H)*(2W)
    mean = s_sum * inv_n
    var = jnp.maximum(s_sq * inv_n - mean * mean, 0.0)
    scale = lax.rsqrt(var + EPS)
    for s in range(4):
        y_ref[0, s] = jnp.maximum((acc_ref[s] - mean) * scale, 0.0).astype(y_ref.dtype)


def unet_up_forward(x, skip_input, weight, *, compute_dtype=jnp.bfloat16,
                    cout_tile=128):
    """x: (N, Cin, H, W); skip_input: (N, Cskip, 2H, 2W);
    weight: (Cin, Cout, 4, 4) from torch.nn.ConvTranspose2d(Cin, Cout, 4, 2, 1, bias=False).
    Returns (N, Cout + Cskip, 2H, 2W), matching UNetUp.forward (dropout=0.0)."""
    n, cin, h, w = x.shape
    cout = weight.shape[1]
    oh, ow = 2 * h, 2 * w
    hw = h * w

    cin_p = _round_up(cin, 128)      # MXU-aligned contraction per tap matmul
    cout_p = _round_up(cout, 128)    # lane-dense (128-multiple) output stores
    ct = min(cout_tile, cout_p)
    assert cout_p % ct == 0

    # ---- glue (plain JAX): NHWC, spatial pad for the transposed conv, channel
    # zero-pad for MXU alignment, bf16 for the MXU (padded channels are exact zeros,
    # so they contribute nothing; padded Cout channels are dropped after the call).
    x_nhwc = jnp.transpose(x, (0, 2, 3, 1)).astype(compute_dtype)
    xp = jnp.pad(x_nhwc, ((0, 0), (1, 1), (1, 1), (0, cin_p - cin)))

    # Weight -> per-(sub-pixel, tap) matrices: Wm[s, t] = W[:, :, 3-dy-2a, 3-dx-2b]
    wc = weight.astype(compute_dtype)
    wm = jnp.stack([
        jnp.stack([wc[:, :, 3 - dy - 2 * a, 3 - dx - 2 * b] for (a, b) in _TAPS],
                  axis=0)
        for (dy, dx) in _SUBPIX], axis=0)                     # (4, 4, Cin, Cout)
    wm = jnp.pad(wm, ((0, 0), (0, 0), (0, cin_p - cin), (0, cout_p - cout)))

    # ---- VMEM budget / cost hints (sized from chosen block shapes) ----
    in_b = jnp.dtype(compute_dtype).itemsize
    out_b = jnp.dtype(x.dtype).itemsize
    in_block = (h + 2) * (w + 2) * cin_p * in_b
    w_block = 16 * cin_p * ct * in_b
    out_block = 4 * hw * ct * out_b
    scratch = 4 * hw * ct * 4
    vmem_limit = int(max(2 * (in_block + w_block + out_block) + scratch + (8 << 20),
                         32 << 20))
    # TODO(synk): for very large H*W*Cout (v7x: 64 MiB VMEM) add an HW grid axis with
    # a two-pass (moments, then normalize) scheme instead of whole-sample blocks.

    flops = 2 * n * 4 * 4 * hw * cin_p * cout_p
    bytes_accessed = int(xp.size * in_b + n * wm.size * in_b
                         + n * 4 * hw * cout_p * out_b)

    y = pl.pallas_call(
        _unet_up_kernel,
        out_shape=jax.ShapeDtypeStruct((n, 4, hw, cout_p), x.dtype),
        grid_spec=pltpu.PrefetchScalarGridSpec(
            num_scalar_prefetch=0,
            grid=(n, cout_p // ct),
            in_specs=[
                pl.BlockSpec((1, h + 2, w + 2, cin_p), lambda b, j: (b, 0, 0, 0)),
                pl.BlockSpec((4, 4, cin_p, ct), lambda b, j: (0, 0, 0, j)),
            ],
            out_specs=pl.BlockSpec((1, 4, hw, ct), lambda b, j: (b, 0, 0, j)),
            scratch_shapes=[pltpu.VMEM((4, hw, ct), jnp.float32)],
        ),
        compiler_params=pltpu.CompilerParams(
            dimension_semantics=("parallel", "parallel"),
            vmem_limit_bytes=vmem_limit,
        ),
        cost_estimate=pl.CostEstimate(
            flops=flops, transcendentals=n * cout_p, bytes_accessed=bytes_accessed),
    )(xp, wm)

    # ---- glue: sub-pixel interleave straight to NCHW in ONE transpose, then
    # concat the skip connection on channels (PyTorch order: [conv_out, skip]).
    y = y[..., :cout].reshape(n, 2, 2, h, w, cout)            # (n, dy, dx, i, j, c)
    y = jnp.transpose(y, (0, 5, 3, 1, 4, 2)).reshape(n, cout, oh, ow)
    return jnp.concatenate([y, skip_input], axis=1)
    # TODO(synk): dropout > 0.0 (nn.Dropout) not implemented; module default is 0.0.


def unet_up_reference(x, skip_input, weight):
    """Pure-JAX reference mirroring the PyTorch module (for verification)."""
    w = jnp.flip(jnp.transpose(weight, (1, 0, 2, 3)), axis=(2, 3))  # OIHW, flipped
    y = lax.conv_general_dilated(
        x, w, window_strides=(1, 1), padding=((2, 2), (2, 2)),
        lhs_dilation=(2, 2), dimension_numbers=("NCHW", "OIHW", "NCHW"))
    mean = y.mean(axis=(2, 3), keepdims=True)
    var = ((y - mean) ** 2).mean(axis=(2, 3), keepdims=True)
    y = jnp.maximum((y - mean) * lax.rsqrt(var + EPS), 0.0)
    return jnp.concatenate([y, skip_input], axis=1)


if __name__ == "__main__":
    key = jax.random.PRNGKey(0)
    k1, k2, k3 = jax.random.split(key, 3)
    N, Cin, Cout, H, W = 2, 4, 8, 8, 8
    x = jax.random.normal(k1, (N, Cin, H, W), jnp.float32)
    skip = jax.random.normal(k2, (N, Cout, 2 * H, 2 * W), jnp.float32)
    weight = 0.1 * jax.random.normal(k3, (Cin, Cout, 4, 4), jnp.float32)  # torch layout

    out = jax.jit(unet_up_forward)(x, skip, weight)
    out = jax.block_until_ready(out)
    assert out.shape == (N, 2 * Cout, 2 * H, 2 * W), out.shape

    # Tight check vs. a reference fed the same bf16-rounded operands (isolates
    # kernel math from the intentional bf16 input quantization).
    xq = x.astype(jnp.bfloat16).astype(jnp.float32)
    wq = weight.astype(jnp.bfloat16).astype(jnp.float32)
    ref_q = unet_up_reference(xq, skip, wq)
    err_q = float(jnp.max(jnp.abs(out - ref_q)))
    assert jnp.allclose(out, ref_q, atol=2e-3, rtol=2e-3), err_q

    # Loose check vs. exact f32 module semantics (bf16 MXU operands).
    ref = unet_up_reference(x, skip, weight)
    err = float(jnp.max(jnp.abs(out - ref)))
    assert jnp.allclose(out, ref, atol=5e-2, rtol=5e-2), err

    print("KERNEL_OK")
</pallas_src>

<mosaic_0001>
module attributes {stable_mosaic.version = 11 : i64} {
  func.func @_unet_up_kernel(%arg0: i32, %arg1: i32, %arg2: memref<1x10x10x128xbf16, #tpu.memory_space<vmem>>, %arg3: memref<4x4x128x128xbf16, #tpu.memory_space<vmem>>, %arg4: memref<1x4x64x128xf32, #tpu.memory_space<vmem>>, %arg5: memref<4x64x128xf32, #tpu.memory_space<vmem>>) attributes {dimension_semantics = [#tpu.dimension_semantics<parallel>, #tpu.dimension_semantics<parallel>], iteration_bounds = array<i64: 2, 1>, scalar_prefetch = 0 : i64, scratch_operands = 1 : i64, tpu.core_type = #tpu.core_type<tc>, window_params = [{transform_indices = @transform_0, window_bounds = array<i64: 1, 10, 10, 128>}, {transform_indices = @transform_1, window_bounds = array<i64: 4, 4, 128, 128>}, {transform_indices = @transform_2, window_bounds = array<i64: 1, 4, 64, 128>}]} {
    %c0 = arith.constant 0 : index
    %c0_0 = arith.constant 0 : index
    %c0_1 = arith.constant 0 : index
    %c0_2 = arith.constant 0 : index
    %0 = vector.load %arg2[%c0, %c0_0, %c0_1, %c0_2] : memref<1x10x10x128xbf16, #tpu.memory_space<vmem>>, vector<1x10x10x128xbf16>
    %1 = vector.shape_cast %0 : vector<1x10x10x128xbf16> to vector<10x10x128xbf16>
    %2 = vector.extract_strided_slice %1 {offsets = [0, 0, 0], sizes = [8, 8, 128], strides = [1, 1, 1]} : vector<10x10x128xbf16> to vector<8x8x128xbf16>
    %3 = vector.shape_cast %2 : vector<8x8x128xbf16> to vector<64x128xbf16>
    %4 = vector.extract_strided_slice %1 {offsets = [0, 1, 0], sizes = [8, 8, 128], strides = [1, 1, 1]} : vector<10x10x128xbf16> to vector<8x8x128xbf16>
    %5 = vector.shape_cast %4 : vector<8x8x128xbf16> to vector<64x128xbf16>
    %6 = vector.extract_strided_slice %1 {offsets = [0, 2, 0], sizes = [8, 8, 128], strides = [1, 1, 1]} : vector<10x10x128xbf16> to vector<8x8x128xbf16>
    %7 = vector.shape_cast %6 : vector<8x8x128xbf16> to vector<64x128xbf16>
    %8 = vector.extract_strided_slice %1 {offsets = [1, 0, 0], sizes = [8, 8, 128], strides = [1, 1, 1]} : vector<10x10x128xbf16> to vector<8x8x128xbf16>
    %9 = vector.shape_cast %8 : vector<8x8x128xbf16> to vector<64x128xbf16>
    %10 = vector.extract_strided_slice %1 {offsets = [1, 1, 0], sizes = [8, 8, 128], strides = [1, 1, 1]} : vector<10x10x128xbf16> to vector<8x8x128xbf16>
    %11 = vector.shape_cast %10 : vector<8x8x128xbf16> to vector<64x128xbf16>
    %12 = vector.extract_strided_slice %1 {offsets = [1, 2, 0], sizes = [8, 8, 128], strides = [1, 1, 1]} : vector<10x10x128xbf16> to vector<8x8x128xbf16>
    %13 = vector.shape_cast %12 : vector<8x8x128xbf16> to vector<64x128xbf16>
    %14 = vector.extract_strided_slice %1 {offsets = [2, 0, 0], sizes = [8, 8, 128], strides = [1, 1, 1]} : vector<10x10x128xbf16> to vector<8x8x128xbf16>
    %15 = vector.shape_cast %14 : vector<8x8x128xbf16> to vector<64x128xbf16>
    %16 = vector.extract_strided_slice %1 {offsets = [2, 1, 0], sizes = [8, 8, 128], strides = [1, 1, 1]} : vector<10x10x128xbf16> to vector<8x8x128xbf16>
    %17 = vector.shape_cast %16 : vector<8x8x128xbf16> to vector<64x128xbf16>
    %18 = vector.extract_strided_slice %1 {offsets = [2, 2, 0], sizes = [8, 8, 128], strides = [1, 1, 1]} : vector<10x10x128xbf16> to vector<8x8x128xbf16>
    %19 = vector.shape_cast %18 : vector<8x8x128xbf16> to vector<64x128xbf16>
    %cst = arith.constant 0.000000e+00 : f32
    %20 = vector.broadcast %cst : f32 to vector<1x128xf32>
    %cst_3 = arith.constant 0.000000e+00 : f32
    %21 = vector.broadcast %cst_3 : f32 to vector<1x128xf32>
    %cst_4 = arith.constant 0.000000e+00 : f32
    %22 = vector.broadcast %cst_4 : f32 to vector<64x128xf32>
    %c0_5 = arith.constant 0 : index
    %c0_6 = arith.constant 0 : index
    %c0_7 = arith.constant 0 : index
    %c0_8 = arith.constant 0 : index
    %23 = vector.load %arg3[%c0_5, %c0_6, %c0_7, %c0_8] : memref<4x4x128x128xbf16, #tpu.memory_space<vmem>>, vector<1x1x128x128xbf16>
    %24 = vector.shape_cast %23 : vector<1x1x128x128xbf16> to vector<128x128xbf16>
    %cst_9 = arith.constant dense<0.000000e+00> : vector<64x128xf32>
    %25 = tpu.matmul %3, %24, %cst_9 {dimension_numbers = #tpu.dot_dimension_numbers<[1], [0], [0], [1], [0, 0, 1, 1], [], []>} : vector<64x128xbf16>, vector<128x128xbf16>, vector<64x128xf32> -> vector<64x128xf32>
    %26 = arith.addf %22, %25 : vector<64x128xf32>
    %c0_10 = arith.constant 0 : index
    %c1 = arith.constant 1 : index
    %c0_11 = arith.constant 0 : index
    %c0_12 = arith.constant 0 : index
    %27 = vector.load %arg3[%c0_10, %c1, %c0_11, %c0_12] : memref<4x4x128x128xbf16, #tpu.memory_space<vmem>>, vector<1x1x128x128xbf16>
    %28 = vector.shape_cast %27 : vector<1x1x128x128xbf16> to vector<128x128xbf16>
    %cst_13 = arith.constant dense<0.000000e+00> : vector<64x128xf32>
    %29 = tpu.matmul %5, %28, %cst_13 {dimension_numbers = #tpu.dot_dimension_numbers<[1], [0], [0], [1], [0, 0, 1, 1], [], []>} : vector<64x128xbf16>, vector<128x128xbf16>, vector<64x128xf32> -> vector<64x128xf32>
    %30 = arith.addf %26, %29 : vector<64x128xf32>
    %c0_14 = arith.constant 0 : index
    %c2 = arith.constant 2 : index
    %c0_15 = arith.constant 0 : index
    %c0_16 = arith.constant 0 : index
    %31 = vector.load %arg3[%c0_14, %c2, %c0_15, %c0_16] : memref<4x4x128x128xbf16, #tpu.memory_space<vmem>>, vector<1x1x128x128xbf16>
    %32 = vector.shape_cast %31 : vector<1x1x128x128xbf16> to vector<128x128xbf16>
    %cst_17 = arith.constant dense<0.000000e+00> : vector<64x128xf32>
    %33 = tpu.matmul %9, %32, %cst_17 {dimension_numbers = #tpu.dot_dimension_numbers<[1], [0], [0], [1], [0, 0, 1, 1], [], []>} : vector<64x128xbf16>, vector<128x128xbf16>, vector<64x128xf32> -> vector<64x128xf32>
    %34 = arith.addf %30, %33 : vector<64x128xf32>
    %c0_18 = arith.constant 0 : index
    %c3 = arith.constant 3 : index
    %c0_19 = arith.constant 0 : index
    %c0_20 = arith.constant 0 : index
    %35 = vector.load %arg3[%c0_18, %c3, %c0_19, %c0_20] : memref<4x4x128x128xbf16, #tpu.memory_space<vmem>>, vector<1x1x128x128xbf16>
    %36 = vector.shape_cast %35 : vector<1x1x128x128xbf16> to vector<128x128xbf16>
    %cst_21 = arith.constant dense<0.000000e+00> : vector<64x128xf32>
    %37 = tpu.matmul %11, %36, %cst_21 {dimension_numbers = #tpu.dot_dimension_numbers<[1], [0], [0], [1], [0, 0, 1, 1], [], []>} : vector<64x128xbf16>, vector<128x128xbf16>, vector<64x128xf32> -> vector<64x128xf32>
    %38 = arith.addf %34, %37 : vector<64x128xf32>
    %c0_22 = arith.constant 0 : index
    %c0_23 = arith.constant 0 : index
    %c0_24 = arith.constant 0 : index
    %39 = vector.load %arg5[%c0_22, %c0_23, %c0_24] : memref<4x64x128xf32, #tpu.memory_space<vmem>>, vector<1x64x128xf32>
    %40 = vector.shape_cast %39 : vector<1x64x128xf32> to vector<64x128xf32>
    %41 = vector.shape_cast %38 : vector<64x128xf32> to vector<1x64x128xf32>
    tpu.vector_store %arg5[%c0_22, %c0_23, %c0_24], %41 {strides = array<i32>} : memref<4x64x128xf32, #tpu.memory_space<vmem>>, vector<1x64x128xf32>,
    %cst_25 = arith.constant dense<0.000000e+00> : vector<128xf32>
    %42 = vector.multi_reduction <add>, %38, %cst_25 [0] : vector<64x128xf32> to vector<128xf32>
    %43 = vector.shape_cast %42 : vector<128xf32> to vector<1x128xf32>
    %44 = arith.addf %20, %43 : vector<1x128xf32>
    %45 = arith.mulf %38, %38 : vector<64x128xf32>
    %cst_26 = arith.constant dense<0.000000e+00> : vector<128xf32>
    %46 = vector.multi_reduction <add>, %45, %cst_26 [0] : vector<64x128xf32> to vector<128xf32>
    %47 = vector.shape_cast %46 : vector<128xf32> to vector<1x128xf32>
    %48 = arith.addf %21, %47 : vector<1x128xf32>
    %cst_27 = arith.constant 0.000000e+00 : f32
    %49 = vector.broadcast %cst_27 : f32 to vector<64x128xf32>
    %c1_28 = arith.constant 1 : index
    %c0_29 = arith.constant 0 : index
    %c0_30 = arith.constant 0 : index
    %c0_31 = arith.constant 0 : index
    %50 = vector.load %arg3[%c1_28, %c0_29, %c0_30, %c0_31] : memref<4x4x128x128xbf16, #tpu.memory_space<vmem>>, vector<1x1x128x128xbf16>
    %51 = vector.shape_cast %50 : vector<1x1x128x128xbf16> to vector<128x128xbf16>
    %cst_32 = arith.constant dense<0.000000e+00> : vector<64x128xf32>
    %52 = tpu.matmul %5, %51, %cst_32 {dimension_numbers = #tpu.dot_dimension_numbers<[1], [0], [0], [1], [0, 0, 1, 1], [], []>} : vector<64x128xbf16>, vector<128x128xbf16>, vector<64x128xf32> -> vector<64x128xf32>
    %53 = arith.addf %49, %52 : vector<64x128xf32>
    %c1_33 = arith.constant 1 : index
    %c1_34 = arith.constant 1 : index
    %c0_35 = arith.constant 0 : index
    %c0_36 = arith.constant 0 : index
    %54 = vector.load %arg3[%c1_33, %c1_34, %c0_35, %c0_36] : memref<4x4x128x128xbf16, #tpu.memory_space<vmem>>, vector<1x1x128x128xbf16>
    %55 = vector.shape_cast %54 : vector<1x1x128x128xbf16> to vector<128x128xbf16>
    %cst_37 = arith.constant dense<0.000000e+00> : vector<64x128xf32>
    %56 = tpu.matmul %7, %55, %cst_37 {dimension_numbers = #tpu.dot_dimension_numbers<[1], [0], [0], [1], [0, 0, 1, 1], [], []>} : vector<64x128xbf16>, vector<128x128xbf16>, vector<64x128xf32> -> vector<64x128xf32>
    %57 = arith.addf %53, %56 : vector<64x128xf32>
    %c1_38 = arith.constant 1 : index
    %c2_39 = arith.constant 2 : index
    %c0_40 = arith.constant 0 : index
    %c0_41 = arith.constant 0 : index
    %58 = vector.load %arg3[%c1_38, %c2_39, %c0_40, %c0_41] : memref<4x4x128x128xbf16, #tpu.memory_space<vmem>>, vector<1x1x128x128xbf16>
    %59 = vector.shape_cast %58 : vector<1x1x128x128xbf16> to vector<128x128xbf16>
    %cst_42 = arith.constant dense<0.000000e+00> : vector<64x128xf32>
    %60 = tpu.matmul %11, %59, %cst_42 {dimension_numbers = #tpu.dot_dimension_numbers<[1], [0], [0], [1], [0, 0, 1, 1], [], []>} : vector<64x128xbf16>, vector<128x128xbf16>, vector<64x128xf32> -> vector<64x128xf32>
    %61 = arith.addf %57, %60 : vector<64x128xf32>
    %c1_43 = arith.constant 1 : index
    %c3_44 = arith.constant 3 : index
    %c0_45 = arith.constant 0 : index
    %c0_46 = arith.constant 0 : index
    %62 = vector.load %arg3[%c1_43, %c3_44, %c0_45, %c0_46] : memref<4x4x128x128xbf16, #tpu.memory_space<vmem>>, vector<1x1x128x128xbf16>
    %63 = vector.shape_cast %62 : vector<1x1x128x128xbf16> to vector<128x128xbf16>
    %cst_47 = arith.constant dense<0.000000e+00> : vector<64x128xf32>
    %64 = tpu.matmul %13, %63, %cst_47 {dimension_numbers = #tpu.dot_dimension_numbers<[1], [0], [0], [1], [0, 0, 1, 1], [], []>} : vector<64x128xbf16>, vector<128x128xbf16>, vector<64x128xf32> -> vector<64x128xf32>
    %65 = arith.addf %61, %64 : vector<64x128xf32>
    %c1_48 = arith.constant 1 : index
    %c0_49 = arith.constant 0 : index
    %c0_50 = arith.constant 0 : index
    %66 = vector.load %arg5[%c1_48, %c0_49, %c0_50] : memref<4x64x128xf32, #tpu.memory_space<vmem>>, vector<1x64x128xf32>
    %67 = vector.shape_cast %66 : vector<1x64x128xf32> to vector<64x128xf32>
    %68 = vector.shape_cast %65 : vector<64x128xf32> to vector<1x64x128xf32>
    tpu.vector_store %arg5[%c1_48, %c0_49, %c0_50], %68 {strides = array<i32>} : memref<4x64x128xf32, #tpu.memory_space<vmem>>, vector<1x64x128xf32>,
    %cst_51 = arith.constant dense<0.000000e+00> : vector<128xf32>
    %69 = vector.multi_reduction <add>, %65, %cst_51 [0] : vector<64x128xf32> to vector<128xf32>
    %70 = vector.shape_cast %69 : vector<128xf32> to vector<1x128xf32>
    %71 = arith.addf %44, %70 : vector<1x128xf32>
    %72 = arith.mulf %65, %65 : vector<64x128xf32>
    %cst_52 = arith.constant dense<0.000000e+00> : vector<128xf32>
    %73 = vector.multi_reduction <add>, %72, %cst_52 [0] : vector<64x128xf32> to vector<128xf32>
    %74 = vector.shape_cast %73 : vector<128xf32> to vector<1x128xf32>
    %75 = arith.addf %48, %74 : vector<1x128xf32>
    %cst_53 = arith.constant 0.000000e+00 : f32
    %76 = vector.broadcast %cst_53 : f32 to vector<64x128xf32>
    %c2_54 = arith.constant 2 : index
    %c0_55 = arith.constant 0 : index
    %c0_56 = arith.constant 0 : index
    %c0_57 = arith.constant 0 : index
    %77 = vector.load %arg3[%c2_54, %c0_55, %c0_56, %c0_57] : memref<4x4x128x128xbf16, #tpu.memory_space<vmem>>, vector<1x1x128x128xbf16>
    %78 = vector.shape_cast %77 : vector<1x1x128x128xbf16> to vector<128x128xbf16>
    %cst_58 = arith.constant dense<0.000000e+00> : vector<64x128xf32>
    %79 = tpu.matmul %9, %78, %cst_58 {dimension_numbers = #tpu.dot_dimension_numbers<[1], [0], [0], [1], [0, 0, 1, 1], [], []>} : vector<64x128xbf16>, vector<128x128xbf16>, vector<64x128xf32> -> vector<64x128xf32>
    %80 = arith.addf %76, %79 : vector<64x128xf32>
    %c2_59 = arith.constant 2 : index
    %c1_60 = arith.constant 1 : index
    %c0_61 = arith.constant 0 : index
    %c0_62 = arith.constant 0 : index
    %81 = vector.load %arg3[%c2_59, %c1_60, %c0_61, %c0_62] : memref<4x4x128x128xbf16, #tpu.memory_space<vmem>>, vector<1x1x128x128xbf16>
    %82 = vector.shape_cast %81 : vector<1x1x128x128xbf16> to vector<128x128xbf16>
    %cst_63 = arith.constant dense<0.000000e+00> : vector<64x128xf32>
    %83 = tpu.matmul %11, %82, %cst_63 {dimension_numbers = #tpu.dot_dimension_numbers<[1], [0], [0], [1], [0, 0, 1, 1], [], []>} : vector<64x128xbf16>, vector<128x128xbf16>, vector<64x128xf32> -> vector<64x128xf32>
    %84 = arith.addf %80, %83 : vector<64x128xf32>
    %c2_64 = arith.constant 2 : index
    %c2_65 = arith.constant 2 : index
    %c0_66 = arith.constant 0 : index
    %c0_67 = arith.constant 0 : index
    %85 = vector.load %arg3[%c2_64, %c2_65, %c0_66, %c0_67] : memref<4x4x128x128xbf16, #tpu.memory_space<vmem>>, vector<1x1x128x128xbf16>
    %86 = vector.shape_cast %85 : vector<1x1x128x128xbf16> to vector<128x128xbf16>
    %cst_68 = arith.constant dense<0.000000e+00> : vector<64x128xf32>
    %87 = tpu.matmul %15, %86, %cst_68 {dimension_numbers = #tpu.dot_dimension_numbers<[1], [0], [0], [1], [0, 0, 1, 1], [], []>} : vector<64x128xbf16>, vector<128x128xbf16>, vector<64x128xf32> -> vector<64x128xf32>
    %88 = arith.addf %84, %87 : vector<64x128xf32>
    %c2_69 = arith.constant 2 : index
    %c3_70 = arith.constant 3 : index
    %c0_71 = arith.constant 0 : index
    %c0_72 = arith.constant 0 : index
    %89 = vector.load %arg3[%c2_69, %c3_70, %c0_71, %c0_72] : memref<4x4x128x128xbf16, #tpu.memory_space<vmem>>, vector<1x1x128x128xbf16>
    %90 = vector.shape_cast %89 : vector<1x1x128x128xbf16> to vector<128x128xbf16>
    %cst_73 = arith.constant dense<0.000000e+00> : vector<64x128xf32>
    %91 = tpu.matmul %17, %90, %cst_73 {dimension_numbers = #tpu.dot_dimension_numbers<[1], [0], [0], [1], [0, 0, 1, 1], [], []>} : vector<64x128xbf16>, vector<128x128xbf16>, vector<64x128xf32> -> vector<64x128xf32>
    %92 = arith.addf %88, %91 : vector<64x128xf32>
    %c2_74 = arith.constant 2 : index
    %c0_75 = arith.constant 0 : index
    %c0_76 = arith.constant 0 : index
    %93 = vector.load %arg5[%c2_74, %c0_75, %c0_76] : memref<4x64x128xf32, #tpu.memory_space<vmem>>, vector<1x64x128xf32>
    %94 = vector.shape_cast %93 : vector<1x64x128xf32> to vector<64x128xf32>
    %95 = vector.shape_cast %92 : vector<64x128xf32> to vector<1x64x128xf32>
    tpu.vector_store %arg5[%c2_74, %c0_75, %c0_76], %95 {strides = array<i32>} : memref<4x64x128xf32, #tpu.memory_space<vmem>>, vector<1x64x128xf32>,
    %cst_77 = arith.constant dense<0.000000e+00> : vector<128xf32>
    %96 = vector.multi_reduction <add>, %92, %cst_77 [0] : vector<64x128xf32> to vector<128xf32>
    %97 = vector.shape_cast %96 : vector<128xf32> to vector<1x128xf32>
    %98 = arith.addf %71, %97 : vector<1x128xf32>
    %99 = arith.mulf %92, %92 : vector<64x128xf32>
    %cst_78 = arith.constant dense<0.000000e+00> : vector<128xf32>
    %100 = vector.multi_reduction <add>, %99, %cst_78 [0] : vector<64x128xf32> to vector<128xf32>
    %101 = vector.shape_cast %100 : vector<128xf32> to vector<1x128xf32>
    %102 = arith.addf %75, %101 : vector<1x128xf32>
    %cst_79 = arith.constant 0.000000e+00 : f32
    %103 = vector.broadcast %cst_79 : f32 to vector<64x128xf32>
    %c3_80 = arith.constant 3 : index
    %c0_81 = arith.constant 0 : index
    %c0_82 = arith.constant 0 : index
    %c0_83 = arith.constant 0 : index
    %104 = vector.load %arg3[%c3_80, %c0_81, %c0_82, %c0_83] : memref<4x4x128x128xbf16, #tpu.memory_space<vmem>>, vector<1x1x128x128xbf16>
    %105 = vector.shape_cast %104 : vector<1x1x128x128xbf16> to vector<128x128xbf16>
    %cst_84 = arith.constant dense<0.000000e+00> : vector<64x128xf32>
    %106 = tpu.matmul %11, %105, %cst_84 {dimension_numbers = #tpu.dot_dimension_numbers<[1], [0], [0], [1], [0, 0, 1, 1], [], []>} : vector<64x128xbf16>, vector<128x128xbf16>, vector<64x128xf32> -> vector<64x128xf32>
    %107 = arith.addf %103, %106 : vector<64x128xf32>
    %c3_85 = arith.constant 3 : index
    %c1_86 = arith.constant 1 : index
    %c0_87 = arith.constant 0 : index
    %c0_88 = arith.constant 0 : index
    %108 = vector.load %arg3[%c3_85, %c1_86, %c0_87, %c0_88] : memref<4x4x128x128xbf16, #tpu.memory_space<vmem>>, vector<1x1x128x128xbf16>
    %109 = vector.shape_cast %108 : vector<1x1x128x128xbf16> to vector<128x128xbf16>
    %cst_89 = arith.constant dense<0.000000e+00> : vector<64x128xf32>
    %110 = tpu.matmul %13, %109, %cst_89 {dimension_numbers = #tpu.dot_dimension_numbers<[1], [0], [0], [1], [0, 0, 1, 1], [], []>} : vector<64x128xbf16>, vector<128x128xbf16>, vector<64x128xf32> -> vector<64x128xf32>
    %111 = arith.addf %107, %110 : vector<64x128xf32>
    %c3_90 = arith.constant 3 : index
    %c2_91 = arith.constant 2 : index
    %c0_92 = arith.constant 0 : index
    %c0_93 = arith.constant 0 : index
    %112 = vector.load %arg3[%c3_90, %c2_91, %c0_92, %c0_93] : memref<4x4x128x128xbf16, #tpu.memory_space<vmem>>, vector<1x1x128x128xbf16>
    %113 = vector.shape_cast %112 : vector<1x1x128x128xbf16> to vector<128x128xbf16>
    %cst_94 = arith.constant dense<0.000000e+00> : vector<64x128xf32>
    %114 = tpu.matmul %17, %113, %cst_94 {dimension_numbers = #tpu.dot_dimension_numbers<[1], [0], [0], [1], [0, 0, 1, 1], [], []>} : vector<64x128xbf16>, vector<128x128xbf16>, vector<64x128xf32> -> vector<64x128xf32>
    %115 = arith.addf %111, %114 : vector<64x128xf32>
    %c3_95 = arith.constant 3 : index
    %c3_96 = arith.constant 3 : index
    %c0_97 = arith.constant 0 : index
    %c0_98 = arith.constant 0 : index
    %116 = vector.load %arg3[%c3_95, %c3_96, %c0_97, %c0_98] : memref<4x4x128x128xbf16, #tpu.memory_space<vmem>>, vector<1x1x128x128xbf16>
    %117 = vector.shape_cast %116 : vector<1x1x128x128xbf16> to vector<128x128xbf16>
    %cst_99 = arith.constant dense<0.000000e+00> : vector<64x128xf32>
    %118 = tpu.matmul %19, %117, %cst_99 {dimension_numbers = #tpu.dot_dimension_numbers<[1], [0], [0], [1], [0, 0, 1, 1], [], []>} : vector<64x128xbf16>, vector<128x128xbf16>, vector<64x128xf32> -> vector<64x128xf32>
    %119 = arith.addf %115, %118 : vector<64x128xf32>
    %c3_100 = arith.constant 3 : index
    %c0_101 = arith.constant 0 : index
    %c0_102 = arith.constant 0 : index
    %120 = vector.load %arg5[%c3_100, %c0_101, %c0_102] : memref<4x64x128xf32, #tpu.memory_space<vmem>>, vector<1x64x128xf32>
    %121 = vector.shape_cast %120 : vector<1x64x128xf32> to vector<64x128xf32>
    %122 = vector.shape_cast %119 : vector<64x128xf32> to vector<1x64x128xf32>
    tpu.vector_store %arg5[%c3_100, %c0_101, %c0_102], %122 {strides = array<i32>} : memref<4x64x128xf32, #tpu.memory_space<vmem>>, vector<1x64x128xf32>,
    %cst_103 = arith.constant dense<0.000000e+00> : vector<128xf32>
    %123 = vector.multi_reduction <add>, %119, %cst_103 [0] : vector<64x128xf32> to vector<128xf32>
    %124 = vector.shape_cast %123 : vector<128xf32> to vector<1x128xf32>
    %125 = arith.addf %98, %124 : vector<1x128xf32>
    %126 = arith.mulf %119, %119 : vector<64x128xf32>
    %cst_104 = arith.constant dense<0.000000e+00> : vector<128xf32>
    %127 = vector.multi_reduction <add>, %126, %cst_104 [0] : vector<64x128xf32> to vector<128xf32>
    %128 = vector.shape_cast %127 : vector<128xf32> to vector<1x128xf32>
    %129 = arith.addf %102, %128 : vector<1x128xf32>
    %cst_105 = arith.constant 3.906250e-03 : f32
    %130 = vector.broadcast %cst_105 : f32 to vector<1x128xf32>
    %131 = arith.mulf %125, %130 : vector<1x128xf32>
    %cst_106 = arith.constant 3.906250e-03 : f32
    %132 = vector.broadcast %cst_106 : f32 to vector<1x128xf32>
    %133 = arith.mulf %129, %132 : vector<1x128xf32>
    %134 = arith.mulf %131, %131 : vector<1x128xf32>
    %135 = arith.subf %133, %134 : vector<1x128xf32>
    %cst_107 = arith.constant 0.000000e+00 : f32
    %136 = vector.broadcast %cst_107 : f32 to vector<1x128xf32>
    %137 = arith.maximumf %135, %136 : vector<1x128xf32>
    %cst_108 = arith.constant 9.99999974E-6 : f32
    %138 = vector.broadcast %cst_108 : f32 to vector<1x128xf32>
    %139 = arith.addf %137, %138 : vector<1x128xf32>
    %140 = math.rsqrt %139 : vector<1x128xf32>
    %c0_109 = arith.constant 0 : index
    %c0_110 = arith.constant 0 : index
    %c0_111 = arith.constant 0 : index
    %141 = vector.load %arg5[%c0_109, %c0_110, %c0_111] : memref<4x64x128xf32, #tpu.memory_space<vmem>>, vector<1x64x128xf32>
    %142 = vector.shape_cast %141 : vector<1x64x128xf32> to vector<64x128xf32>
    %143 = vector.broadcast %131 : vector<1x128xf32> to vector<64x128xf32>
    %144 = arith.subf %142, %143 : vector<64x128xf32>
    %145 = vector.broadcast %140 : vector<1x128xf32> to vector<64x128xf32>
    %146 = arith.mulf %144, %145 : vector<64x128xf32>
    %cst_112 = arith.constant 0.000000e+00 : f32
    %147 = vector.broadcast %cst_112 : f32 to vector<64x128xf32>
    %148 = arith.maximumf %146, %147 : vector<64x128xf32>
    %c0_113 = arith.constant 0 : index
    %c0_114 = arith.constant 0 : index
    %c0_115 = arith.constant 0 : index
    %c0_116 = arith.constant 0 : index
    %149 = vector.load %arg4[%c0_113, %c0_114, %c0_115, %c0_116] : memref<1x4x64x128xf32, #tpu.memory_space<vmem>>, vector<1x1x64x128xf32>
    %150 = vector.shape_cast %149 : vector<1x1x64x128xf32> to vector<64x128xf32>
    %151 = vector.shape_cast %148 : vector<64x128xf32> to vector<1x1x64x128xf32>
    tpu.vector_store %arg4[%c0_113, %c0_114, %c0_115, %c0_116], %151 {strides = array<i32>} : memref<1x4x64x128xf32, #tpu.memory_space<vmem>>, vector<1x1x64x128xf32>,
    %c1_117 = arith.constant 1 : index
    %c0_118 = arith.constant 0 : index
    %c0_119 = arith.constant 0 : index
    %152 = vector.load %arg5[%c1_117, %c0_118, %c0_119] : memref<4x64x128xf32, #tpu.memory_space<vmem>>, vector<1x64x128xf32>
    %153 = vector.shape_cast %152 : vector<1x64x128xf32> to vector<64x128xf32>
    %154 = vector.broadcast %131 : vector<1x128xf32> to vector<64x128xf32>
    %155 = arith.subf %153, %154 : vector<64x128xf32>
    %156 = vector.broadcast %140 : vector<1x128xf32> to vector<64x128xf32>
    %157 = arith.mulf %155, %156 : vector<64x128xf32>
    %cst_120 = arith.constant 0.000000e+00 : f32
    %158 = vector.broadcast %cst_120 : f32 to vector<64x128xf32>
    %159 = arith.maximumf %157, %158 : vector<64x128xf32>
    %c0_121 = arith.constant 0 : index
    %c1_122 = arith.constant 1 : index
    %c0_123 = arith.constant 0 : index
    %c0_124 = arith.constant 0 : index
    %160 = vector.load %arg4[%c0_121, %c1_122, %c0_123, %c0_124] : memref<1x4x64x128xf32, #tpu.memory_space<vmem>>, vector<1x1x64x128xf32>
    %161 = vector.shape_cast %160 : vector<1x1x64x128xf32> to vector<64x128xf32>
    %162 = vector.shape_cast %159 : vector<64x128xf32> to vector<1x1x64x128xf32>
    tpu.vector_store %arg4[%c0_121, %c1_122, %c0_123, %c0_124], %162 {strides = array<i32>} : memref<1x4x64x128xf32, #tpu.memory_space<vmem>>, vector<1x1x64x128xf32>,
    %c2_125 = arith.constant 2 : index
    %c0_126 = arith.constant 0 : index
    %c0_127 = arith.constant 0 : index
    %163 = vector.load %arg5[%c2_125, %c0_126, %c0_127] : memref<4x64x128xf32, #tpu.memory_space<vmem>>, vector<1x64x128xf32>
    %164 = vector.shape_cast %163 : vector<1x64x128xf32> to vector<64x128xf32>
    %165 = vector.broadcast %131 : vector<1x128xf32> to vector<64x128xf32>
    %166 = arith.subf %164, %165 : vector<64x128xf32>
    %167 = vector.broadcast %140 : vector<1x128xf32> to vector<64x128xf32>
    %168 = arith.mulf %166, %167 : vector<64x128xf32>
    %cst_128 = arith.constant 0.000000e+00 : f32
    %169 = vector.broadcast %cst_128 : f32 to vector<64x128xf32>
    %170 = arith.maximumf %168, %169 : vector<64x128xf32>
    %c0_129 = arith.constant 0 : index
    %c2_130 = arith.constant 2 : index
    %c0_131 = arith.constant 0 : index
    %c0_132 = arith.constant 0 : index
    %171 = vector.load %arg4[%c0_129, %c2_130, %c0_131, %c0_132] : memref<1x4x64x128xf32, #tpu.memory_space<vmem>>, vector<1x1x64x128xf32>
    %172 = vector.shape_cast %171 : vector<1x1x64x128xf32> to vector<64x128xf32>
    %173 = vector.shape_cast %170 : vector<64x128xf32> to vector<1x1x64x128xf32>
    tpu.vector_store %arg4[%c0_129, %c2_130, %c0_131, %c0_132], %173 {strides = array<i32>} : memref<1x4x64x128xf32, #tpu.memory_space<vmem>>, vector<1x1x64x128xf32>,
    %c3_133 = arith.constant 3 : index
    %c0_134 = arith.constant 0 : index
    %c0_135 = arith.constant 0 : index
    %174 = vector.load %arg5[%c3_133, %c0_134, %c0_135] : memref<4x64x128xf32, #tpu.memory_space<vmem>>, vector<1x64x128xf32>
    %175 = vector.shape_cast %174 : vector<1x64x128xf32> to vector<64x128xf32>
    %176 = vector.broadcast %131 : vector<1x128xf32> to vector<64x128xf32>
    %177 = arith.subf %175, %176 : vector<64x128xf32>
    %178 = vector.broadcast %140 : vector<1x128xf32> to vector<64x128xf32>
    %179 = arith.mulf %177, %178 : vector<64x128xf32>
    %cst_136 = arith.constant 0.000000e+00 : f32
    %180 = vector.broadcast %cst_136 : f32 to vector<64x128xf32>
    %181 = arith.maximumf %179, %180 : vector<64x128xf32>
    %c0_137 = arith.constant 0 : index
    %c3_138 = arith.constant 3 : index
    %c0_139 = arith.constant 0 : index
    %c0_140 = arith.constant 0 : index
    %182 = vector.load %arg4[%c0_137, %c3_138, %c0_139, %c0_140] : memref<1x4x64x128xf32, #tpu.memory_space<vmem>>, vector<1x1x64x128xf32>
    %183 = vector.shape_cast %182 : vector<1x1x64x128xf32> to vector<64x128xf32>
    %184 = vector.shape_cast %181 : vector<64x128xf32> to vector<1x1x64x128xf32>
    tpu.vector_store %arg4[%c0_137, %c3_138, %c0_139, %c0_140], %184 {strides = array<i32>} : memref<1x4x64x128xf32, #tpu.memory_space<vmem>>, vector<1x1x64x128xf32>,
    return
  }
  func.func @transform_0(%arg0: i32, %arg1: i32) -> (i32, i32, i32, i32) {
    %c0_i32 = arith.constant 0 : i32
    %c0_i32_0 = arith.constant 0 : i32
    %c0_i32_1 = arith.constant 0 : i32
    %c0_i32_2 = arith.constant 0 : i32
    return %arg0, %c0_i32, %c0_i32_0, %c0_i32_1 : i32, i32, i32, i32
  }
  func.func @transform_1(%arg0: i32, %arg1: i32) -> (i32, i32, i32, i32) {
    %c0_i32 = arith.constant 0 : i32
    %c0_i32_0 = arith.constant 0 : i32
    %c0_i32_1 = arith.constant 0 : i32
    %c0_i32_2 = arith.constant 0 : i32
    return %c0_i32, %c0_i32_0, %c0_i32_1, %arg1 : i32, i32, i32, i32
  }
  func.func @transform_2(%arg0: i32, %arg1: i32) -> (i32, i32, i32, i32) {
    %c0_i32 = arith.constant 0 : i32
    %c0_i32_0 = arith.constant 0 : i32
    %c0_i32_1 = arith.constant 0 : i32
    return %arg0, %c0_i32, %c0_i32_0, %arg1 : i32, i32, i32, i32
  }
}

</mosaic_0001>

<llo_original>
// kernel: unet_up_forward.1
$region0: #{unet_up_forward.1}
  #allocation0 [shape = 'u32[]', space=smem, size = 0x4, offset = 0x4, fixed_abs, tag = 'smem constant byte address 0x4 - core index']
  #allocation1 [shape = 'u32[144,128]{1,0:T(1,128)}', space=vmem, size = 0x12000, scoped, tag = 'internal scratch']
  #allocation2 [shape = 'f32[4,64,128]{2,1,0:T(8,128)}', space=vmem, size = 0x20000, scoped, tag = 'scratch operand']
  %s0 = inlined_call_operand.vmem [shape: bf16[2,10,10,128], index: 0, kind: input, shape index: {}]
  %s1 = inlined_call_operand.vmem [shape: bf16[4,4,128,128], index: 1, kind: input, shape index: {}]
  %s2 = inlined_call_operand.vmem [shape: f32[2,4,64,128], index: 2, kind: output, shape index: {}]
  %s3 = sld [smem:[#allocation0]]
  $region41: #{unet_up_forward.1} parent=0
    _
  %s5 = ssub.s32 1, %s3
  %s6 = scalar_select 0, %s5, %s3
  loop: start=0, step=1, limit=4
  $region2: #{unet_up_forward.1} parent=0 // loop_pre_header
    _
  $region3: #{unet_up_forward.1} parent=0 // loop_header
    %s8 = sphi 0, %s12
    %p9 = scmp.ge.s32.totalorder %s8, 4
    %s15 = sphi 0, %s27
    %s16 = sphi 0, %s23
    %s17 = sphi 0, %s15
    %s18 = sphi 0, %s16
    %s19 = sphi 0, %s17
    %s20 = sphi 0, %s18
    %s30 = sphi 0, %s32
    %s33 = sphi 0, %s30
    %s34 = sphi 0, %s33
    %s50 = sphi 0, %s34
    %s56 = sphi 0, %s58
    %s59 = sphi 0, %s56
    %s60 = sphi 0, %s59
    %s76 = sphi 0, %s60
    %s84 = sphi 0, %s86
    %s87 = sphi 0, %s84
    %s88 = sphi 0, %s87
    %s104 = sphi 0, %s88
  $region4: #{unet_up_forward.1} parent=0 // loop_header_branch
    %11 = sbr.rel (%p9) target = $region8
  $region5: #{unet_up_forward.1} parent=0 // loop_body
    %s13 = ssub.s32 %s8, 1
    %s14 = ssub.s32 %s8, 2
    %s21 = sadd.s32 1, %s16
    %p22 = scmp.ge.s32.totalorder %s21, 1
    %s23 = scalar_select %p22, 0, %s21
    %s24 = sadd.s32 1, %s15
    %s25 = scalar_select %p22, %s24, %s15
    %p26 = scmp.ge.s32.totalorder %s25, 2
    %s27 = scalar_select %p26, 0, %s25
    %s28 = ssub.s32 %s15, %s27
    %p29 = scmp.eq.s32.totalorder %s28, 0
    %s31 = sadd.s32 %s30, 1
    %s32 = scalar_select %p29, %s30, %s31
    %p35 = pneg %p29
    %p36 = scmp.eq.s32.totalorder %s8, 1
    %p37 = por %p35, %p36
    %p38 = scmp.ne.s32.totalorder %s30, %s33
    %p39 = scmp.eq.s32.totalorder %s8, 0
    %p40 = por %p38, %p39
    %p41 = scmp.ne.s32.totalorder %s30, %s33
    %p42 = scmp.eq.s32.totalorder %s13, 1
    %p43 = por %p41, %p42
    %p44 = scmp.ne.s32.totalorder %s33, %s34
    %p45 = scmp.eq.s32.totalorder %s13, 0
    %p46 = por %p44, %p45
    %p47 = scmp.ne.s32.totalorder %s33, %s34
    %p48 = scmp.eq.s32.totalorder %s14, 1
    %p49 = por %p47, %p48
    %p51 = scmp.ne.s32.totalorder %s34, %s50
    %p52 = scmp.eq.s32.totalorder %s14, 0
    %p53 = por %p51, %p52
    %s54 = ssub.s32 %s16, %s23
    %p55 = scmp.eq.s32.totalorder %s54, 0
    %s57 = sadd.s32 %s56, 1
    %s58 = scalar_select %p55, %s56, %s57
    %p61 = pneg %p55
    %p62 = scmp.eq.s32.totalorder %s8, 1
    %p63 = por %p61, %p62
    %p64 = scmp.ne.s32.totalorder %s56, %s59
    %p65 = scmp.eq.s32.totalorder %s8, 0
    %p66 = por %p64, %p65
    %p67 = scmp.ne.s32.totalorder %s56, %s59
    %p68 = scmp.eq.s32.totalorder %s13, 1
    %p69 = por %p67, %p68
    %p70 = scmp.ne.s32.totalorder %s59, %s60
    %p71 = scmp.eq.s32.totalorder %s13, 0
    %p72 = por %p70, %p71
    %p73 = scmp.ne.s32.totalorder %s59, %s60
    %p74 = scmp.eq.s32.totalorder %s14, 1
    %p75 = por %p73, %p74
    %p77 = scmp.ne.s32.totalorder %s60, %s76
    %p78 = scmp.eq.s32.totalorder %s14, 0
    %p79 = por %p77, %p78
    %s80 = ssub.s32 %s15, %s27
    %s81 = ssub.s32 %s16, %s23
    %s82 = sor.u32 %s80, %s81
    %p83 = scmp.eq.s32.totalorder %s82, 0
    %s85 = sadd.s32 %s84, 1
    %s86 = scalar_select %p83, %s84, %s85
    %p89 = pneg %p83
    %p90 = scmp.eq.s32.totalorder %s8, 1
    %p91 = por %p89, %p90
    %p92 = scmp.ne.s32.totalorder %s84, %s87
    %p93 = scmp.eq.s32.totalorder %s8, 0
    %p94 = por %p92, %p93
    %p95 = scmp.ne.s32.totalorder %s84, %s87
    %p96 = scmp.eq.s32.totalorder %s13, 1
    %p97 = por %p95, %p96
    %p98 = scmp.ne.s32.totalorder %s87, %s88
    %p99 = scmp.eq.s32.totalorder %s13, 0
    %p100 = por %p98, %p99
    %p101 = scmp.ne.s32.totalorder %s87, %s88
    %p102 = scmp.eq.s32.totalorder %s14, 1
    %p103 = por %p101, %p102
    %p105 = scmp.ne.s32.totalorder %s88, %s104
    %p106 = scmp.eq.s32.totalorder %s14, 0
    %p107 = por %p105, %p106
    %p108 = scmp.le.s32.totalorder 1, %s8
    %p109 = scmp.lt.s32.totalorder %s8, 3
    %p110 = pnand %p108, %p109
    %p111 = pneg %p110
    // Predicated region
    $region9: #{unet_up_forward.1} parent=5 // pred_check
      _
    $region10: #{unet_up_forward.1} parent=5 // pred_check_branch
      %113 = sbr.rel (%p110) target = $region12
    $region11: #{unet_up_forward.1} parent=5 // pred_region
      %s114 = ssub.s32 %s8, 1
      // Predicated region
      $region13: #{unet_up_forward.1} parent=11 // pred_check
        %p115 = pneg %p72
      $region14: #{unet_up_forward.1} parent=11 // pred_check_branch
        %117 = sbr.rel (%p115) target = $region16
      $region15: #{unet_up_forward.1} parent=11 // pred_region
        %p118 = scmp.lt.s32.totalorder %s18, 0
        %s119 = scalar_select %p118, %s18, 0
        %s120 = smul.addr %s119, 4
        %s121 = scalar_lea.vmem %s1, %s120
      $region16: #{unet_up_forward.1} parent=11 // pred_fallthru
        _
    $region12: #{unet_up_forward.1} parent=5 // pred_fallthru
      _
    %p122 = scmp.lt.s32.totalorder %s8, 2
    // Predicated region
    $region17: #{unet_up_forward.1} parent=5 // pred_check
      %p123 = pneg %p122
    $region18: #{unet_up_forward.1} parent=5 // pred_check_branch
      %125 = sbr.rel (%p123) target = $region20
    $region19: #{unet_up_forward.1} parent=5 // pred_region
      // Predicated region
      $region21: #{unet_up_forward.1} parent=19 // pred_check
        %p126 = pneg %p40
      $region22: #{unet_up_forward.1} parent=19 // pred_check_branch
        %128 = sbr.rel (%p126) target = $region24
      $region23: #{unet_up_forward.1} parent=19 // pred_region
        %p129 = scmp.lt.s32.totalorder %s15, 1
        %s130 = scalar_select %p129, %s15, 1
        %s131 = smul.addr %s130, 20
        %s132 = smul.addr %s131, 4
        %s133 = scalar_lea.vmem %s0, %s132
      $region24: #{unet_up_forward.1} parent=19 // pred_fallthru
        _
    $region20: #{unet_up_forward.1} parent=5 // pred_fallthru
      _
    %p134 = scmp.le.s32.totalorder 1, %s8
    %p135 = scmp.lt.s32.totalorder %s8, 3
    %p136 = pnand %p134, %p135
    %p137 = pneg %p136
    // Predicated region
    $region25: #{unet_up_forward.1} parent=5 // pred_check
      _
    $region26: #{unet_up_forward.1} parent=5 // pred_check_branch
      %139 = sbr.rel (%p136) target = $region28
    $region27: #{unet_up_forward.1} parent=5 // pred_region
      %s140 = ssub.s32 %s8, 1
      %p141 = scmp.lt.s32.totalorder %s17, 1
      %s142 = scalar_select %p141, %s17, 1
      %s143 = smul.addr %s142, 20
      %s144 = smul.addr %s143, 4
      %s145 = scalar_lea.vmem %s0, %s144
      %p146 = pneg %p46
      %p147 = pneg %p43
      %p148 = scmp.lt.s32.totalorder %s18, 0
      %s149 = scalar_select %p148, %s18, 0
      %s150 = smul.addr %s149, 4
      %s151 = scalar_lea.vmem %s1, %s150
      %p152 = pneg %p72
      %p153 = pneg %p69
      %p154 = pneg %p100
      %p155 = pneg %p97
      %p156 = scmp.lt.s32.totalorder %s17, 1
      %s157 = scalar_select %p156, %s17, 1
      %p158 = scmp.lt.s32.totalorder %s18, 0
      %s159 = scalar_select %p158, %s18, 0
      %s160 = smul.addr %s157, 32
      %s161 = sadd.s32 %s159, %s160
      %s162 = smul.addr %s161, 8
      %s163 = scalar_lea.vmem %s2, %s162
      %p164 = scmp.lt.s32.totalorder %s17, 1
      %s165 = scalar_select %p164, %s17, 1
      %s166 = smul.addr %s165, 20
      %s167 = smul.addr %s166, 4
      %s168 = scalar_lea.vmem %s0, %s167
      %p169 = scmp.lt.s32.totalorder %s18, 0
      %s170 = scalar_select %p169, %s18, 0
      %s171 = smul.addr %s170, 4
      %s172 = scalar_lea.vmem %s1, %s171
      %p173 = scmp.lt.s32.totalorder %s17, 1
      %s174 = scalar_select %p173, %s17, 1
      %p175 = scmp.lt.s32.totalorder %s18, 0
      %s176 = scalar_select %p175, %s18, 0
      %s177 = smul.addr %s174, 32
      %s178 = sadd.s32 %s176, %s177
      %s179 = smul.addr %s178, 8
      %s180 = scalar_lea.vmem %s2, %s179
      %v182 = vld [vmem:[%s168] sm:$0xf]
      %v183 = vld [vmem:[%s168 + $0x4] sm:$0x1]
      %v184 = vld [vmem:[%s168 + $0x8] sm:$0xf]
      %v185 = vld [vmem:[%s168 + $0xc] sm:$0x1]
      %v186 = vld [vmem:[%s168 + $0x10] sm:$0xf]
      %v187 = vld [vmem:[%s168 + $0x14] sm:$0x1]
      %v188 = vld [vmem:[%s168 + $0x18] sm:$0xf]
      %v189 = vld [vmem:[%s168 + $0x1c] sm:$0x1]
      %v190 = vld [vmem:[%s168 + $0x20] sm:$0xf]
      %v191 = vld [vmem:[%s168 + $0x24] sm:$0x1]
      %v192 = vld [vmem:[%s168 + $0x28] sm:$0xf]
      %v193 = vld [vmem:[%s168 + $0x2c] sm:$0x1]
      %v194 = vld [vmem:[%s168 + $0x30] sm:$0xf]
      %v195 = vld [vmem:[%s168 + $0x34] sm:$0x1]
      %v196 = vld [vmem:[%s168 + $0x38] sm:$0xf]
      %v197 = vld [vmem:[%s168 + $0x3c] sm:$0x1]
      %v198 = vld [vmem:[%s168 + $0x40] sm:$0xf]
      %v199 = vld [vmem:[%s168 + $0x44] sm:$0x1]
      %v200 = vld [vmem:[%s168 + $0x48] sm:$0xf]
      %v201 = vld [vmem:[%s168 + $0x4c] sm:$0x1]
      %vm202 = vsmask.f32 3328
      %vm203 = vsmask.f32 7440
      %vm204 = vmor %vm202, %vm203
      %v206 = vshrl.u32 %v182, 16
      %v208 = vrot.slane %v206, 4
      %v209 = vshll.u32 %v182, 16
      %v211 = vrot.slane %v209, 5
      %v212 = vor.u32 %v208, %v211
      %v213 = vrot.slane %v212, 4
      %v215 = vshll.u32 %v183, 16
      %v217 = vrot.slane %v215, 5
      %v218 = vsel %vm204, %v213, %v217
      %v220 = vshrl.u32 %v184, 16
      %v222 = vrot.slane %v220, 4
      %v223 = vshll.u32 %v184, 16
      %v225 = vrot.slane %v223, 5
      %v226 = vor.u32 %v222, %v225
      %v227 = vrot.slane %v226, 4
      %v229 = vshll.u32 %v185, 16
      %v231 = vrot.slane %v229, 5
      %v232 = vsel %vm204, %v227, %v231
      %v234 = vshrl.u32 %v186, 16
      %v236 = vrot.slane %v234, 4
      %v237 = vshll.u32 %v186, 16
      %v239 = vrot.slane %v237, 5
      %v240 = vor.u32 %v236, %v239
      %v241 = vrot.slane %v240, 4
      %v243 = vshll.u32 %v187, 16
      %v245 = vrot.slane %v243, 5
      %v246 = vsel %vm204, %v241, %v245
      %v248 = vshrl.u32 %v188, 16
      %v250 = vrot.slane %v248, 4
      %v251 = vshll.u32 %v188, 16
      %v253 = vrot.slane %v251, 5
      %v254 = vor.u32 %v250, %v253
      %v255 = vrot.slane %v254, 4
      %v257 = vshll.u32 %v189, 16
      %v259 = vrot.slane %v257, 5
      %v260 = vsel %vm204, %v255, %v259
      %v262 = vshrl.u32 %v190, 16
      %v264 = vrot.slane %v262, 4
      %v265 = vshll.u32 %v190, 16
      %v267 = vrot.slane %v265, 5
      %v268 = vor.u32 %v264, %v267
      %v269 = vrot.slane %v268, 4
      %v271 = vshll.u32 %v191, 16
      %v273 = vrot.slane %v271, 5
      %v274 = vsel %vm204, %v269, %v273
      %v276 = vshrl.u32 %v192, 16
      %v278 = vrot.slane %v276, 4
      %v279 = vshll.u32 %v192, 16
      %v281 = vrot.slane %v279, 5
      %v282 = vor.u32 %v278, %v281
      %v283 = vrot.slane %v282, 4
      %v285 = vshll.u32 %v193, 16
      %v287 = vrot.slane %v285, 5
      %v288 = vsel %vm204, %v283, %v287
      %v290 = vshrl.u32 %v194, 16
      %v292 = vrot.slane %v290, 4
      %v293 = vshll.u32 %v194, 16
      %v295 = vrot.slane %v293, 5
      %v296 = vor.u32 %v292, %v295
      %v297 = vrot.slane %v296, 4
      %v299 = vshll.u32 %v195, 16
      %v301 = vrot.slane %v299, 5
      %v302 = vsel %vm204, %v297, %v301
      %v304 = vshrl.u32 %v196, 16
      %v306 = vrot.slane %v304, 4
      %v307 = vshll.u32 %v196, 16
      %v309 = vrot.slane %v307, 5
      %v310 = vor.u32 %v306, %v309
      %v311 = vrot.slane %v310, 4
      %v313 = vshll.u32 %v197, 16
      %v315 = vrot.slane %v313, 5
      %v316 = vsel %vm204, %v311, %v315
      %vm333 = vcmask 1042432
      %vm334 = vcmask 1046532
      %vm335 = vmor %vm333, %vm334
      %v336 = vrot.slane %v182, 5
      %v337 = vrot.slane %v336, 4
      %v338 = vrot.slane %v183, 5
      %v339 = vsel %vm335, %v337, %v338
      %v340 = vrot.slane %v184, 5
      %v341 = vrot.slane %v340, 4
      %v342 = vrot.slane %v185, 5
      %v343 = vsel %vm335, %v341, %v342
      %v344 = vrot.slane %v186, 5
      %v345 = vrot.slane %v344, 4
      %v346 = vrot.slane %v187, 5
      %v347 = vsel %vm335, %v345, %v346
      %v348 = vrot.slane %v188, 5
      %v349 = vrot.slane %v348, 4
      %v350 = vrot.slane %v189, 5
      %v351 = vsel %vm335, %v349, %v350
      %v352 = vrot.slane %v190, 5
      %v353 = vrot.slane %v352, 4
      %v354 = vrot.slane %v191, 5
      %v355 = vsel %vm335, %v353, %v354
      %v356 = vrot.slane %v192, 5
      %v357 = vrot.slane %v356, 4
      %v358 = vrot.slane %v193, 5
      %v359 = vsel %vm335, %v357, %v358
      %v360 = vrot.slane %v194, 5
      %v361 = vrot.slane %v360, 4
      %v362 = vrot.slane %v195, 5
      %v363 = vsel %vm335, %v361, %v362
      %v364 = vrot.slane %v196, 5
      %v365 = vrot.slane %v364, 4
      %v366 = vrot.slane %v197, 5
      %v367 = vsel %vm335, %v365, %v366
      %v369 = vshrl.u32 %v198, 16
      %v371 = vrot.slane %v369, 4
      %v372 = vshll.u32 %v198, 16
      %v374 = vrot.slane %v372, 5
      %v375 = vor.u32 %v371, %v374
      %v376 = vrot.slane %v375, 4
      %v378 = vshll.u32 %v199, 16
      %v380 = vrot.slane %v378, 5
      %v381 = vsel %vm204, %v376, %v380
      %v384 = vrot.slane %v198, 5
      %v385 = vrot.slane %v384, 4
      %v386 = vrot.slane %v199, 5
      %v387 = vsel %vm335, %v385, %v386
      %v389 = vshrl.u32 %v200, 16
      %v391 = vrot.slane %v389, 4
      %v392 = vshll.u32 %v200, 16
      %v394 = vrot.slane %v392, 5
      %v395 = vor.u32 %v391, %v394
      %v396 = vrot.slane %v395, 4
      %v398 = vshll.u32 %v201, 16
      %v400 = vrot.slane %v398, 5
      %v401 = vsel %vm204, %v396, %v400
      %v404 = vrot.slane %v200, 5
      %v405 = vrot.slane %v404, 4
      %v406 = vrot.slane %v201, 5
      %v407 = vsel %vm335, %v405, %v406
      %v408 = vld [vmem:[%s172] sm:$0xf]
      %v409 = vld [vmem:[%s172 + $0x4] sm:$0xf]
      %v410 = vld [vmem:[%s172 + $0x8] sm:$0xf]
      %v411 = vld [vmem:[%s172 + $0xc] sm:$0xf]
      %v412 = vld [vmem:[%s172 + $0x10] sm:$0xf]
      %v413 = vld [vmem:[%s172 + $0x14] sm:$0xf]
      %v414 = vld [vmem:[%s172 + $0x18] sm:$0xf]
      %v415 = vld [vmem:[%s172 + $0x1c] sm:$0xf]
      %v416 = vld [vmem:[%s172 + $0x20] sm:$0xf]
      %v417 = vld [vmem:[%s172 + $0x24] sm:$0xf]
      %v418 = vld [vmem:[%s172 + $0x28] sm:$0xf]
      %v419 = vld [vmem:[%s172 + $0x2c] sm:$0xf]
      %v420 = vld [vmem:[%s172 + $0x30] sm:$0xf]
      %v421 = vld [vmem:[%s172 + $0x34] sm:$0xf]
      %v422 = vld [vmem:[%s172 + $0x38] sm:$0xf]
      %v423 = vld [vmem:[%s172 + $0x3c] sm:$0xf]
      %s424 = scalar_lea.vmem %s172, 64
      %v425 = vld [vmem:[%s424] sm:$0xf]
      %v426 = vld [vmem:[%s424 + $0x4] sm:$0xf]
      %v427 = vld [vmem:[%s424 + $0x8] sm:$0xf]
      %v428 = vld [vmem:[%s424 + $0xc] sm:$0xf]
      %v429 = vld [vmem:[%s424 + $0x10] sm:$0xf]
      %v430 = vld [vmem:[%s424 + $0x14] sm:$0xf]
      %v431 = vld [vmem:[%s424 + $0x18] sm:$0xf]
      %v432 = vld [vmem:[%s424 + $0x1c] sm:$0xf]
      %v433 = vld [vmem:[%s424 + $0x20] sm:$0xf]
      %v434 = vld [vmem:[%s424 + $0x24] sm:$0xf]
      %v435 = vld [vmem:[%s424 + $0x28] sm:$0xf]
      %v436 = vld [vmem:[%s424 + $0x2c] sm:$0xf]
      %v437 = vld [vmem:[%s424 + $0x30] sm:$0xf]
      %v438 = vld [vmem:[%s424 + $0x34] sm:$0xf]
      %v439 = vld [vmem:[%s424 + $0x38] sm:$0xf]
      %v440 = vld [vmem:[%s424 + $0x3c] sm:$0xf]
      %v441 = vunpack.c.l.b16 %v218
      %v442 = vunpack.c.l.b16 %v232
      %v443 = vunpack.c.l.b16 %v246
      %v444 = vunpack.c.l.b16 %v260
      %v445 = vunpack.c.l.b16 %v274
      %v446 = vunpack.c.l.b16 %v288
      %v447 = vunpack.c.l.b16 %v302
      %v448 = vunpack.c.l.b16 %v316
      %v449 = vpack.c.b16 %v442, %v441
      %v450 = vpack.c.b16 %v444, %v443
      %v451 = vpack.c.b16 %v446, %v445
      %v452 = vpack.c.b16 %v448, %v447
      %v473 = vunpack.c.l.b16 %v425
      %v474 = vunpack.c.l.b16 %v426
      %v475 = vunpack.c.l.b16 %v427
      %v476 = vunpack.c.l.b16 %v428
      %v477 = vunpack.c.l.b16 %v429
      %v478 = vunpack.c.l.b16 %v430
      %v479 = vunpack.c.l.b16 %v431
      %v480 = vunpack.c.l.b16 %v432
      %v481 = vunpack.c.l.b16 %v433
      %v482 = vunpack.c.l.b16 %v434
      %v483 = vunpack.c.l.b16 %v435
      %v484 = vunpack.c.l.b16 %v436
      %v485 = vunpack.c.l.b16 %v437
      %v486 = vunpack.c.l.b16 %v438
      %v487 = vunpack.c.l.b16 %v439
      %v488 = vunpack.c.l.b16 %v440
      %v489 = vpack.c.b16 %v474, %v473
      %v490 = vpack.c.b16 %v476, %v475
      %v491 = vpack.c.b16 %v478, %v477
      %v492 = vpack.c.b16 %v480, %v479
      %v493 = vpack.c.b16 %v482, %v481
      %v494 = vpack.c.b16 %v484, %v483
      %v495 = vpack.c.b16 %v486, %v485
      %v496 = vpack.c.b16 %v488, %v487
      %505 = vmatprep.subr.bf16.mxu0 0
      %506 = vmatpush1.bf16.msra.mxu0 %v496
      %507 = vmatprep.subr.bf16.mxu0 0
      %508 = vmatpush1.bf16.msra.mxu0 %v495
      %509 = vmatprep.subr.bf16.mxu0 0
      %510 = vmatpush1.bf16.msra.mxu0 %v494
      %511 = vmatprep.subr.bf16.mxu0 0
      %512 = vmatpush1.bf16.msra.mxu0 %v493
      %513 = vmatprep.subr.bf16.mxu0 0
      %514 = vmatpush1.bf16.msra.mxu0 %v492
      %515 = vmatprep.subr.bf16.mxu0 0
      %516 = vmatpush1.bf16.msra.mxu0 %v491
      %517 = vmatprep.subr.bf16.mxu0 0
      %518 = vmatpush1.bf16.msra.mxu0 %v490
      %519 = vmatprep.subr.bf16.mxu0 0
      %520 = vmatpush1.bf16.msra.mxu0 %v489
      %521 = vmatprep.subr.bf16.mxu0 0
      %522 = vmatpush2.bf16.msra.mxu0 0
      %523 = vmatprep.subr.bf16.mxu0 0
      %524 = vmatpush2.bf16.msra.mxu0 0
      %525 = vmatprep.subr.bf16.mxu0 0
      %526 = vmatpush2.bf16.msra.mxu0 0
      %527 = vmatprep.subr.bf16.mxu0 0
      %528 = vmatpush2.bf16.msra.mxu0 0
      %529 = vmatprep.subr.bf16.mxu0 0
      %530 = vmatpush2.bf16.msra.mxu0 0
      %531 = vmatprep.subr.bf16.mxu0 0
      %532 = vmatpush2.bf16.msra.mxu0 0
      %533 = vmatprep.subr.bf16.mxu0 0
      %534 = vmatpush2.bf16.msra.mxu0 0
      %535 = vmatprep.subr.bf16.mxu0 0
      %536 = vmatpush2.bf16.msra.mxu0 0
      %537 = vmatprep.mubr.bf16.mxu0 0
      %538 = vmatmul.mubr.bf16.gmra.mxu0 %v449
      %v539 = vpop.f32.mrf.mxu0
      %v540 = vadd.f32 0.0, %v539
      %v541 = vpop.f32.mrf.mxu0
      %v542 = vpop.f32.mrf.mxu0
      %v543 = vadd.f32 0.0, %v542
      %v544 = vpop.f32.mrf.mxu0
      %545 = vmatprep.mubr.bf16.mxu0 0
      %546 = vmatmul.mubr.bf16.gmra.mxu0 %v450
      %v547 = vpop.f32.mrf.mxu0
      %v548 = vadd.f32 0.0, %v547
      %v549 = vpop.f32.mrf.mxu0
      %v550 = vpop.f32.mrf.mxu0
      %v551 = vadd.f32 0.0, %v550
      %v552 = vpop.f32.mrf.mxu0
      %553 = vmatprep.mubr.bf16.mxu0 0
      %554 = vmatmul.mubr.bf16.gmra.mxu0 %v451
      %v555 = vpop.f32.mrf.mxu0
      %v556 = vadd.f32 0.0, %v555
      %v557 = vpop.f32.mrf.mxu0
      %v558 = vpop.f32.mrf.mxu0
      %v559 = vadd.f32 0.0, %v558
      %v560 = vpop.f32.mrf.mxu0
      %561 = vmatprep.mubr.bf16.mxu0 0
      %562 = vmatmul.mubr.bf16.gmra.mxu0 %v452
      %v563 = vpop.f32.mrf.mxu0
      %v564 = vadd.f32 0.0, %v563
      %v565 = vpop.f32.mrf.mxu0
      %v566 = vpop.f32.mrf.mxu0
      %v567 = vadd.f32 0.0, %v566
      %v568 = vpop.f32.mrf.mxu0
      %569 = vdwg.mxu0
      %v570 = vunpack.c.l.b16 %v182
      %v571 = vunpack.c.l.b16 %v184
      %v572 = vunpack.c.l.b16 %v186
      %v573 = vunpack.c.l.b16 %v188
      %v574 = vunpack.c.l.b16 %v190
      %v575 = vunpack.c.l.b16 %v192
      %v576 = vunpack.c.l.b16 %v194
      %v577 = vunpack.c.l.b16 %v196
      %v578 = vpack.c.b16 %v571, %v570
      %v579 = vpack.c.b16 %v573, %v572
      %v580 = vpack.c.b16 %v575, %v574
      %v581 = vpack.c.b16 %v577, %v576
      %v602 = vunpack.c.l.b16 %v408
      %v603 = vunpack.c.l.b16 %v409
      %v604 = vunpack.c.l.b16 %v410
      %v605 = vunpack.c.l.b16 %v411
      %v606 = vunpack.c.l.b16 %v412
      %v607 = vunpack.c.l.b16 %v413
      %v608 = vunpack.c.l.b16 %v414
      %v609 = vunpack.c.l.b16 %v415
      %v610 = vunpack.c.l.b16 %v416
      %v611 = vunpack.c.l.b16 %v417
      %v612 = vunpack.c.l.b16 %v418
      %v613 = vunpack.c.l.b16 %v419
      %v614 = vunpack.c.l.b16 %v420
      %v615 = vunpack.c.l.b16 %v421
      %v616 = vunpack.c.l.b16 %v422
      %v617 = vunpack.c.l.b16 %v423
      %v618 = vpack.c.b16 %v603, %v602
      %v619 = vpack.c.b16 %v605, %v604
      %v620 = vpack.c.b16 %v607, %v606
      %v621 = vpack.c.b16 %v609, %v608
      %v622 = vpack.c.b16 %v611, %v610
      %v623 = vpack.c.b16 %v613, %v612
      %v624 = vpack.c.b16 %v615, %v614
      %v625 = vpack.c.b16 %v617, %v616
      %634 = vmatprep.subr.bf16.mxu0 0
      %635 = vmatpush1.bf16.msra.mxu0 %v625
      %636 = vmatprep.subr.bf16.mxu0 0
      %637 = vmatpush1.bf16.msra.mxu0 %v624
      %638 = vmatprep.subr.bf16.mxu0 0
      %639 = vmatpush1.bf16.msra.mxu0 %v623
      %640 = vmatprep.subr.bf16.mxu0 0
      %641 = vmatpush1.bf16.msra.mxu0 %v622
      %642 = vmatprep.subr.bf16.mxu0 0
      %643 = vmatpush1.bf16.msra.mxu0 %v621
      %644 = vmatprep.subr.bf16.mxu0 0
      %645 = vmatpush1.bf16.msra.mxu0 %v620
      %646 = vmatprep.subr.bf16.mxu0 0
      %647 = vmatpush1.bf16.msra.mxu0 %v619
      %648 = vmatprep.subr.bf16.mxu0 0
      %649 = vmatpush1.bf16.msra.mxu0 %v618
      %650 = vmatprep.subr.bf16.mxu0 0
      %651 = vmatpush2.bf16.msra.mxu0 0
      %652 = vmatprep.subr.bf16.mxu0 0
      %653 = vmatpush2.bf16.msra.mxu0 0
      %654 = vmatprep.subr.bf16.mxu0 0
      %655 = vmatpush2.bf16.msra.mxu0 0
      %656 = vmatprep.subr.bf16.mxu0 0
      %657 = vmatpush2.bf16.msra.mxu0 0
      %658 = vmatprep.subr.bf16.mxu0 0
      %659 = vmatpush2.bf16.msra.mxu0 0
      %660 = vmatprep.subr.bf16.mxu0 0
      %661 = vmatpush2.bf16.msra.mxu0 0
      %662 = vmatprep.subr.bf16.mxu0 0
      %663 = vmatpush2.bf16.msra.mxu0 0
      %664 = vmatprep.subr.bf16.mxu0 0
      %665 = vmatpush2.bf16.msra.mxu0 0
      %666 = vmatprep.mubr.bf16.mxu0 0
      %667 = vmatmul.mubr.bf16.gmra.mxu0 %v578
      %v668 = vpop.f32.mrf.mxu0
      %v669 = vadd.f32 %v540, %v668
      %v670 = vpop.f32.mrf.mxu0
      %v671 = vpop.f32.mrf.mxu0
      %v672 = vadd.f32 %v543, %v671
      %v673 = vpop.f32.mrf.mxu0
      %674 = vmatprep.mubr.bf16.mxu0 0
      %675 = vmatmul.mubr.bf16.gmra.mxu0 %v579
      %v676 = vpop.f32.mrf.mxu0
      %v677 = vadd.f32 %v548, %v676
      %v678 = vpop.f32.mrf.mxu0
      %v679 = vpop.f32.mrf.mxu0
      %v680 = vadd.f32 %v551, %v679
      %v681 = vpop.f32.mrf.mxu0
      %682 = vmatprep.mubr.bf16.mxu0 0
      %683 = vmatmul.mubr.bf16.gmra.mxu0 %v580
      %v684 = vpop.f32.mrf.mxu0
      %v685 = vadd.f32 %v556, %v684
      %v686 = vpop.f32.mrf.mxu0
      %v687 = vpop.f32.mrf.mxu0
      %v688 = vadd.f32 %v559, %v687
      %v689 = vpop.f32.mrf.mxu0
      %690 = vmatprep.mubr.bf16.mxu0 0
      %691 = vmatmul.mubr.bf16.gmra.mxu0 %v581
      %v692 = vpop.f32.mrf.mxu0
      %v693 = vadd.f32 %v564, %v692
      %v694 = vpop.f32.mrf.mxu0
      %v695 = vpop.f32.mrf.mxu0
      %v696 = vadd.f32 %v567, %v695
      %v697 = vpop.f32.mrf.mxu0
      %698 = vdwg.mxu0
      %s699 = scalar_lea.vmem %s172, 128
      %v700 = vld [vmem:[%s699] sm:$0xf]
      %v701 = vld [vmem:[%s699 + $0x4] sm:$0xf]
      %v702 = vld [vmem:[%s699 + $0x8] sm:$0xf]
      %v703 = vld [vmem:[%s699 + $0xc] sm:$0xf]
      %v704 = vld [vmem:[%s699 + $0x10] sm:$0xf]
      %v705 = vld [vmem:[%s699 + $0x14] sm:$0xf]
      %v706 = vld [vmem:[%s699 + $0x18] sm:$0xf]
      %v707 = vld [vmem:[%s699 + $0x1c] sm:$0xf]
      %v708 = vld [vmem:[%s699 + $0x20] sm:$0xf]
      %v709 = vld [vmem:[%s699 + $0x24] sm:$0xf]
      %v710 = vld [vmem:[%s699 + $0x28] sm:$0xf]
      %v711 = vld [vmem:[%s699 + $0x2c] sm:$0xf]
      %v712 = vld [vmem:[%s699 + $0x30] sm:$0xf]
      %v713 = vld [vmem:[%s699 + $0x34] sm:$0xf]
      %v714 = vld [vmem:[%s699 + $0x38] sm:$0xf]
      %v715 = vld [vmem:[%s699 + $0x3c] sm:$0xf]
      %v716 = vunpack.c.l.b16 %v198
      %v717 = vpack.c.b16 %v572, %v571
      %v718 = vpack.c.b16 %v574, %v573
      %v719 = vpack.c.b16 %v576, %v575
      %v720 = vpack.c.b16 %v716, %v577
      %v741 = vunpack.c.l.b16 %v700
      %v742 = vunpack.c.l.b16 %v701
      %v743 = vunpack.c.l.b16 %v702
      %v744 = vunpack.c.l.b16 %v703
      %v745 = vunpack.c.l.b16 %v704
      %v746 = vunpack.c.l.b16 %v705
      %v747 = vunpack.c.l.b16 %v706
      %v748 = vunpack.c.l.b16 %v707
      %v749 = vunpack.c.l.b16 %v708
      %v750 = vunpack.c.l.b16 %v709
      %v751 = vunpack.c.l.b16 %v710
      %v752 = vunpack.c.l.b16 %v711
      %v753 = vunpack.c.l.b16 %v712
      %v754 = vunpack.c.l.b16 %v713
      %v755 = vunpack.c.l.b16 %v714
      %v756 = vunpack.c.l.b16 %v715
      %v757 = vpack.c.b16 %v742, %v741
      %v758 = vpack.c.b16 %v744, %v743
      %v759 = vpack.c.b16 %v746, %v745
      %v760 = vpack.c.b16 %v748, %v747
      %v761 = vpack.c.b16 %v750, %v749
      %v762 = vpack.c.b16 %v752, %v751
      %v763 = vpack.c.b16 %v754, %v753
      %v764 = vpack.c.b16 %v756, %v755
      %773 = vmatprep.subr.bf16.mxu0 0
      %774 = vmatpush1.bf16.msra.mxu0 %v764
      %775 = vmatprep.subr.bf16.mxu0 0
      %776 = vmatpush1.bf16.msra.mxu0 %v763
      %777 = vmatprep.subr.bf16.mxu0 0
      %778 = vmatpush1.bf16.msra.mxu0 %v762
      %779 = vmatprep.subr.bf16.mxu0 0
      %780 = vmatpush1.bf16.msra.mxu0 %v761
      %781 = vmatprep.subr.bf16.mxu0 0
      %782 = vmatpush1.bf16.msra.mxu0 %v760
      %783 = vmatprep.subr.bf16.mxu0 0
      %784 = vmatpush1.bf16.msra.mxu0 %v759
      %785 = vmatprep.subr.bf16.mxu0 0
      %786 = vmatpush1.bf16.msra.mxu0 %v758
      %787 = vmatprep.subr.bf16.mxu0 0
      %788 = vmatpush1.bf16.msra.mxu0 %v757
      %789 = vmatprep.subr.bf16.mxu0 0
      %790 = vmatpush2.bf16.msra.mxu0 0
      %791 = vmatprep.subr.bf16.mxu0 0
      %792 = vmatpush2.bf16.msra.mxu0 0
      %793 = vmatprep.subr.bf16.mxu0 0
      %794 = vmatpush2.bf16.msra.mxu0 0
      %795 = vmatprep.subr.bf16.mxu0 0
      %796 = vmatpush2.bf16.msra.mxu0 0
      %797 = vmatprep.subr.bf16.mxu0 0
      %798 = vmatpush2.bf16.msra.mxu0 0
      %799 = vmatprep.subr.bf16.mxu0 0
      %800 = vmatpush2.bf16.msra.mxu0 0
      %801 = vmatprep.subr.bf16.mxu0 0
      %802 = vmatpush2.bf16.msra.mxu0 0
      %803 = vmatprep.subr.bf16.mxu0 0
      %804 = vmatpush2.bf16.msra.mxu0 0
      %805 = vmatprep.mubr.bf16.mxu0 0
      %806 = vmatmul.mubr.bf16.gmra.mxu0 %v717
      %v807 = vpop.f32.mrf.mxu0
      %v808 = vadd.f32 0.0, %v807
      %v809 = vpop.f32.mrf.mxu0
      %v810 = vpop.f32.mrf.mxu0
      %v811 = vadd.f32 0.0, %v810
      %v812 = vpop.f32.mrf.mxu0
      %813 = vmatprep.mubr.bf16.mxu0 0
      %814 = vmatmul.mubr.bf16.gmra.mxu0 %v718
      %v815 = vpop.f32.mrf.mxu0
      %v816 = vadd.f32 0.0, %v815
      %v817 = vpop.f32.mrf.mxu0
      %v818 = vpop.f32.mrf.mxu0
      %v819 = vadd.f32 0.0, %v818
      %v820 = vpop.f32.mrf.mxu0
      %821 = vmatprep.mubr.bf16.mxu0 0
      %822 = vmatmul.mubr.bf16.gmra.mxu0 %v719
      %v823 = vpop.f32.mrf.mxu0
      %v824 = vadd.f32 0.0, %v823
      %v825 = vpop.f32.mrf.mxu0
      %v826 = vpop.f32.mrf.mxu0
      %v827 = vadd.f32 0.0, %v826
      %v828 = vpop.f32.mrf.mxu0
      %829 = vmatprep.mubr.bf16.mxu0 0
      %830 = vmatmul.mubr.bf16.gmra.mxu0 %v720
      %v831 = vpop.f32.mrf.mxu0
      %v832 = vadd.f32 0.0, %v831
      %v833 = vpop.f32.mrf.mxu0
      %v834 = vpop.f32.mrf.mxu0
      %v835 = vadd.f32 0.0, %v834
      %v836 = vpop.f32.mrf.mxu0
      %837 = vdwg.mxu0
      %v838 = vadd.f32 %v669, %v808
      %v839 = vadd.f32 %v672, %v811
      %v840 = vadd.f32 %v677, %v816
      %v841 = vadd.f32 %v680, %v819
      %v842 = vadd.f32 %v685, %v824
      %v843 = vadd.f32 %v688, %v827
      %v844 = vadd.f32 %v693, %v832
      %v845 = vadd.f32 %v696, %v835
      %s846 = scalar_lea.vmem %s172, 192
      %v847 = vld [vmem:[%s846] sm:$0xf]
      %v848 = vld [vmem:[%s846 + $0x4] sm:$0xf]
      %v849 = vld [vmem:[%s846 + $0x8] sm:$0xf]
      %v850 = vld [vmem:[%s846 + $0xc] sm:$0xf]
      %v851 = vld [vmem:[%s846 + $0x10] sm:$0xf]
      %v852 = vld [vmem:[%s846 + $0x14] sm:$0xf]
      %v853 = vld [vmem:[%s846 + $0x18] sm:$0xf]
      %v854 = vld [vmem:[%s846 + $0x1c] sm:$0xf]
      %v855 = vld [vmem:[%s846 + $0x20] sm:$0xf]
      %v856 = vld [vmem:[%s846 + $0x24] sm:$0xf]
      %v857 = vld [vmem:[%s846 + $0x28] sm:$0xf]
      %v858 = vld [vmem:[%s846 + $0x2c] sm:$0xf]
      %v859 = vld [vmem:[%s846 + $0x30] sm:$0xf]
      %v860 = vld [vmem:[%s846 + $0x34] sm:$0xf]
      %v861 = vld [vmem:[%s846 + $0x38] sm:$0xf]
      %v862 = vld [vmem:[%s846 + $0x3c] sm:$0xf]
      %v863 = vunpack.c.l.b16 %v381
      %v864 = vpack.c.b16 %v443, %v442
      %v865 = vpack.c.b16 %v445, %v444
      %v866 = vpack.c.b16 %v447, %v446
      %v867 = vpack.c.b16 %v863, %v448
      %v888 = vunpack.c.l.b16 %v847
      %v889 = vunpack.c.l.b16 %v848
      %v890 = vunpack.c.l.b16 %v849
      %v891 = vunpack.c.l.b16 %v850
      %v892 = vunpack.c.l.b16 %v851
      %v893 = vunpack.c.l.b16 %v852
      %v894 = vunpack.c.l.b16 %v853
      %v895 = vunpack.c.l.b16 %v854
      %v896 = vunpack.c.l.b16 %v855
      %v897 = vunpack.c.l.b16 %v856
      %v898 = vunpack.c.l.b16 %v857
      %v899 = vunpack.c.l.b16 %v858
      %v900 = vunpack.c.l.b16 %v859
      %v901 = vunpack.c.l.b16 %v860
      %v902 = vunpack.c.l.b16 %v861
      %v903 = vunpack.c.l.b16 %v862
      %v904 = vpack.c.b16 %v889, %v888
      %v905 = vpack.c.b16 %v891, %v890
      %v906 = vpack.c.b16 %v893, %v892
      %v907 = vpack.c.b16 %v895, %v894
      %v908 = vpack.c.b16 %v897, %v896
      %v909 = vpack.c.b16 %v899, %v898
      %v910 = vpack.c.b16 %v901, %v900
      %v911 = vpack.c.b16 %v903, %v902
      %920 = vmatprep.subr.bf16.mxu0 0
      %921 = vmatpush1.bf16.msra.mxu0 %v911
      %922 = vmatprep.subr.bf16.mxu0 0
      %923 = vmatpush1.bf16.msra.mxu0 %v910
      %924 = vmatprep.subr.bf16.mxu0 0
      %925 = vmatpush1.bf16.msra.mxu0 %v909
      %926 = vmatprep.subr.bf16.mxu0 0
      %927 = vmatpush1.bf16.msra.mxu0 %v908
      %928 = vmatprep.subr.bf16.mxu0 0
      %929 = vmatpush1.bf16.msra.mxu0 %v907
      %930 = vmatprep.subr.bf16.mxu0 0
      %931 = vmatpush1.bf16.msra.mxu0 %v906
      %932 = vmatprep.subr.bf16.mxu0 0
      %933 = vmatpush1.bf16.msra.mxu0 %v905
      %934 = vmatprep.subr.bf16.mxu0 0
      %935 = vmatpush1.bf16.msra.mxu0 %v904
      %936 = vmatprep.subr.bf16.mxu0 0
      %937 = vmatpush2.bf16.msra.mxu0 0
      %938 = vmatprep.subr.bf16.mxu0 0
      %939 = vmatpush2.bf16.msra.mxu0 0
      %940 = vmatprep.subr.bf16.mxu0 0
      %941 = vmatpush2.bf16.msra.mxu0 0
      %942 = vmatprep.subr.bf16.mxu0 0
      %943 = vmatpush2.bf16.msra.mxu0 0
      %944 = vmatprep.subr.bf16.mxu0 0
      %945 = vmatpush2.bf16.msra.mxu0 0
      %946 = vmatprep.subr.bf16.mxu0 0
      %947 = vmatpush2.bf16.msra.mxu0 0
      %948 = vmatprep.subr.bf16.mxu0 0
      %949 = vmatpush2.bf16.msra.mxu0 0
      %950 = vmatprep.subr.bf16.mxu0 0
      %951 = vmatpush2.bf16.msra.mxu0 0
      %952 = vmatprep.mubr.bf16.mxu0 0
      %953 = vmatmul.mubr.bf16.gmra.mxu0 %v864
      %v954 = vpop.f32.mrf.mxu0
      %v955 = vadd.f32 0.0, %v954
      %v956 = vpop.f32.mrf.mxu0
      %v957 = vpop.f32.mrf.mxu0
      %v958 = vadd.f32 0.0, %v957
      %v959 = vpop.f32.mrf.mxu0
      %960 = vmatprep.mubr.bf16.mxu0 0
      %961 = vmatmul.mubr.bf16.gmra.mxu0 %v865
      %v962 = vpop.f32.mrf.mxu0
      %v963 = vadd.f32 0.0, %v962
      %v964 = vpop.f32.mrf.mxu0
      %v965 = vpop.f32.mrf.mxu0
      %v966 = vadd.f32 0.0, %v965
      %v967 = vpop.f32.mrf.mxu0
      %968 = vmatprep.mubr.bf16.mxu0 0
      %969 = vmatmul.mubr.bf16.gmra.mxu0 %v866
      %v970 = vpop.f32.mrf.mxu0
      %v971 = vadd.f32 0.0, %v970
      %v972 = vpop.f32.mrf.mxu0
      %v973 = vpop.f32.mrf.mxu0
      %v974 = vadd.f32 0.0, %v973
      %v975 = vpop.f32.mrf.mxu0
      %976 = vmatprep.mubr.bf16.mxu0 0
      %977 = vmatmul.mubr.bf16.gmra.mxu0 %v867
      %v978 = vpop.f32.mrf.mxu0
      %v979 = vadd.f32 0.0, %v978
      %v980 = vpop.f32.mrf.mxu0
      %v981 = vpop.f32.mrf.mxu0
      %v982 = vadd.f32 0.0, %v981
      %v983 = vpop.f32.mrf.mxu0
      %984 = vdwg.mxu0
      %v985 = vadd.f32 %v838, %v955
      %v986 = vadd.f32 %v839, %v958
      %v987 = vadd.f32 %v840, %v963
      %v988 = vadd.f32 %v841, %v966
      %v989 = vadd.f32 %v842, %v971
      %v990 = vadd.f32 %v843, %v974
      %v991 = vadd.f32 %v844, %v979
      %v992 = vadd.f32 %v845, %v982
      %993 = vst [vmem:[#allocation2] sm:$0xff] %v985
      %994 = vst [vmem:[#allocation2 + $0x8] sm:$0xff] %v986
      %995 = vst [vmem:[#allocation2 + $0x10] sm:$0xff] %v987
      %996 = vst [vmem:[#allocation2 + $0x18] sm:$0xff] %v988
      %997 = vst [vmem:[#allocation2 + $0x20] sm:$0xff] %v989
      %998 = vst [vmem:[#allocation2 + $0x28] sm:$0xff] %v990
      %999 = vst [vmem:[#allocation2 + $0x30] sm:$0xff] %v991
      %1000 = vst [vmem:[#allocation2 + $0x38] sm:$0xff] %v992
      %v1001 = vadd.f32 %v985, %v986
      %v1002 = vadd.f32 %v1001, %v987
      %v1003 = vadd.f32 %v1002, %v988
      %v1004 = vadd.f32 %v1003, %v989
      %v1005 = vadd.f32 %v1004, %v990
      %v1006 = vadd.f32 %v1005, %v991
      %v1007 = vadd.f32 %v1006, %v992
      %v1008 = vrot.slane %v1007, 4
      %v1009 = vadd.f32 %v1007, %v1008
      %v1010 = vrot.slane %v1009, 2
      %v1011 = vadd.f32 %v1009, %v1010
      %v1012 = vrot.slane %v1011, 1
      %v1013 = vadd.f32 %v1011, %v1012
      %v1014 = vadd.f32 %v1013, 0.0
      %v1015 = vmul.f32 %v985, %v985
      %v1016 = vmul.f32 %v986, %v986
      %v1017 = vmul.f32 %v987, %v987
      %v1018 = vmul.f32 %v988, %v988
      %v1019 = vmul.f32 %v989, %v989
      %v1020 = vmul.f32 %v990, %v990
      %v1021 = vmul.f32 %v991, %v991
      %v1022 = vmul.f32 %v992, %v992
      %v1023 = vadd.f32 %v1015, %v1016
      %v1024 = vadd.f32 %v1023, %v1017
      %v1025 = vadd.f32 %v1024, %v1018
      %v1026 = vadd.f32 %v1025, %v1019
      %v1027 = vadd.f32 %v1026, %v1020
      %v1028 = vadd.f32 %v1027, %v1021
      %v1029 = vadd.f32 %v1028, %v1022
      %v1030 = vrot.slane %v1029, 4
      %v1031 = vadd.f32 %v1029, %v1030
      %v1032 = vrot.slane %v1031, 2
      %v1033 = vadd.f32 %v1031, %v1032
      %v1034 = vrot.slane %v1033, 1
      %v1035 = vadd.f32 %v1033, %v1034
      %v1036 = vadd.f32 %v1035, 0.0
      %s1037 = scalar_lea.vmem %s172, 256
      %v1038 = vld [vmem:[%s1037] sm:$0xf]
      %v1039 = vld [vmem:[%s1037 + $0x4] sm:$0xf]
      %v1040 = vld [vmem:[%s1037 + $0x8] sm:$0xf]
      %v1041 = vld [vmem:[%s1037 + $0xc] sm:$0xf]
      %v1042 = vld [vmem:[%s1037 + $0x10] sm:$0xf]
      %v1043 = vld [vmem:[%s1037 + $0x14] sm:$0xf]
      %v1044 = vld [vmem:[%s1037 + $0x18] sm:$0xf]
      %v1045 = vld [vmem:[%s1037 + $0x1c] sm:$0xf]
      %v1046 = vld [vmem:[%s1037 + $0x20] sm:$0xf]
      %v1047 = vld [vmem:[%s1037 + $0x24] sm:$0xf]
      %v1048 = vld [vmem:[%s1037 + $0x28] sm:$0xf]
      %v1049 = vld [vmem:[%s1037 + $0x2c] sm:$0xf]
      %v1050 = vld [vmem:[%s1037 + $0x30] sm:$0xf]
      %v1051 = vld [vmem:[%s1037 + $0x34] sm:$0xf]
      %v1052 = vld [vmem:[%s1037 + $0x38] sm:$0xf]
      %v1053 = vld [vmem:[%s1037 + $0x3c] sm:$0xf]
      %s1054 = scalar_lea.vmem %s172, 320
      %v1055 = vld [vmem:[%s1054] sm:$0xf]
      %v1056 = vld [vmem:[%s1054 + $0x4] sm:$0xf]
      %v1057 = vld [vmem:[%s1054 + $0x8] sm:$0xf]
      %v1058 = vld [vmem:[%s1054 + $0xc] sm:$0xf]
      %v1059 = vld [vmem:[%s1054 + $0x10] sm:$0xf]
      %v1060 = vld [vmem:[%s1054 + $0x14] sm:$0xf]
      %v1061 = vld [vmem:[%s1054 + $0x18] sm:$0xf]
      %v1062 = vld [vmem:[%s1054 + $0x1c] sm:$0xf]
      %v1063 = vld [vmem:[%s1054 + $0x20] sm:$0xf]
      %v1064 = vld [vmem:[%s1054 + $0x24] sm:$0xf]
      %v1065 = vld [vmem:[%s1054 + $0x28] sm:$0xf]
      %v1066 = vld [vmem:[%s1054 + $0x2c] sm:$0xf]
      %v1067 = vld [vmem:[%s1054 + $0x30] sm:$0xf]
      %v1068 = vld [vmem:[%s1054 + $0x34] sm:$0xf]
      %v1069 = vld [vmem:[%s1054 + $0x38] sm:$0xf]
      %v1070 = vld [vmem:[%s1054 + $0x3c] sm:$0xf]
      %v1071 = vunpack.c.l.b16 %v339
      %v1072 = vunpack.c.l.b16 %v343
      %v1073 = vunpack.c.l.b16 %v347
      %v1074 = vunpack.c.l.b16 %v351
      %v1075 = vunpack.c.l.b16 %v355
      %v1076 = vunpack.c.l.b16 %v359
      %v1077 = vunpack.c.l.b16 %v363
      %v1078 = vunpack.c.l.b16 %v367
      %v1079 = vpack.c.b16 %v1072, %v1071
      %v1080 = vpack.c.b16 %v1074, %v1073
      %v1081 = vpack.c.b16 %v1076, %v1075
      %v1082 = vpack.c.b16 %v1078, %v1077
      %v1103 = vunpack.c.l.b16 %v1055
      %v1104 = vunpack.c.l.b16 %v1056
      %v1105 = vunpack.c.l.b16 %v1057
      %v1106 = vunpack.c.l.b16 %v1058
      %v1107 = vunpack.c.l.b16 %v1059
      %v1108 = vunpack.c.l.b16 %v1060
      %v1109 = vunpack.c.l.b16 %v1061
      %v1110 = vunpack.c.l.b16 %v1062
      %v1111 = vunpack.c.l.b16 %v1063
      %v1112 = vunpack.c.l.b16 %v1064
      %v1113 = vunpack.c.l.b16 %v1065
      %v1114 = vunpack.c.l.b16 %v1066
      %v1115 = vunpack.c.l.b16 %v1067
      %v1116 = vunpack.c.l.b16 %v1068
      %v1117 = vunpack.c.l.b16 %v1069
      %v1118 = vunpack.c.l.b16 %v1070
      %v1119 = vpack.c.b16 %v1104, %v1103
      %v1120 = vpack.c.b16 %v1106, %v1105
      %v1121 = vpack.c.b16 %v1108, %v1107
      %v1122 = vpack.c.b16 %v1110, %v1109
      %v1123 = vpack.c.b16 %v1112, %v1111
      %v1124 = vpack.c.b16 %v1114, %v1113
      %v1125 = vpack.c.b16 %v1116, %v1115
      %v1126 = vpack.c.b16 %v1118, %v1117
      %1135 = vmatprep.subr.bf16.mxu0 0
      %1136 = vmatpush1.bf16.msra.mxu0 %v1126
      %1137 = vmatprep.subr.bf16.mxu0 0
      %1138 = vmatpush1.bf16.msra.mxu0 %v1125
      %1139 = vmatprep.subr.bf16.mxu0 0
      %1140 = vmatpush1.bf16.msra.mxu0 %v1124
      %1141 = vmatprep.subr.bf16.mxu0 0
      %1142 = vmatpush1.bf16.msra.mxu0 %v1123
      %1143 = vmatprep.subr.bf16.mxu0 0
      %1144 = vmatpush1.bf16.msra.mxu0 %v1122
      %1145 = vmatprep.subr.bf16.mxu0 0
      %1146 = vmatpush1.bf16.msra.mxu0 %v1121
      %1147 = vmatprep.subr.bf16.mxu0 0
      %1148 = vmatpush1.bf16.msra.mxu0 %v1120
      %1149 = vmatprep.subr.bf16.mxu0 0
      %1150 = vmatpush1.bf16.msra.mxu0 %v1119
      %1151 = vmatprep.subr.bf16.mxu0 0
      %1152 = vmatpush2.bf16.msra.mxu0 0
      %1153 = vmatprep.subr.bf16.mxu0 0
      %1154 = vmatpush2.bf16.msra.mxu0 0
      %1155 = vmatprep.subr.bf16.mxu0 0
      %1156 = vmatpush2.bf16.msra.mxu0 0
      %1157 = vmatprep.subr.bf16.mxu0 0
      %1158 = vmatpush2.bf16.msra.mxu0 0
      %1159 = vmatprep.subr.bf16.mxu0 0
      %1160 = vmatpush2.bf16.msra.mxu0 0
      %1161 = vmatprep.subr.bf16.mxu0 0
      %1162 = vmatpush2.bf16.msra.mxu0 0
      %1163 = vmatprep.subr.bf16.mxu0 0
      %1164 = vmatpush2.bf16.msra.mxu0 0
      %1165 = vmatprep.subr.bf16.mxu0 0
      %1166 = vmatpush2.bf16.msra.mxu0 0
      %1167 = vmatprep.mubr.bf16.mxu0 0
      %1168 = vmatmul.mubr.bf16.gmra.mxu0 %v1079
      %v1169 = vpop.f32.mrf.mxu0
      %v1170 = vadd.f32 0.0, %v1169
      %v1171 = vpop.f32.mrf.mxu0
      %v1172 = vpop.f32.mrf.mxu0
      %v1173 = vadd.f32 0.0, %v1172
      %v1174 = vpop.f32.mrf.mxu0
      %1175 = vmatprep.mubr.bf16.mxu0 0
      %1176 = vmatmul.mubr.bf16.gmra.mxu0 %v1080
      %v1177 = vpop.f32.mrf.mxu0
      %v1178 = vadd.f32 0.0, %v1177
      %v1179 = vpop.f32.mrf.mxu0
      %v1180 = vpop.f32.mrf.mxu0
      %v1181 = vadd.f32 0.0, %v1180
      %v1182 = vpop.f32.mrf.mxu0
      %1183 = vmatprep.mubr.bf16.mxu0 0
      %1184 = vmatmul.mubr.bf16.gmra.mxu0 %v1081
      %v1185 = vpop.f32.mrf.mxu0
      %v1186 = vadd.f32 0.0, %v1185
      %v1187 = vpop.f32.mrf.mxu0
      %v1188 = vpop.f32.mrf.mxu0
      %v1189 = vadd.f32 0.0, %v1188
      %v1190 = vpop.f32.mrf.mxu0
      %1191 = vmatprep.mubr.bf16.mxu0 0
      %1192 = vmatmul.mubr.bf16.gmra.mxu0 %v1082
      %v1193 = vpop.f32.mrf.mxu0
      %v1194 = vadd.f32 0.0, %v1193
      %v1195 = vpop.f32.mrf.mxu0
      %v1196 = vpop.f32.mrf.mxu0
      %v1197 = vadd.f32 0.0, %v1196
      %v1198 = vpop.f32.mrf.mxu0
      %1199 = vdwg.mxu0
      %v1216 = vunpack.c.l.b16 %v1038
      %v1217 = vunpack.c.l.b16 %v1039
      %v1218 = vunpack.c.l.b16 %v1040
      %v1219 = vunpack.c.l.b16 %v1041
      %v1220 = vunpack.c.l.b16 %v1042
      %v1221 = vunpack.c.l.b16 %v1043
      %v1222 = vunpack.c.l.b16 %v1044
      %v1223 = vunpack.c.l.b16 %v1045
      %v1224 = vunpack.c.l.b16 %v1046
      %v1225 = vunpack.c.l.b16 %v1047
      %v1226 = vunpack.c.l.b16 %v1048
      %v1227 = vunpack.c.l.b16 %v1049
      %v1228 = vunpack.c.l.b16 %v1050
      %v1229 = vunpack.c.l.b16 %v1051
      %v1230 = vunpack.c.l.b16 %v1052
      %v1231 = vunpack.c.l.b16 %v1053
      %v1232 = vpack.c.b16 %v1217, %v1216
      %v1233 = vpack.c.b16 %v1219, %v1218
      %v1234 = vpack.c.b16 %v1221, %v1220
      %v1235 = vpack.c.b16 %v1223, %v1222
      %v1236 = vpack.c.b16 %v1225, %v1224
      %v1237 = vpack.c.b16 %v1227, %v1226
      %v1238 = vpack.c.b16 %v1229, %v1228
      %v1239 = vpack.c.b16 %v1231, %v1230
      %1248 = vmatprep.subr.bf16.mxu0 0
      %1249 = vmatpush1.bf16.msra.mxu0 %v1239
      %1250 = vmatprep.subr.bf16.mxu0 0
      %1251 = vmatpush1.bf16.msra.mxu0 %v1238
      %1252 = vmatprep.subr.bf16.mxu0 0
      %1253 = vmatpush1.bf16.msra.mxu0 %v1237
      %1254 = vmatprep.subr.bf16.mxu0 0
      %1255 = vmatpush1.bf16.msra.mxu0 %v1236
      %1256 = vmatprep.subr.bf16.mxu0 0
      %1257 = vmatpush1.bf16.msra.mxu0 %v1235
      %1258 = vmatprep.subr.bf16.mxu0 0
      %1259 = vmatpush1.bf16.msra.mxu0 %v1234
      %1260 = vmatprep.subr.bf16.mxu0 0
      %1261 = vmatpush1.bf16.msra.mxu0 %v1233
      %1262 = vmatprep.subr.bf16.mxu0 0
      %1263 = vmatpush1.bf16.msra.mxu0 %v1232
      %1264 = vmatprep.subr.bf16.mxu0 0
      %1265 = vmatpush2.bf16.msra.mxu0 0
      %1266 = vmatprep.subr.bf16.mxu0 0
      %1267 = vmatpush2.bf16.msra.mxu0 0
      %1268 = vmatprep.subr.bf16.mxu0 0
      %1269 = vmatpush2.bf16.msra.mxu0 0
      %1270 = vmatprep.subr.bf16.mxu0 0
      %1271 = vmatpush2.bf16.msra.mxu0 0
      %1272 = vmatprep.subr.bf16.mxu0 0
      %1273 = vmatpush2.bf16.msra.mxu0 0
      %1274 = vmatprep.subr.bf16.mxu0 0
      %1275 = vmatpush2.bf16.msra.mxu0 0
      %1276 = vmatprep.subr.bf16.mxu0 0
      %1277 = vmatpush2.bf16.msra.mxu0 0
      %1278 = vmatprep.subr.bf16.mxu0 0
      %1279 = vmatpush2.bf16.msra.mxu0 0
      %1280 = vmatprep.mubr.bf16.mxu0 0
      %1281 = vmatmul.mubr.bf16.gmra.mxu0 %v449
      %v1282 = vpop.f32.mrf.mxu0
      %v1283 = vadd.f32 %v1170, %v1282
      %v1284 = vpop.f32.mrf.mxu0
      %v1285 = vpop.f32.mrf.mxu0
      %v1286 = vadd.f32 %v1173, %v1285
      %v1287 = vpop.f32.mrf.mxu0
      %1288 = vmatprep.mubr.bf16.mxu0 0
      %1289 = vmatmul.mubr.bf16.gmra.mxu0 %v450
      %v1290 = vpop.f32.mrf.mxu0
      %v1291 = vadd.f32 %v1178, %v1290
      %v1292 = vpop.f32.mrf.mxu0
      %v1293 = vpop.f32.mrf.mxu0
      %v1294 = vadd.f32 %v1181, %v1293
      %v1295 = vpop.f32.mrf.mxu0
      %1296 = vmatprep.mubr.bf16.mxu0 0
      %1297 = vmatmul.mubr.bf16.gmra.mxu0 %v451
      %v1298 = vpop.f32.mrf.mxu0
      %v1299 = vadd.f32 %v1186, %v1298
      %v1300 = vpop.f32.mrf.mxu0
      %v1301 = vpop.f32.mrf.mxu0
      %v1302 = vadd.f32 %v1189, %v1301
      %v1303 = vpop.f32.mrf.mxu0
      %1304 = vmatprep.mubr.bf16.mxu0 0
      %1305 = vmatmul.mubr.bf16.gmra.mxu0 %v452
      %v1306 = vpop.f32.mrf.mxu0
      %v1307 = vadd.f32 %v1194, %v1306
      %v1308 = vpop.f32.mrf.mxu0
      %v1309 = vpop.f32.mrf.mxu0
      %v1310 = vadd.f32 %v1197, %v1309
      %v1311 = vpop.f32.mrf.mxu0
      %1312 = vdwg.mxu0
      %s1313 = scalar_lea.vmem %s172, 384
      %v1314 = vld [vmem:[%s1313] sm:$0xf]
      %v1315 = vld [vmem:[%s1313 + $0x4] sm:$0xf]
      %v1316 = vld [vmem:[%s1313 + $0x8] sm:$0xf]
      %v1317 = vld [vmem:[%s1313 + $0xc] sm:$0xf]
      %v1318 = vld [vmem:[%s1313 + $0x10] sm:$0xf]
      %v1319 = vld [vmem:[%s1313 + $0x14] sm:$0xf]
      %v1320 = vld [vmem:[%s1313 + $0x18] sm:$0xf]
      %v1321 = vld [vmem:[%s1313 + $0x1c] sm:$0xf]
      %v1322 = vld [vmem:[%s1313 + $0x20] sm:$0xf]
      %v1323 = vld [vmem:[%s1313 + $0x24] sm:$0xf]
      %v1324 = vld [vmem:[%s1313 + $0x28] sm:$0xf]
      %v1325 = vld [vmem:[%s1313 + $0x2c] sm:$0xf]
      %v1326 = vld [vmem:[%s1313 + $0x30] sm:$0xf]
      %v1327 = vld [vmem:[%s1313 + $0x34] sm:$0xf]
      %v1328 = vld [vmem:[%s1313 + $0x38] sm:$0xf]
      %v1329 = vld [vmem:[%s1313 + $0x3c] sm:$0xf]
      %v1346 = vunpack.c.l.b16 %v1314
      %v1347 = vunpack.c.l.b16 %v1315
      %v1348 = vunpack.c.l.b16 %v1316
      %v1349 = vunpack.c.l.b16 %v1317
      %v1350 = vunpack.c.l.b16 %v1318
      %v1351 = vunpack.c.l.b16 %v1319
      %v1352 = vunpack.c.l.b16 %v1320
      %v1353 = vunpack.c.l.b16 %v1321
      %v1354 = vunpack.c.l.b16 %v1322
      %v1355 = vunpack.c.l.b16 %v1323
      %v1356 = vunpack.c.l.b16 %v1324
      %v1357 = vunpack.c.l.b16 %v1325
      %v1358 = vunpack.c.l.b16 %v1326
      %v1359 = vunpack.c.l.b16 %v1327
      %v1360 = vunpack.c.l.b16 %v1328
      %v1361 = vunpack.c.l.b16 %v1329
      %v1362 = vpack.c.b16 %v1347, %v1346
      %v1363 = vpack.c.b16 %v1349, %v1348
      %v1364 = vpack.c.b16 %v1351, %v1350
      %v1365 = vpack.c.b16 %v1353, %v1352
      %v1366 = vpack.c.b16 %v1355, %v1354
      %v1367 = vpack.c.b16 %v1357, %v1356
      %v1368 = vpack.c.b16 %v1359, %v1358
      %v1369 = vpack.c.b16 %v1361, %v1360
      %1378 = vmatprep.subr.bf16.mxu0 0
      %1379 = vmatpush1.bf16.msra.mxu0 %v1369
      %1380 = vmatprep.subr.bf16.mxu0 0
      %1381 = vmatpush1.bf16.msra.mxu0 %v1368
      %1382 = vmatprep.subr.bf16.mxu0 0
      %1383 = vmatpush1.bf16.msra.mxu0 %v1367
      %1384 = vmatprep.subr.bf16.mxu0 0
      %1385 = vmatpush1.bf16.msra.mxu0 %v1366
      %1386 = vmatprep.subr.bf16.mxu0 0
      %1387 = vmatpush1.bf16.msra.mxu0 %v1365
      %1388 = vmatprep.subr.bf16.mxu0 0
      %1389 = vmatpush1.bf16.msra.mxu0 %v1364
      %1390 = vmatprep.subr.bf16.mxu0 0
      %1391 = vmatpush1.bf16.msra.mxu0 %v1363
      %1392 = vmatprep.subr.bf16.mxu0 0
      %1393 = vmatpush1.bf16.msra.mxu0 %v1362
      %1394 = vmatprep.subr.bf16.mxu0 0
      %1395 = vmatpush2.bf16.msra.mxu0 0
      %1396 = vmatprep.subr.bf16.mxu0 0
      %1397 = vmatpush2.bf16.msra.mxu0 0
      %1398 = vmatprep.subr.bf16.mxu0 0
      %1399 = vmatpush2.bf16.msra.mxu0 0
      %1400 = vmatprep.subr.bf16.mxu0 0
      %1401 = vmatpush2.bf16.msra.mxu0 0
      %1402 = vmatprep.subr.bf16.mxu0 0
      %1403 = vmatpush2.bf16.msra.mxu0 0
      %1404 = vmatprep.subr.bf16.mxu0 0
      %1405 = vmatpush2.bf16.msra.mxu0 0
      %1406 = vmatprep.subr.bf16.mxu0 0
      %1407 = vmatpush2.bf16.msra.mxu0 0
      %1408 = vmatprep.subr.bf16.mxu0 0
      %1409 = vmatpush2.bf16.msra.mxu0 0
      %1410 = vmatprep.mubr.bf16.mxu0 0
      %1411 = vmatmul.mubr.bf16.gmra.mxu0 %v864
      %v1412 = vpop.f32.mrf.mxu0
      %v1413 = vadd.f32 0.0, %v1412
      %v1414 = vpop.f32.mrf.mxu0
      %v1415 = vpop.f32.mrf.mxu0
      %v1416 = vadd.f32 0.0, %v1415
      %v1417 = vpop.f32.mrf.mxu0
      %1418 = vmatprep.mubr.bf16.mxu0 0
      %1419 = vmatmul.mubr.bf16.gmra.mxu0 %v865
      %v1420 = vpop.f32.mrf.mxu0
      %v1421 = vadd.f32 0.0, %v1420
      %v1422 = vpop.f32.mrf.mxu0
      %v1423 = vpop.f32.mrf.mxu0
      %v1424 = vadd.f32 0.0, %v1423
      %v1425 = vpop.f32.mrf.mxu0
      %1426 = vmatprep.mubr.bf16.mxu0 0
      %1427 = vmatmul.mubr.bf16.gmra.mxu0 %v866
      %v1428 = vpop.f32.mrf.mxu0
      %v1429 = vadd.f32 0.0, %v1428
      %v1430 = vpop.f32.mrf.mxu0
      %v1431 = vpop.f32.mrf.mxu0
      %v1432 = vadd.f32 0.0, %v1431
      %v1433 = vpop.f32.mrf.mxu0
      %1434 = vmatprep.mubr.bf16.mxu0 0
      %1435 = vmatmul.mubr.bf16.gmra.mxu0 %v867
      %v1436 = vpop.f32.mrf.mxu0
      %v1437 = vadd.f32 0.0, %v1436
      %v1438 = vpop.f32.mrf.mxu0
      %v1439 = vpop.f32.mrf.mxu0
      %v1440 = vadd.f32 0.0, %v1439
      %v1441 = vpop.f32.mrf.mxu0
      %1442 = vdwg.mxu0
      %v1443 = vadd.f32 %v1283, %v1413
      %v1444 = vadd.f32 %v1286, %v1416
      %v1445 = vadd.f32 %v1291, %v1421
      %v1446 = vadd.f32 %v1294, %v1424
      %v1447 = vadd.f32 %v1299, %v1429
      %v1448 = vadd.f32 %v1302, %v1432
      %v1449 = vadd.f32 %v1307, %v1437
      %v1450 = vadd.f32 %v1310, %v1440
      %s1451 = scalar_lea.vmem %s172, 448
      %v1452 = vld [vmem:[%s1451] sm:$0xf]
      %v1453 = vld [vmem:[%s1451 + $0x4] sm:$0xf]
      %v1454 = vld [vmem:[%s1451 + $0x8] sm:$0xf]
      %v1455 = vld [vmem:[%s1451 + $0xc] sm:$0xf]
      %v1456 = vld [vmem:[%s1451 + $0x10] sm:$0xf]
      %v1457 = vld [vmem:[%s1451 + $0x14] sm:$0xf]
      %v1458 = vld [vmem:[%s1451 + $0x18] sm:$0xf]
      %v1459 = vld [vmem:[%s1451 + $0x1c] sm:$0xf]
      %v1460 = vld [vmem:[%s1451 + $0x20] sm:$0xf]
      %v1461 = vld [vmem:[%s1451 + $0x24] sm:$0xf]
      %v1462 = vld [vmem:[%s1451 + $0x28] sm:$0xf]
      %v1463 = vld [vmem:[%s1451 + $0x2c] sm:$0xf]
      %v1464 = vld [vmem:[%s1451 + $0x30] sm:$0xf]
      %v1465 = vld [vmem:[%s1451 + $0x34] sm:$0xf]
      %v1466 = vld [vmem:[%s1451 + $0x38] sm:$0xf]
      %v1467 = vld [vmem:[%s1451 + $0x3c] sm:$0xf]
      %v1468 = vunpack.c.l.b16 %v387
      %v1469 = vpack.c.b16 %v1073, %v1072
      %v1470 = vpack.c.b16 %v1075, %v1074
      %v1471 = vpack.c.b16 %v1077, %v1076
      %v1472 = vpack.c.b16 %v1468, %v1078
      %v1493 = vunpack.c.l.b16 %v1452
      %v1494 = vunpack.c.l.b16 %v1453
      %v1495 = vunpack.c.l.b16 %v1454
      %v1496 = vunpack.c.l.b16 %v1455
      %v1497 = vunpack.c.l.b16 %v1456
      %v1498 = vunpack.c.l.b16 %v1457
      %v1499 = vunpack.c.l.b16 %v1458
      %v1500 = vunpack.c.l.b16 %v1459
      %v1501 = vunpack.c.l.b16 %v1460
      %v1502 = vunpack.c.l.b16 %v1461
      %v1503 = vunpack.c.l.b16 %v1462
      %v1504 = vunpack.c.l.b16 %v1463
      %v1505 = vunpack.c.l.b16 %v1464
      %v1506 = vunpack.c.l.b16 %v1465
      %v1507 = vunpack.c.l.b16 %v1466
      %v1508 = vunpack.c.l.b16 %v1467
      %v1509 = vpack.c.b16 %v1494, %v1493
      %v1510 = vpack.c.b16 %v1496, %v1495
      %v1511 = vpack.c.b16 %v1498, %v1497
      %v1512 = vpack.c.b16 %v1500, %v1499
      %v1513 = vpack.c.b16 %v1502, %v1501
      %v1514 = vpack.c.b16 %v1504, %v1503
      %v1515 = vpack.c.b16 %v1506, %v1505
      %v1516 = vpack.c.b16 %v1508, %v1507
      %1525 = vmatprep.subr.bf16.mxu0 0
      %1526 = vmatpush1.bf16.msra.mxu0 %v1516
      %1527 = vmatprep.subr.bf16.mxu0 0
      %1528 = vmatpush1.bf16.msra.mxu0 %v1515
      %1529 = vmatprep.subr.bf16.mxu0 0
      %1530 = vmatpush1.bf16.msra.mxu0 %v1514
      %1531 = vmatprep.subr.bf16.mxu0 0
      %1532 = vmatpush1.bf16.msra.mxu0 %v1513
      %1533 = vmatprep.subr.bf16.mxu0 0
      %1534 = vmatpush1.bf16.msra.mxu0 %v1512
      %1535 = vmatprep.subr.bf16.mxu0 0
      %1536 = vmatpush1.bf16.msra.mxu0 %v1511
      %1537 = vmatprep.subr.bf16.mxu0 0
      %1538 = vmatpush1.bf16.msra.mxu0 %v1510
      %1539 = vmatprep.subr.bf16.mxu0 0
      %1540 = vmatpush1.bf16.msra.mxu0 %v1509
      %1541 = vmatprep.subr.bf16.mxu0 0
      %1542 = vmatpush2.bf16.msra.mxu0 0
      %1543 = vmatprep.subr.bf16.mxu0 0
      %1544 = vmatpush2.bf16.msra.mxu0 0
      %1545 = vmatprep.subr.bf16.mxu0 0
      %1546 = vmatpush2.bf16.msra.mxu0 0
      %1547 = vmatprep.subr.bf16.mxu0 0
      %1548 = vmatpush2.bf16.msra.mxu0 0
      %1549 = vmatprep.subr.bf16.mxu0 0
      %1550 = vmatpush2.bf16.msra.mxu0 0
      %1551 = vmatprep.subr.bf16.mxu0 0
      %1552 = vmatpush2.bf16.msra.mxu0 0
      %1553 = vmatprep.subr.bf16.mxu0 0
      %1554 = vmatpush2.bf16.msra.mxu0 0
      %1555 = vmatprep.subr.bf16.mxu0 0
      %1556 = vmatpush2.bf16.msra.mxu0 0
      %1557 = vmatprep.mubr.bf16.mxu0 0
      %1558 = vmatmul.mubr.bf16.gmra.mxu0 %v1469
      %v1559 = vpop.f32.mrf.mxu0
      %v1560 = vadd.f32 0.0, %v1559
      %v1561 = vpop.f32.mrf.mxu0
      %v1562 = vpop.f32.mrf.mxu0
      %v1563 = vadd.f32 0.0, %v1562
      %v1564 = vpop.f32.mrf.mxu0
      %1565 = vmatprep.mubr.bf16.mxu0 0
      %1566 = vmatmul.mubr.bf16.gmra.mxu0 %v1470
      %v1567 = vpop.f32.mrf.mxu0
      %v1568 = vadd.f32 0.0, %v1567
      %v1569 = vpop.f32.mrf.mxu0
      %v1570 = vpop.f32.mrf.mxu0
      %v1571 = vadd.f32 0.0, %v1570
      %v1572 = vpop.f32.mrf.mxu0
      %1573 = vmatprep.mubr.bf16.mxu0 0
      %1574 = vmatmul.mubr.bf16.gmra.mxu0 %v1471
      %v1575 = vpop.f32.mrf.mxu0
      %v1576 = vadd.f32 0.0, %v1575
      %v1577 = vpop.f32.mrf.mxu0
      %v1578 = vpop.f32.mrf.mxu0
      %v1579 = vadd.f32 0.0, %v1578
      %v1580 = vpop.f32.mrf.mxu0
      %1581 = vmatprep.mubr.bf16.mxu0 0
      %1582 = vmatmul.mubr.bf16.gmra.mxu0 %v1472
      %v1583 = vpop.f32.mrf.mxu0
      %v1584 = vadd.f32 0.0, %v1583
      %v1585 = vpop.f32.mrf.mxu0
      %v1586 = vpop.f32.mrf.mxu0
      %v1587 = vadd.f32 0.0, %v1586
      %v1588 = vpop.f32.mrf.mxu0
      %1589 = vdwg.mxu0
      %v1590 = vadd.f32 %v1443, %v1560
      %v1591 = vadd.f32 %v1444, %v1563
      %v1592 = vadd.f32 %v1445, %v1568
      %v1593 = vadd.f32 %v1446, %v1571
      %v1594 = vadd.f32 %v1447, %v1576
      %v1595 = vadd.f32 %v1448, %v1579
      %v1596 = vadd.f32 %v1449, %v1584
      %v1597 = vadd.f32 %v1450, %v1587
      %s1598 = scalar_lea.vmem [#allocation2], 64
      %1599 = vst [vmem:[%s1598] sm:$0xff] %v1590
      %1600 = vst [vmem:[%s1598 + $0x8] sm:$0xff] %v1591
      %1601 = vst [vmem:[%s1598 + $0x10] sm:$0xff] %v1592
      %1602 = vst [vmem:[%s1598 + $0x18] sm:$0xff] %v1593
      %1603 = vst [vmem:[%s1598 + $0x20] sm:$0xff] %v1594
      %1604 = vst [vmem:[%s1598 + $0x28] sm:$0xff] %v1595
      %1605 = vst [vmem:[%s1598 + $0x30] sm:$0xff] %v1596
      %1606 = vst [vmem:[%s1598 + $0x38] sm:$0xff] %v1597
      %v1607 = vadd.f32 %v1590, %v1591
      %v1608 = vadd.f32 %v1607, %v1592
      %v1609 = vadd.f32 %v1608, %v1593
      %v1610 = vadd.f32 %v1609, %v1594
      %v1611 = vadd.f32 %v1610, %v1595
      %v1612 = vadd.f32 %v1611, %v1596
      %v1613 = vadd.f32 %v1612, %v1597
      %v1614 = vrot.slane %v1613, 4
      %v1615 = vadd.f32 %v1613, %v1614
      %v1616 = vrot.slane %v1615, 2
      %v1617 = vadd.f32 %v1615, %v1616
      %v1618 = vrot.slane %v1617, 1
      %v1619 = vadd.f32 %v1617, %v1618
      %v1620 = vadd.f32 %v1014, %v1619
      %v1621 = vmul.f32 %v1590, %v1590
      %v1622 = vmul.f32 %v1591, %v1591
      %v1623 = vmul.f32 %v1592, %v1592
      %v1624 = vmul.f32 %v1593, %v1593
      %v1625 = vmul.f32 %v1594, %v1594
      %v1626 = vmul.f32 %v1595, %v1595
      %v1627 = vmul.f32 %v1596, %v1596
      %v1628 = vmul.f32 %v1597, %v1597
      %v1629 = vadd.f32 %v1621, %v1622
      %v1630 = vadd.f32 %v1629, %v1623
      %v1631 = vadd.f32 %v1630, %v1624
      %v1632 = vadd.f32 %v1631, %v1625
      %v1633 = vadd.f32 %v1632, %v1626
      %v1634 = vadd.f32 %v1633, %v1627
      %v1635 = vadd.f32 %v1634, %v1628
      %v1636 = vrot.slane %v1635, 4
      %v1637 = vadd.f32 %v1635, %v1636
      %v1638 = vrot.slane %v1637, 2
      %v1639 = vadd.f32 %v1637, %v1638
      %v1640 = vrot.slane %v1639, 1
      %v1641 = vadd.f32 %v1639, %v1640
      %v1642 = vadd.f32 %v1036, %v1641
      %s1643 = scalar_lea.vmem %s172, 512
      %v1644 = vld [vmem:[%s1643] sm:$0xf]
      %v1645 = vld [vmem:[%s1643 + $0x4] sm:$0xf]
      %v1646 = vld [vmem:[%s1643 + $0x8] sm:$0xf]
      %v1647 = vld [vmem:[%s1643 + $0xc] sm:$0xf]
      %v1648 = vld [vmem:[%s1643 + $0x10] sm:$0xf]
      %v1649 = vld [vmem:[%s1643 + $0x14] sm:$0xf]
      %v1650 = vld [vmem:[%s1643 + $0x18] sm:$0xf]
      %v1651 = vld [vmem:[%s1643 + $0x1c] sm:$0xf]
      %v1652 = vld [vmem:[%s1643 + $0x20] sm:$0xf]
      %v1653 = vld [vmem:[%s1643 + $0x24] sm:$0xf]
      %v1654 = vld [vmem:[%s1643 + $0x28] sm:$0xf]
      %v1655 = vld [vmem:[%s1643 + $0x2c] sm:$0xf]
      %v1656 = vld [vmem:[%s1643 + $0x30] sm:$0xf]
      %v1657 = vld [vmem:[%s1643 + $0x34] sm:$0xf]
      %v1658 = vld [vmem:[%s1643 + $0x38] sm:$0xf]
      %v1659 = vld [vmem:[%s1643 + $0x3c] sm:$0xf]
      %s1660 = scalar_lea.vmem %s172, 576
      %v1661 = vld [vmem:[%s1660] sm:$0xf]
      %v1662 = vld [vmem:[%s1660 + $0x4] sm:$0xf]
      %v1663 = vld [vmem:[%s1660 + $0x8] sm:$0xf]
      %v1664 = vld [vmem:[%s1660 + $0xc] sm:$0xf]
      %v1665 = vld [vmem:[%s1660 + $0x10] sm:$0xf]
      %v1666 = vld [vmem:[%s1660 + $0x14] sm:$0xf]
      %v1667 = vld [vmem:[%s1660 + $0x18] sm:$0xf]
      %v1668 = vld [vmem:[%s1660 + $0x1c] sm:$0xf]
      %v1669 = vld [vmem:[%s1660 + $0x20] sm:$0xf]
      %v1670 = vld [vmem:[%s1660 + $0x24] sm:$0xf]
      %v1671 = vld [vmem:[%s1660 + $0x28] sm:$0xf]
      %v1672 = vld [vmem:[%s1660 + $0x2c] sm:$0xf]
      %v1673 = vld [vmem:[%s1660 + $0x30] sm:$0xf]
      %v1674 = vld [vmem:[%s1660 + $0x34] sm:$0xf]
      %v1675 = vld [vmem:[%s1660 + $0x38] sm:$0xf]
      %v1676 = vld [vmem:[%s1660 + $0x3c] sm:$0xf]
      %v1693 = vunpack.c.l.b16 %v1661
      %v1694 = vunpack.c.l.b16 %v1662
      %v1695 = vunpack.c.l.b16 %v1663
      %v1696 = vunpack.c.l.b16 %v1664
      %v1697 = vunpack.c.l.b16 %v1665
      %v1698 = vunpack.c.l.b16 %v1666
      %v1699 = vunpack.c.l.b16 %v1667
      %v1700 = vunpack.c.l.b16 %v1668
      %v1701 = vunpack.c.l.b16 %v1669
      %v1702 = vunpack.c.l.b16 %v1670
      %v1703 = vunpack.c.l.b16 %v1671
      %v1704 = vunpack.c.l.b16 %v1672
      %v1705 = vunpack.c.l.b16 %v1673
      %v1706 = vunpack.c.l.b16 %v1674
      %v1707 = vunpack.c.l.b16 %v1675
      %v1708 = vunpack.c.l.b16 %v1676
      %v1709 = vpack.c.b16 %v1694, %v1693
      %v1710 = vpack.c.b16 %v1696, %v1695
      %v1711 = vpack.c.b16 %v1698, %v1697
      %v1712 = vpack.c.b16 %v1700, %v1699
      %v1713 = vpack.c.b16 %v1702, %v1701
      %v1714 = vpack.c.b16 %v1704, %v1703
      %v1715 = vpack.c.b16 %v1706, %v1705
      %v1716 = vpack.c.b16 %v1708, %v1707
      %1725 = vmatprep.subr.bf16.mxu0 0
      %1726 = vmatpush1.bf16.msra.mxu0 %v1716
      %1727 = vmatprep.subr.bf16.mxu0 0
      %1728 = vmatpush1.bf16.msra.mxu0 %v1715
      %1729 = vmatprep.subr.bf16.mxu0 0
      %1730 = vmatpush1.bf16.msra.mxu0 %v1714
      %1731 = vmatprep.subr.bf16.mxu0 0
      %1732 = vmatpush1.bf16.msra.mxu0 %v1713
      %1733 = vmatprep.subr.bf16.mxu0 0
      %1734 = vmatpush1.bf16.msra.mxu0 %v1712
      %1735 = vmatprep.subr.bf16.mxu0 0
      %1736 = vmatpush1.bf16.msra.mxu0 %v1711
      %1737 = vmatprep.subr.bf16.mxu0 0
      %1738 = vmatpush1.bf16.msra.mxu0 %v1710
      %1739 = vmatprep.subr.bf16.mxu0 0
      %1740 = vmatpush1.bf16.msra.mxu0 %v1709
      %1741 = vmatprep.subr.bf16.mxu0 0
      %1742 = vmatpush2.bf16.msra.mxu0 0
      %1743 = vmatprep.subr.bf16.mxu0 0
      %1744 = vmatpush2.bf16.msra.mxu0 0
      %1745 = vmatprep.subr.bf16.mxu0 0
      %1746 = vmatpush2.bf16.msra.mxu0 0
      %1747 = vmatprep.subr.bf16.mxu0 0
      %1748 = vmatpush2.bf16.msra.mxu0 0
      %1749 = vmatprep.subr.bf16.mxu0 0
      %1750 = vmatpush2.bf16.msra.mxu0 0
      %1751 = vmatprep.subr.bf16.mxu0 0
      %1752 = vmatpush2.bf16.msra.mxu0 0
      %1753 = vmatprep.subr.bf16.mxu0 0
      %1754 = vmatpush2.bf16.msra.mxu0 0
      %1755 = vmatprep.subr.bf16.mxu0 0
      %1756 = vmatpush2.bf16.msra.mxu0 0
      %1757 = vmatprep.mubr.bf16.mxu0 0
      %1758 = vmatmul.mubr.bf16.gmra.mxu0 %v864
      %v1759 = vpop.f32.mrf.mxu0
      %v1760 = vadd.f32 0.0, %v1759
      %v1761 = vpop.f32.mrf.mxu0
      %v1762 = vpop.f32.mrf.mxu0
      %v1763 = vadd.f32 0.0, %v1762
      %v1764 = vpop.f32.mrf.mxu0
      %1765 = vmatprep.mubr.bf16.mxu0 0
      %1766 = vmatmul.mubr.bf16.gmra.mxu0 %v865
      %v1767 = vpop.f32.mrf.mxu0
      %v1768 = vadd.f32 0.0, %v1767
      %v1769 = vpop.f32.mrf.mxu0
      %v1770 = vpop.f32.mrf.mxu0
      %v1771 = vadd.f32 0.0, %v1770
      %v1772 = vpop.f32.mrf.mxu0
      %1773 = vmatprep.mubr.bf16.mxu0 0
      %1774 = vmatmul.mubr.bf16.gmra.mxu0 %v866
      %v1775 = vpop.f32.mrf.mxu0
      %v1776 = vadd.f32 0.0, %v1775
      %v1777 = vpop.f32.mrf.mxu0
      %v1778 = vpop.f32.mrf.mxu0
      %v1779 = vadd.f32 0.0, %v1778
      %v1780 = vpop.f32.mrf.mxu0
      %1781 = vmatprep.mubr.bf16.mxu0 0
      %1782 = vmatmul.mubr.bf16.gmra.mxu0 %v867
      %v1783 = vpop.f32.mrf.mxu0
      %v1784 = vadd.f32 0.0, %v1783
      %v1785 = vpop.f32.mrf.mxu0
      %v1786 = vpop.f32.mrf.mxu0
      %v1787 = vadd.f32 0.0, %v1786
      %v1788 = vpop.f32.mrf.mxu0
      %1789 = vdwg.mxu0
      %v1806 = vunpack.c.l.b16 %v1644
      %v1807 = vunpack.c.l.b16 %v1645
      %v1808 = vunpack.c.l.b16 %v1646
      %v1809 = vunpack.c.l.b16 %v1647
      %v1810 = vunpack.c.l.b16 %v1648
      %v1811 = vunpack.c.l.b16 %v1649
      %v1812 = vunpack.c.l.b16 %v1650
      %v1813 = vunpack.c.l.b16 %v1651
      %v1814 = vunpack.c.l.b16 %v1652
      %v1815 = vunpack.c.l.b16 %v1653
      %v1816 = vunpack.c.l.b16 %v1654
      %v1817 = vunpack.c.l.b16 %v1655
      %v1818 = vunpack.c.l.b16 %v1656
      %v1819 = vunpack.c.l.b16 %v1657
      %v1820 = vunpack.c.l.b16 %v1658
      %v1821 = vunpack.c.l.b16 %v1659
      %v1822 = vpack.c.b16 %v1807, %v1806
      %v1823 = vpack.c.b16 %v1809, %v1808
      %v1824 = vpack.c.b16 %v1811, %v1810
      %v1825 = vpack.c.b16 %v1813, %v1812
      %v1826 = vpack.c.b16 %v1815, %v1814
      %v1827 = vpack.c.b16 %v1817, %v1816
      %v1828 = vpack.c.b16 %v1819, %v1818
      %v1829 = vpack.c.b16 %v1821, %v1820
      %1838 = vmatprep.subr.bf16.mxu0 0
      %1839 = vmatpush1.bf16.msra.mxu0 %v1829
      %1840 = vmatprep.subr.bf16.mxu0 0
      %1841 = vmatpush1.bf16.msra.mxu0 %v1828
      %1842 = vmatprep.subr.bf16.mxu0 0
      %1843 = vmatpush1.bf16.msra.mxu0 %v1827
      %1844 = vmatprep.subr.bf16.mxu0 0
      %1845 = vmatpush1.bf16.msra.mxu0 %v1826
      %1846 = vmatprep.subr.bf16.mxu0 0
      %1847 = vmatpush1.bf16.msra.mxu0 %v1825
      %1848 = vmatprep.subr.bf16.mxu0 0
      %1849 = vmatpush1.bf16.msra.mxu0 %v1824
      %1850 = vmatprep.subr.bf16.mxu0 0
      %1851 = vmatpush1.bf16.msra.mxu0 %v1823
      %1852 = vmatprep.subr.bf16.mxu0 0
      %1853 = vmatpush1.bf16.msra.mxu0 %v1822
      %1854 = vmatprep.subr.bf16.mxu0 0
      %1855 = vmatpush2.bf16.msra.mxu0 0
      %1856 = vmatprep.subr.bf16.mxu0 0
      %1857 = vmatpush2.bf16.msra.mxu0 0
      %1858 = vmatprep.subr.bf16.mxu0 0
      %1859 = vmatpush2.bf16.msra.mxu0 0
      %1860 = vmatprep.subr.bf16.mxu0 0
      %1861 = vmatpush2.bf16.msra.mxu0 0
      %1862 = vmatprep.subr.bf16.mxu0 0
      %1863 = vmatpush2.bf16.msra.mxu0 0
      %1864 = vmatprep.subr.bf16.mxu0 0
      %1865 = vmatpush2.bf16.msra.mxu0 0
      %1866 = vmatprep.subr.bf16.mxu0 0
      %1867 = vmatpush2.bf16.msra.mxu0 0
      %1868 = vmatprep.subr.bf16.mxu0 0
      %1869 = vmatpush2.bf16.msra.mxu0 0
      %1870 = vmatprep.mubr.bf16.mxu0 0
      %1871 = vmatmul.mubr.bf16.gmra.mxu0 %v717
      %v1872 = vpop.f32.mrf.mxu0
      %v1873 = vadd.f32 %v1760, %v1872
      %v1874 = vpop.f32.mrf.mxu0
      %v1875 = vpop.f32.mrf.mxu0
      %v1876 = vadd.f32 %v1763, %v1875
      %v1877 = vpop.f32.mrf.mxu0
      %1878 = vmatprep.mubr.bf16.mxu0 0
      %1879 = vmatmul.mubr.bf16.gmra.mxu0 %v718
      %v1880 = vpop.f32.mrf.mxu0
      %v1881 = vadd.f32 %v1768, %v1880
      %v1882 = vpop.f32.mrf.mxu0
      %v1883 = vpop.f32.mrf.mxu0
      %v1884 = vadd.f32 %v1771, %v1883
      %v1885 = vpop.f32.mrf.mxu0
      %1886 = vmatprep.mubr.bf16.mxu0 0
      %1887 = vmatmul.mubr.bf16.gmra.mxu0 %v719
      %v1888 = vpop.f32.mrf.mxu0
      %v1889 = vadd.f32 %v1776, %v1888
      %v1890 = vpop.f32.mrf.mxu0
      %v1891 = vpop.f32.mrf.mxu0
      %v1892 = vadd.f32 %v1779, %v1891
      %v1893 = vpop.f32.mrf.mxu0
      %1894 = vmatprep.mubr.bf16.mxu0 0
      %1895 = vmatmul.mubr.bf16.gmra.mxu0 %v720
      %v1896 = vpop.f32.mrf.mxu0
      %v1897 = vadd.f32 %v1784, %v1896
      %v1898 = vpop.f32.mrf.mxu0
      %v1899 = vpop.f32.mrf.mxu0
      %v1900 = vadd.f32 %v1787, %v1899
      %v1901 = vpop.f32.mrf.mxu0
      %1902 = vdwg.mxu0
      %s1903 = scalar_lea.vmem %s172, 640
      %v1904 = vld [vmem:[%s1903] sm:$0xf]
      %v1905 = vld [vmem:[%s1903 + $0x4] sm:$0xf]
      %v1906 = vld [vmem:[%s1903 + $0x8] sm:$0xf]
      %v1907 = vld [vmem:[%s1903 + $0xc] sm:$0xf]
      %v1908 = vld [vmem:[%s1903 + $0x10] sm:$0xf]
      %v1909 = vld [vmem:[%s1903 + $0x14] sm:$0xf]
      %v1910 = vld [vmem:[%s1903 + $0x18] sm:$0xf]
      %v1911 = vld [vmem:[%s1903 + $0x1c] sm:$0xf]
      %v1912 = vld [vmem:[%s1903 + $0x20] sm:$0xf]
      %v1913 = vld [vmem:[%s1903 + $0x24] sm:$0xf]
      %v1914 = vld [vmem:[%s1903 + $0x28] sm:$0xf]
      %v1915 = vld [vmem:[%s1903 + $0x2c] sm:$0xf]
      %v1916 = vld [vmem:[%s1903 + $0x30] sm:$0xf]
      %v1917 = vld [vmem:[%s1903 + $0x34] sm:$0xf]
      %v1918 = vld [vmem:[%s1903 + $0x38] sm:$0xf]
      %v1919 = vld [vmem:[%s1903 + $0x3c] sm:$0xf]
      %v1920 = vunpack.c.l.b16 %v200
      %v1921 = vpack.c.b16 %v1920, %v716
      %v1939 = vunpack.c.l.b16 %v1904
      %v1940 = vunpack.c.l.b16 %v1905
      %v1941 = vunpack.c.l.b16 %v1906
      %v1942 = vunpack.c.l.b16 %v1907
      %v1943 = vunpack.c.l.b16 %v1908
      %v1944 = vunpack.c.l.b16 %v1909
      %v1945 = vunpack.c.l.b16 %v1910
      %v1946 = vunpack.c.l.b16 %v1911
      %v1947 = vunpack.c.l.b16 %v1912
      %v1948 = vunpack.c.l.b16 %v1913
      %v1949 = vunpack.c.l.b16 %v1914
      %v1950 = vunpack.c.l.b16 %v1915
      %v1951 = vunpack.c.l.b16 %v1916
      %v1952 = vunpack.c.l.b16 %v1917
      %v1953 = vunpack.c.l.b16 %v1918
      %v1954 = vunpack.c.l.b16 %v1919
      %v1955 = vpack.c.b16 %v1940, %v1939
      %v1956 = vpack.c.b16 %v1942, %v1941
      %v1957 = vpack.c.b16 %v1944, %v1943
      %v1958 = vpack.c.b16 %v1946, %v1945
      %v1959 = vpack.c.b16 %v1948, %v1947
      %v1960 = vpack.c.b16 %v1950, %v1949
      %v1961 = vpack.c.b16 %v1952, %v1951
      %v1962 = vpack.c.b16 %v1954, %v1953
      %1971 = vmatprep.subr.bf16.mxu0 0
      %1972 = vmatpush1.bf16.msra.mxu0 %v1962
      %1973 = vmatprep.subr.bf16.mxu0 0
      %1974 = vmatpush1.bf16.msra.mxu0 %v1961
      %1975 = vmatprep.subr.bf16.mxu0 0
      %1976 = vmatpush1.bf16.msra.mxu0 %v1960
      %1977 = vmatprep.subr.bf16.mxu0 0
      %1978 = vmatpush1.bf16.msra.mxu0 %v1959
      %1979 = vmatprep.subr.bf16.mxu0 0
      %1980 = vmatpush1.bf16.msra.mxu0 %v1958
      %1981 = vmatprep.subr.bf16.mxu0 0
      %1982 = vmatpush1.bf16.msra.mxu0 %v1957
      %1983 = vmatprep.subr.bf16.mxu0 0
      %1984 = vmatpush1.bf16.msra.mxu0 %v1956
      %1985 = vmatprep.subr.bf16.mxu0 0
      %1986 = vmatpush1.bf16.msra.mxu0 %v1955
      %1987 = vmatprep.subr.bf16.mxu0 0
      %1988 = vmatpush2.bf16.msra.mxu0 0
      %1989 = vmatprep.subr.bf16.mxu0 0
      %1990 = vmatpush2.bf16.msra.mxu0 0
      %1991 = vmatprep.subr.bf16.mxu0 0
      %1992 = vmatpush2.bf16.msra.mxu0 0
      %1993 = vmatprep.subr.bf16.mxu0 0
      %1994 = vmatpush2.bf16.msra.mxu0 0
      %1995 = vmatprep.subr.bf16.mxu0 0
      %1996 = vmatpush2.bf16.msra.mxu0 0
      %1997 = vmatprep.subr.bf16.mxu0 0
      %1998 = vmatpush2.bf16.msra.mxu0 0
      %1999 = vmatprep.subr.bf16.mxu0 0
      %2000 = vmatpush2.bf16.msra.mxu0 0
      %2001 = vmatprep.subr.bf16.mxu0 0
      %2002 = vmatpush2.bf16.msra.mxu0 0
      %2003 = vmatprep.mubr.bf16.mxu0 0
      %2004 = vmatmul.mubr.bf16.gmra.mxu0 %v579
      %v2005 = vpop.f32.mrf.mxu0
      %v2006 = vadd.f32 0.0, %v2005
      %v2007 = vpop.f32.mrf.mxu0
      %v2008 = vpop.f32.mrf.mxu0
      %v2009 = vadd.f32 0.0, %v2008
      %v2010 = vpop.f32.mrf.mxu0
      %2011 = vmatprep.mubr.bf16.mxu0 0
      %2012 = vmatmul.mubr.bf16.gmra.mxu0 %v580
      %v2013 = vpop.f32.mrf.mxu0
      %v2014 = vadd.f32 0.0, %v2013
      %v2015 = vpop.f32.mrf.mxu0
      %v2016 = vpop.f32.mrf.mxu0
      %v2017 = vadd.f32 0.0, %v2016
      %v2018 = vpop.f32.mrf.mxu0
      %2019 = vmatprep.mubr.bf16.mxu0 0
      %2020 = vmatmul.mubr.bf16.gmra.mxu0 %v581
      %v2021 = vpop.f32.mrf.mxu0
      %v2022 = vadd.f32 0.0, %v2021
      %v2023 = vpop.f32.mrf.mxu0
      %v2024 = vpop.f32.mrf.mxu0
      %v2025 = vadd.f32 0.0, %v2024
      %v2026 = vpop.f32.mrf.mxu0
      %2027 = vmatprep.mubr.bf16.mxu0 0
      %2028 = vmatmul.mubr.bf16.gmra.mxu0 %v1921
      %v2029 = vpop.f32.mrf.mxu0
      %v2030 = vadd.f32 0.0, %v2029
      %v2031 = vpop.f32.mrf.mxu0
      %v2032 = vpop.f32.mrf.mxu0
      %v2033 = vadd.f32 0.0, %v2032
      %v2034 = vpop.f32.mrf.mxu0
      %2035 = vdwg.mxu0
      %v2036 = vadd.f32 %v1873, %v2006
      %v2037 = vadd.f32 %v1876, %v2009
      %v2038 = vadd.f32 %v1881, %v2014
      %v2039 = vadd.f32 %v1884, %v2017
      %v2040 = vadd.f32 %v1889, %v2022
      %v2041 = vadd.f32 %v1892, %v2025
      %v2042 = vadd.f32 %v1897, %v2030
      %v2043 = vadd.f32 %v1900, %v2033
      %s2044 = scalar_lea.vmem %s172, 704
      %v2045 = vld [vmem:[%s2044] sm:$0xf]
      %v2046 = vld [vmem:[%s2044 + $0x4] sm:$0xf]
      %v2047 = vld [vmem:[%s2044 + $0x8] sm:$0xf]
      %v2048 = vld [vmem:[%s2044 + $0xc] sm:$0xf]
      %v2049 = vld [vmem:[%s2044 + $0x10] sm:$0xf]
      %v2050 = vld [vmem:[%s2044 + $0x14] sm:$0xf]
      %v2051 = vld [vmem:[%s2044 + $0x18] sm:$0xf]
      %v2052 = vld [vmem:[%s2044 + $0x1c] sm:$0xf]
      %v2053 = vld [vmem:[%s2044 + $0x20] sm:$0xf]
      %v2054 = vld [vmem:[%s2044 + $0x24] sm:$0xf]
      %v2055 = vld [vmem:[%s2044 + $0x28] sm:$0xf]
      %v2056 = vld [vmem:[%s2044 + $0x2c] sm:$0xf]
      %v2057 = vld [vmem:[%s2044 + $0x30] sm:$0xf]
      %v2058 = vld [vmem:[%s2044 + $0x34] sm:$0xf]
      %v2059 = vld [vmem:[%s2044 + $0x38] sm:$0xf]
      %v2060 = vld [vmem:[%s2044 + $0x3c] sm:$0xf]
      %v2061 = vunpack.c.l.b16 %v401
      %v2062 = vpack.c.b16 %v2061, %v863
      %v2080 = vunpack.c.l.b16 %v2045
      %v2081 = vunpack.c.l.b16 %v2046
      %v2082 = vunpack.c.l.b16 %v2047
      %v2083 = vunpack.c.l.b16 %v2048
      %v2084 = vunpack.c.l.b16 %v2049
      %v2085 = vunpack.c.l.b16 %v2050
      %v2086 = vunpack.c.l.b16 %v2051
      %v2087 = vunpack.c.l.b16 %v2052
      %v2088 = vunpack.c.l.b16 %v2053
      %v2089 = vunpack.c.l.b16 %v2054
      %v2090 = vunpack.c.l.b16 %v2055
      %v2091 = vunpack.c.l.b16 %v2056
      %v2092 = vunpack.c.l.b16 %v2057
      %v2093 = vunpack.c.l.b16 %v2058
      %v2094 = vunpack.c.l.b16 %v2059
      %v2095 = vunpack.c.l.b16 %v2060
      %v2096 = vpack.c.b16 %v2081, %v2080
      %v2097 = vpack.c.b16 %v2083, %v2082
      %v2098 = vpack.c.b16 %v2085, %v2084
      %v2099 = vpack.c.b16 %v2087, %v2086
      %v2100 = vpack.c.b16 %v2089, %v2088
      %v2101 = vpack.c.b16 %v2091, %v2090
      %v2102 = vpack.c.b16 %v2093, %v2092
      %v2103 = vpack.c.b16 %v2095, %v2094
      %2112 = vmatprep.subr.bf16.mxu0 0
      %2113 = vmatpush1.bf16.msra.mxu0 %v2103
      %2114 = vmatprep.subr.bf16.mxu0 0
      %2115 = vmatpush1.bf16.msra.mxu0 %v2102
      %2116 = vmatprep.subr.bf16.mxu0 0
      %2117 = vmatpush1.bf16.msra.mxu0 %v2101
      %2118 = vmatprep.subr.bf16.mxu0 0
      %2119 = vmatpush1.bf16.msra.mxu0 %v2100
      %2120 = vmatprep.subr.bf16.mxu0 0
      %2121 = vmatpush1.bf16.msra.mxu0 %v2099
      %2122 = vmatprep.subr.bf16.mxu0 0
      %2123 = vmatpush1.bf16.msra.mxu0 %v2098
      %2124 = vmatprep.subr.bf16.mxu0 0
      %2125 = vmatpush1.bf16.msra.mxu0 %v2097
      %2126 = vmatprep.subr.bf16.mxu0 0
      %2127 = vmatpush1.bf16.msra.mxu0 %v2096
      %2128 = vmatprep.subr.bf16.mxu0 0
      %2129 = vmatpush2.bf16.msra.mxu0 0
      %2130 = vmatprep.subr.bf16.mxu0 0
      %2131 = vmatpush2.bf16.msra.mxu0 0
      %2132 = vmatprep.subr.bf16.mxu0 0
      %2133 = vmatpush2.bf16.msra.mxu0 0
      %2134 = vmatprep.subr.bf16.mxu0 0
      %2135 = vmatpush2.bf16.msra.mxu0 0
      %2136 = vmatprep.subr.bf16.mxu0 0
      %2137 = vmatpush2.bf16.msra.mxu0 0
      %2138 = vmatprep.subr.bf16.mxu0 0
      %2139 = vmatpush2.bf16.msra.mxu0 0
      %2140 = vmatprep.subr.bf16.mxu0 0
      %2141 = vmatpush2.bf16.msra.mxu0 0
      %2142 = vmatprep.subr.bf16.mxu0 0
      %2143 = vmatpush2.bf16.msra.mxu0 0
      %2144 = vmatprep.mubr.bf16.mxu0 0
      %2145 = vmatmul.mubr.bf16.gmra.mxu0 %v450
      %v2146 = vpop.f32.mrf.mxu0
      %v2147 = vadd.f32 0.0, %v2146
      %v2148 = vpop.f32.mrf.mxu0
      %v2149 = vpop.f32.mrf.mxu0
      %v2150 = vadd.f32 0.0, %v2149
      %v2151 = vpop.f32.mrf.mxu0
      %2152 = vmatprep.mubr.bf16.mxu0 0
      %2153 = vmatmul.mubr.bf16.gmra.mxu0 %v451
      %v2154 = vpop.f32.mrf.mxu0
      %v2155 = vadd.f32 0.0, %v2154
      %v2156 = vpop.f32.mrf.mxu0
      %v2157 = vpop.f32.mrf.mxu0
      %v2158 = vadd.f32 0.0, %v2157
      %v2159 = vpop.f32.mrf.mxu0
      %2160 = vmatprep.mubr.bf16.mxu0 0
      %2161 = vmatmul.mubr.bf16.gmra.mxu0 %v452
      %v2162 = vpop.f32.mrf.mxu0
      %v2163 = vadd.f32 0.0, %v2162
      %v2164 = vpop.f32.mrf.mxu0
      %v2165 = vpop.f32.mrf.mxu0
      %v2166 = vadd.f32 0.0, %v2165
      %v2167 = vpop.f32.mrf.mxu0
      %2168 = vmatprep.mubr.bf16.mxu0 0
      %2169 = vmatmul.mubr.bf16.gmra.mxu0 %v2062
      %v2170 = vpop.f32.mrf.mxu0
      %v2171 = vadd.f32 0.0, %v2170
      %v2172 = vpop.f32.mrf.mxu0
      %v2173 = vpop.f32.mrf.mxu0
      %v2174 = vadd.f32 0.0, %v2173
      %v2175 = vpop.f32.mrf.mxu0
      %2176 = vdwg.mxu0
      %v2177 = vadd.f32 %v2036, %v2147
      %v2178 = vadd.f32 %v2037, %v2150
      %v2179 = vadd.f32 %v2038, %v2155
      %v2180 = vadd.f32 %v2039, %v2158
      %v2181 = vadd.f32 %v2040, %v2163
      %v2182 = vadd.f32 %v2041, %v2166
      %v2183 = vadd.f32 %v2042, %v2171
      %v2184 = vadd.f32 %v2043, %v2174
      %s2185 = scalar_lea.vmem [#allocation2], 128
      %2186 = vst [vmem:[%s2185] sm:$0xff] %v2177
      %2187 = vst [vmem:[%s2185 + $0x8] sm:$0xff] %v2178
      %2188 = vst [vmem:[%s2185 + $0x10] sm:$0xff] %v2179
      %2189 = vst [vmem:[%s2185 + $0x18] sm:$0xff] %v2180
      %2190 = vst [vmem:[%s2185 + $0x20] sm:$0xff] %v2181
      %2191 = vst [vmem:[%s2185 + $0x28] sm:$0xff] %v2182
      %2192 = vst [vmem:[%s2185 + $0x30] sm:$0xff] %v2183
      %2193 = vst [vmem:[%s2185 + $0x38] sm:$0xff] %v2184
      %v2194 = vadd.f32 %v2177, %v2178
      %v2195 = vadd.f32 %v2194, %v2179
      %v2196 = vadd.f32 %v2195, %v2180
      %v2197 = vadd.f32 %v2196, %v2181
      %v2198 = vadd.f32 %v2197, %v2182
      %v2199 = vadd.f32 %v2198, %v2183
      %v2200 = vadd.f32 %v2199, %v2184
      %v2201 = vrot.slane %v2200, 4
      %v2202 = vadd.f32 %v2200, %v2201
      %v2203 = vrot.slane %v2202, 2
      %v2204 = vadd.f32 %v2202, %v2203
      %v2205 = vrot.slane %v2204, 1
      %v2206 = vadd.f32 %v2204, %v2205
      %v2207 = vadd.f32 %v1620, %v2206
      %v2208 = vmul.f32 %v2177, %v2177
      %v2209 = vmul.f32 %v2178, %v2178
      %v2210 = vmul.f32 %v2179, %v2179
      %v2211 = vmul.f32 %v2180, %v2180
      %v2212 = vmul.f32 %v2181, %v2181
      %v2213 = vmul.f32 %v2182, %v2182
      %v2214 = vmul.f32 %v2183, %v2183
      %v2215 = vmul.f32 %v2184, %v2184
      %v2216 = vadd.f32 %v2208, %v2209
      %v2217 = vadd.f32 %v2216, %v2210
      %v2218 = vadd.f32 %v2217, %v2211
      %v2219 = vadd.f32 %v2218, %v2212
      %v2220 = vadd.f32 %v2219, %v2213
      %v2221 = vadd.f32 %v2220, %v2214
      %v2222 = vadd.f32 %v2221, %v2215
      %v2223 = vrot.slane %v2222, 4
      %v2224 = vadd.f32 %v2222, %v2223
      %v2225 = vrot.slane %v2224, 2
      %v2226 = vadd.f32 %v2224, %v2225
      %v2227 = vrot.slane %v2226, 1
      %v2228 = vadd.f32 %v2226, %v2227
      %v2229 = vadd.f32 %v1642, %v2228
      %s2230 = scalar_lea.vmem %s172, 768
      %v2231 = vld [vmem:[%s2230] sm:$0xf]
      %v2232 = vld [vmem:[%s2230 + $0x4] sm:$0xf]
      %v2233 = vld [vmem:[%s2230 + $0x8] sm:$0xf]
      %v2234 = vld [vmem:[%s2230 + $0xc] sm:$0xf]
      %v2235 = vld [vmem:[%s2230 + $0x10] sm:$0xf]
      %v2236 = vld [vmem:[%s2230 + $0x14] sm:$0xf]
      %v2237 = vld [vmem:[%s2230 + $0x18] sm:$0xf]
      %v2238 = vld [vmem:[%s2230 + $0x1c] sm:$0xf]
      %v2239 = vld [vmem:[%s2230 + $0x20] sm:$0xf]
      %v2240 = vld [vmem:[%s2230 + $0x24] sm:$0xf]
      %v2241 = vld [vmem:[%s2230 + $0x28] sm:$0xf]
      %v2242 = vld [vmem:[%s2230 + $0x2c] sm:$0xf]
      %v2243 = vld [vmem:[%s2230 + $0x30] sm:$0xf]
      %v2244 = vld [vmem:[%s2230 + $0x34] sm:$0xf]
      %v2245 = vld [vmem:[%s2230 + $0x38] sm:$0xf]
      %v2246 = vld [vmem:[%s2230 + $0x3c] sm:$0xf]
      %s2247 = scalar_lea.vmem %s172, 832
      %v2248 = vld [vmem:[%s2247] sm:$0xf]
      %v2249 = vld [vmem:[%s2247 + $0x4] sm:$0xf]
      %v2250 = vld [vmem:[%s2247 + $0x8] sm:$0xf]
      %v2251 = vld [vmem:[%s2247 + $0xc] sm:$0xf]
      %v2252 = vld [vmem:[%s2247 + $0x10] sm:$0xf]
      %v2253 = vld [vmem:[%s2247 + $0x14] sm:$0xf]
      %v2254 = vld [vmem:[%s2247 + $0x18] sm:$0xf]
      %v2255 = vld [vmem:[%s2247 + $0x1c] sm:$0xf]
      %v2256 = vld [vmem:[%s2247 + $0x20] sm:$0xf]
      %v2257 = vld [vmem:[%s2247 + $0x24] sm:$0xf]
      %v2258 = vld [vmem:[%s2247 + $0x28] sm:$0xf]
      %v2259 = vld [vmem:[%s2247 + $0x2c] sm:$0xf]
      %v2260 = vld [vmem:[%s2247 + $0x30] sm:$0xf]
      %v2261 = vld [vmem:[%s2247 + $0x34] sm:$0xf]
      %v2262 = vld [vmem:[%s2247 + $0x38] sm:$0xf]
      %v2263 = vld [vmem:[%s2247 + $0x3c] sm:$0xf]
      %v2280 = vunpack.c.l.b16 %v2248
      %v2281 = vunpack.c.l.b16 %v2249
      %v2282 = vunpack.c.l.b16 %v2250
      %v2283 = vunpack.c.l.b16 %v2251
      %v2284 = vunpack.c.l.b16 %v2252
      %v2285 = vunpack.c.l.b16 %v2253
      %v2286 = vunpack.c.l.b16 %v2254
      %v2287 = vunpack.c.l.b16 %v2255
      %v2288 = vunpack.c.l.b16 %v2256
      %v2289 = vunpack.c.l.b16 %v2257
      %v2290 = vunpack.c.l.b16 %v2258
      %v2291 = vunpack.c.l.b16 %v2259
      %v2292 = vunpack.c.l.b16 %v2260
      %v2293 = vunpack.c.l.b16 %v2261
      %v2294 = vunpack.c.l.b16 %v2262
      %v2295 = vunpack.c.l.b16 %v2263
      %v2296 = vpack.c.b16 %v2281, %v2280
      %v2297 = vpack.c.b16 %v2283, %v2282
      %v2298 = vpack.c.b16 %v2285, %v2284
      %v2299 = vpack.c.b16 %v2287, %v2286
      %v2300 = vpack.c.b16 %v2289, %v2288
      %v2301 = vpack.c.b16 %v2291, %v2290
      %v2302 = vpack.c.b16 %v2293, %v2292
      %v2303 = vpack.c.b16 %v2295, %v2294
      %2312 = vmatprep.subr.bf16.mxu0 0
      %2313 = vmatpush1.bf16.msra.mxu0 %v2303
      %2314 = vmatprep.subr.bf16.mxu0 0
      %2315 = vmatpush1.bf16.msra.mxu0 %v2302
      %2316 = vmatprep.subr.bf16.mxu0 0
      %2317 = vmatpush1.bf16.msra.mxu0 %v2301
      %2318 = vmatprep.subr.bf16.mxu0 0
      %2319 = vmatpush1.bf16.msra.mxu0 %v2300
      %2320 = vmatprep.subr.bf16.mxu0 0
      %2321 = vmatpush1.bf16.msra.mxu0 %v2299
      %2322 = vmatprep.subr.bf16.mxu0 0
      %2323 = vmatpush1.bf16.msra.mxu0 %v2298
      %2324 = vmatprep.subr.bf16.mxu0 0
      %2325 = vmatpush1.bf16.msra.mxu0 %v2297
      %2326 = vmatprep.subr.bf16.mxu0 0
      %2327 = vmatpush1.bf16.msra.mxu0 %v2296
      %2328 = vmatprep.subr.bf16.mxu0 0
      %2329 = vmatpush2.bf16.msra.mxu0 0
      %2330 = vmatprep.subr.bf16.mxu0 0
      %2331 = vmatpush2.bf16.msra.mxu0 0
      %2332 = vmatprep.subr.bf16.mxu0 0
      %2333 = vmatpush2.bf16.msra.mxu0 0
      %2334 = vmatprep.subr.bf16.mxu0 0
      %2335 = vmatpush2.bf16.msra.mxu0 0
      %2336 = vmatprep.subr.bf16.mxu0 0
      %2337 = vmatpush2.bf16.msra.mxu0 0
      %2338 = vmatprep.subr.bf16.mxu0 0
      %2339 = vmatpush2.bf16.msra.mxu0 0
      %2340 = vmatprep.subr.bf16.mxu0 0
      %2341 = vmatpush2.bf16.msra.mxu0 0
      %2342 = vmatprep.subr.bf16.mxu0 0
      %2343 = vmatpush2.bf16.msra.mxu0 0
      %2344 = vmatprep.mubr.bf16.mxu0 0
      %2345 = vmatmul.mubr.bf16.gmra.mxu0 %v1469
      %v2346 = vpop.f32.mrf.mxu0
      %v2347 = vadd.f32 0.0, %v2346
      %v2348 = vpop.f32.mrf.mxu0
      %v2349 = vpop.f32.mrf.mxu0
      %v2350 = vadd.f32 0.0, %v2349
      %v2351 = vpop.f32.mrf.mxu0
      %2352 = vmatprep.mubr.bf16.mxu0 0
      %2353 = vmatmul.mubr.bf16.gmra.mxu0 %v1470
      %v2354 = vpop.f32.mrf.mxu0
      %v2355 = vadd.f32 0.0, %v2354
      %v2356 = vpop.f32.mrf.mxu0
      %v2357 = vpop.f32.mrf.mxu0
      %v2358 = vadd.f32 0.0, %v2357
      %v2359 = vpop.f32.mrf.mxu0
      %2360 = vmatprep.mubr.bf16.mxu0 0
      %2361 = vmatmul.mubr.bf16.gmra.mxu0 %v1471
      %v2362 = vpop.f32.mrf.mxu0
      %v2363 = vadd.f32 0.0, %v2362
      %v2364 = vpop.f32.mrf.mxu0
      %v2365 = vpop.f32.mrf.mxu0
      %v2366 = vadd.f32 0.0, %v2365
      %v2367 = vpop.f32.mrf.mxu0
      %2368 = vmatprep.mubr.bf16.mxu0 0
      %2369 = vmatmul.mubr.bf16.gmra.mxu0 %v1472
      %v2370 = vpop.f32.mrf.mxu0
      %v2371 = vadd.f32 0.0, %v2370
      %v2372 = vpop.f32.mrf.mxu0
      %v2373 = vpop.f32.mrf.mxu0
      %v2374 = vadd.f32 0.0, %v2373
      %v2375 = vpop.f32.mrf.mxu0
      %2376 = vdwg.mxu0
      %v2393 = vunpack.c.l.b16 %v2231
      %v2394 = vunpack.c.l.b16 %v2232
      %v2395 = vunpack.c.l.b16 %v2233
      %v2396 = vunpack.c.l.b16 %v2234
      %v2397 = vunpack.c.l.b16 %v2235
      %v2398 = vunpack.c.l.b16 %v2236
      %v2399 = vunpack.c.l.b16 %v2237
      %v2400 = vunpack.c.l.b16 %v2238
      %v2401 = vunpack.c.l.b16 %v2239
      %v2402 = vunpack.c.l.b16 %v2240
      %v2403 = vunpack.c.l.b16 %v2241
      %v2404 = vunpack.c.l.b16 %v2242
      %v2405 = vunpack.c.l.b16 %v2243
      %v2406 = vunpack.c.l.b16 %v2244
      %v2407 = vunpack.c.l.b16 %v2245
      %v2408 = vunpack.c.l.b16 %v2246
      %v2409 = vpack.c.b16 %v2394, %v2393
      %v2410 = vpack.c.b16 %v2396, %v2395
      %v2411 = vpack.c.b16 %v2398, %v2397
      %v2412 = vpack.c.b16 %v2400, %v2399
      %v2413 = vpack.c.b16 %v2402, %v2401
      %v2414 = vpack.c.b16 %v2404, %v2403
      %v2415 = vpack.c.b16 %v2406, %v2405
      %v2416 = vpack.c.b16 %v2408, %v2407
      %2425 = vmatprep.subr.bf16.mxu0 0
      %2426 = vmatpush1.bf16.msra.mxu0 %v2416
      %2427 = vmatprep.subr.bf16.mxu0 0
      %2428 = vmatpush1.bf16.msra.mxu0 %v2415
      %2429 = vmatprep.subr.bf16.mxu0 0
      %2430 = vmatpush1.bf16.msra.mxu0 %v2414
      %2431 = vmatprep.subr.bf16.mxu0 0
      %2432 = vmatpush1.bf16.msra.mxu0 %v2413
      %2433 = vmatprep.subr.bf16.mxu0 0
      %2434 = vmatpush1.bf16.msra.mxu0 %v2412
      %2435 = vmatprep.subr.bf16.mxu0 0
      %2436 = vmatpush1.bf16.msra.mxu0 %v2411
      %2437 = vmatprep.subr.bf16.mxu0 0
      %2438 = vmatpush1.bf16.msra.mxu0 %v2410
      %2439 = vmatprep.subr.bf16.mxu0 0
      %2440 = vmatpush1.bf16.msra.mxu0 %v2409
      %2441 = vmatprep.subr.bf16.mxu0 0
      %2442 = vmatpush2.bf16.msra.mxu0 0
      %2443 = vmatprep.subr.bf16.mxu0 0
      %2444 = vmatpush2.bf16.msra.mxu0 0
      %2445 = vmatprep.subr.bf16.mxu0 0
      %2446 = vmatpush2.bf16.msra.mxu0 0
      %2447 = vmatprep.subr.bf16.mxu0 0
      %2448 = vmatpush2.bf16.msra.mxu0 0
      %2449 = vmatprep.subr.bf16.mxu0 0
      %2450 = vmatpush2.bf16.msra.mxu0 0
      %2451 = vmatprep.subr.bf16.mxu0 0
      %2452 = vmatpush2.bf16.msra.mxu0 0
      %2453 = vmatprep.subr.bf16.mxu0 0
      %2454 = vmatpush2.bf16.msra.mxu0 0
      %2455 = vmatprep.subr.bf16.mxu0 0
      %2456 = vmatpush2.bf16.msra.mxu0 0
      %2457 = vmatprep.mubr.bf16.mxu0 0
      %2458 = vmatmul.mubr.bf16.gmra.mxu0 %v864
      %v2459 = vpop.f32.mrf.mxu0
      %v2460 = vadd.f32 %v2347, %v2459
      %v2461 = vpop.f32.mrf.mxu0
      %v2462 = vpop.f32.mrf.mxu0
      %v2463 = vadd.f32 %v2350, %v2462
      %v2464 = vpop.f32.mrf.mxu0
      %2465 = vmatprep.mubr.bf16.mxu0 0
      %2466 = vmatmul.mubr.bf16.gmra.mxu0 %v865
      %v2467 = vpop.f32.mrf.mxu0
      %v2468 = vadd.f32 %v2355, %v2467
      %v2469 = vpop.f32.mrf.mxu0
      %v2470 = vpop.f32.mrf.mxu0
      %v2471 = vadd.f32 %v2358, %v2470
      %v2472 = vpop.f32.mrf.mxu0
      %2473 = vmatprep.mubr.bf16.mxu0 0
      %2474 = vmatmul.mubr.bf16.gmra.mxu0 %v866
      %v2475 = vpop.f32.mrf.mxu0
      %v2476 = vadd.f32 %v2363, %v2475
      %v2477 = vpop.f32.mrf.mxu0
      %v2478 = vpop.f32.mrf.mxu0
      %v2479 = vadd.f32 %v2366, %v2478
      %v2480 = vpop.f32.mrf.mxu0
      %2481 = vmatprep.mubr.bf16.mxu0 0
      %2482 = vmatmul.mubr.bf16.gmra.mxu0 %v867
      %v2483 = vpop.f32.mrf.mxu0
      %v2484 = vadd.f32 %v2371, %v2483
      %v2485 = vpop.f32.mrf.mxu0
      %v2486 = vpop.f32.mrf.mxu0
      %v2487 = vadd.f32 %v2374, %v2486
      %v2488 = vpop.f32.mrf.mxu0
      %2489 = vdwg.mxu0
      %s2490 = scalar_lea.vmem %s172, 896
      %v2491 = vld [vmem:[%s2490] sm:$0xf]
      %v2492 = vld [vmem:[%s2490 + $0x4] sm:$0xf]
      %v2493 = vld [vmem:[%s2490 + $0x8] sm:$0xf]
      %v2494 = vld [vmem:[%s2490 + $0xc] sm:$0xf]
      %v2495 = vld [vmem:[%s2490 + $0x10] sm:$0xf]
      %v2496 = vld [vmem:[%s2490 + $0x14] sm:$0xf]
      %v2497 = vld [vmem:[%s2490 + $0x18] sm:$0xf]
      %v2498 = vld [vmem:[%s2490 + $0x1c] sm:$0xf]
      %v2499 = vld [vmem:[%s2490 + $0x20] sm:$0xf]
      %v2500 = vld [vmem:[%s2490 + $0x24] sm:$0xf]
      %v2501 = vld [vmem:[%s2490 + $0x28] sm:$0xf]
      %v2502 = vld [vmem:[%s2490 + $0x2c] sm:$0xf]
      %v2503 = vld [vmem:[%s2490 + $0x30] sm:$0xf]
      %v2504 = vld [vmem:[%s2490 + $0x34] sm:$0xf]
      %v2505 = vld [vmem:[%s2490 + $0x38] sm:$0xf]
      %v2506 = vld [vmem:[%s2490 + $0x3c] sm:$0xf]
      %v2523 = vunpack.c.l.b16 %v2491
      %v2524 = vunpack.c.l.b16 %v2492
      %v2525 = vunpack.c.l.b16 %v2493
      %v2526 = vunpack.c.l.b16 %v2494
      %v2527 = vunpack.c.l.b16 %v2495
      %v2528 = vunpack.c.l.b16 %v2496
      %v2529 = vunpack.c.l.b16 %v2497
      %v2530 = vunpack.c.l.b16 %v2498
      %v2531 = vunpack.c.l.b16 %v2499
      %v2532 = vunpack.c.l.b16 %v2500
      %v2533 = vunpack.c.l.b16 %v2501
      %v2534 = vunpack.c.l.b16 %v2502
      %v2535 = vunpack.c.l.b16 %v2503
      %v2536 = vunpack.c.l.b16 %v2504
      %v2537 = vunpack.c.l.b16 %v2505
      %v2538 = vunpack.c.l.b16 %v2506
      %v2539 = vpack.c.b16 %v2524, %v2523
      %v2540 = vpack.c.b16 %v2526, %v2525
      %v2541 = vpack.c.b16 %v2528, %v2527
      %v2542 = vpack.c.b16 %v2530, %v2529
      %v2543 = vpack.c.b16 %v2532, %v2531
      %v2544 = vpack.c.b16 %v2534, %v2533
      %v2545 = vpack.c.b16 %v2536, %v2535
      %v2546 = vpack.c.b16 %v2538, %v2537
      %2555 = vmatprep.subr.bf16.mxu0 0
      %2556 = vmatpush1.bf16.msra.mxu0 %v2546
      %2557 = vmatprep.subr.bf16.mxu0 0
      %2558 = vmatpush1.bf16.msra.mxu0 %v2545
      %2559 = vmatprep.subr.bf16.mxu0 0
      %2560 = vmatpush1.bf16.msra.mxu0 %v2544
      %2561 = vmatprep.subr.bf16.mxu0 0
      %2562 = vmatpush1.bf16.msra.mxu0 %v2543
      %2563 = vmatprep.subr.bf16.mxu0 0
      %2564 = vmatpush1.bf16.msra.mxu0 %v2542
      %2565 = vmatprep.subr.bf16.mxu0 0
      %2566 = vmatpush1.bf16.msra.mxu0 %v2541
      %2567 = vmatprep.subr.bf16.mxu0 0
      %2568 = vmatpush1.bf16.msra.mxu0 %v2540
      %2569 = vmatprep.subr.bf16.mxu0 0
      %2570 = vmatpush1.bf16.msra.mxu0 %v2539
      %2571 = vmatprep.subr.bf16.mxu0 0
      %2572 = vmatpush2.bf16.msra.mxu0 0
      %2573 = vmatprep.subr.bf16.mxu0 0
      %2574 = vmatpush2.bf16.msra.mxu0 0
      %2575 = vmatprep.subr.bf16.mxu0 0
      %2576 = vmatpush2.bf16.msra.mxu0 0
      %2577 = vmatprep.subr.bf16.mxu0 0
      %2578 = vmatpush2.bf16.msra.mxu0 0
      %2579 = vmatprep.subr.bf16.mxu0 0
      %2580 = vmatpush2.bf16.msra.mxu0 0
      %2581 = vmatprep.subr.bf16.mxu0 0
      %2582 = vmatpush2.bf16.msra.mxu0 0
      %2583 = vmatprep.subr.bf16.mxu0 0
      %2584 = vmatpush2.bf16.msra.mxu0 0
      %2585 = vmatprep.subr.bf16.mxu0 0
      %2586 = vmatpush2.bf16.msra.mxu0 0
      %2587 = vmatprep.mubr.bf16.mxu0 0
      %2588 = vmatmul.mubr.bf16.gmra.mxu0 %v450
      %v2589 = vpop.f32.mrf.mxu0
      %v2590 = vadd.f32 0.0, %v2589
      %v2591 = vpop.f32.mrf.mxu0
      %v2592 = vpop.f32.mrf.mxu0
      %v2593 = vadd.f32 0.0, %v2592
      %v2594 = vpop.f32.mrf.mxu0
      %2595 = vmatprep.mubr.bf16.mxu0 0
      %2596 = vmatmul.mubr.bf16.gmra.mxu0 %v451
      %v2597 = vpop.f32.mrf.mxu0
      %v2598 = vadd.f32 0.0, %v2597
      %v2599 = vpop.f32.mrf.mxu0
      %v2600 = vpop.f32.mrf.mxu0
      %v2601 = vadd.f32 0.0, %v2600
      %v2602 = vpop.f32.mrf.mxu0
      %2603 = vmatprep.mubr.bf16.mxu0 0
      %2604 = vmatmul.mubr.bf16.gmra.mxu0 %v452
      %v2605 = vpop.f32.mrf.mxu0
      %v2606 = vadd.f32 0.0, %v2605
      %v2607 = vpop.f32.mrf.mxu0
      %v2608 = vpop.f32.mrf.mxu0
      %v2609 = vadd.f32 0.0, %v2608
      %v2610 = vpop.f32.mrf.mxu0
      %2611 = vmatprep.mubr.bf16.mxu0 0
      %2612 = vmatmul.mubr.bf16.gmra.mxu0 %v2062
      %v2613 = vpop.f32.mrf.mxu0
      %v2614 = vadd.f32 0.0, %v2613
      %v2615 = vpop.f32.mrf.mxu0
      %v2616 = vpop.f32.mrf.mxu0
      %v2617 = vadd.f32 0.0, %v2616
      %v2618 = vpop.f32.mrf.mxu0
      %2619 = vdwg.mxu0
      %v2620 = vadd.f32 %v2460, %v2590
      %v2621 = vadd.f32 %v2463, %v2593
      %v2622 = vadd.f32 %v2468, %v2598
      %v2623 = vadd.f32 %v2471, %v2601
      %v2624 = vadd.f32 %v2476, %v2606
      %v2625 = vadd.f32 %v2479, %v2609
      %v2626 = vadd.f32 %v2484, %v2614
      %v2627 = vadd.f32 %v2487, %v2617
      %s2628 = scalar_lea.vmem %s172, 960
      %v2629 = vld [vmem:[%s2628] sm:$0xf]
      %v2630 = vld [vmem:[%s2628 + $0x4] sm:$0xf]
      %v2631 = vld [vmem:[%s2628 + $0x8] sm:$0xf]
      %v2632 = vld [vmem:[%s2628 + $0xc] sm:$0xf]
      %v2633 = vld [vmem:[%s2628 + $0x10] sm:$0xf]
      %v2634 = vld [vmem:[%s2628 + $0x14] sm:$0xf]
      %v2635 = vld [vmem:[%s2628 + $0x18] sm:$0xf]
      %v2636 = vld [vmem:[%s2628 + $0x1c] sm:$0xf]
      %v2637 = vld [vmem:[%s2628 + $0x20] sm:$0xf]
      %v2638 = vld [vmem:[%s2628 + $0x24] sm:$0xf]
      %v2639 = vld [vmem:[%s2628 + $0x28] sm:$0xf]
      %v2640 = vld [vmem:[%s2628 + $0x2c] sm:$0xf]
      %v2641 = vld [vmem:[%s2628 + $0x30] sm:$0xf]
      %v2642 = vld [vmem:[%s2628 + $0x34] sm:$0xf]
      %v2643 = vld [vmem:[%s2628 + $0x38] sm:$0xf]
      %v2644 = vld [vmem:[%s2628 + $0x3c] sm:$0xf]
      %v2645 = vunpack.c.l.b16 %v407
      %v2646 = vpack.c.b16 %v2645, %v1468
      %v2664 = vunpack.c.l.b16 %v2629
      %v2665 = vunpack.c.l.b16 %v2630
      %v2666 = vunpack.c.l.b16 %v2631
      %v2667 = vunpack.c.l.b16 %v2632
      %v2668 = vunpack.c.l.b16 %v2633
      %v2669 = vunpack.c.l.b16 %v2634
      %v2670 = vunpack.c.l.b16 %v2635
      %v2671 = vunpack.c.l.b16 %v2636
      %v2672 = vunpack.c.l.b16 %v2637
      %v2673 = vunpack.c.l.b16 %v2638
      %v2674 = vunpack.c.l.b16 %v2639
      %v2675 = vunpack.c.l.b16 %v2640
      %v2676 = vunpack.c.l.b16 %v2641
      %v2677 = vunpack.c.l.b16 %v2642
      %v2678 = vunpack.c.l.b16 %v2643
      %v2679 = vunpack.c.l.b16 %v2644
      %v2680 = vpack.c.b16 %v2665, %v2664
      %v2681 = vpack.c.b16 %v2667, %v2666
      %v2682 = vpack.c.b16 %v2669, %v2668
      %v2683 = vpack.c.b16 %v2671, %v2670
      %v2684 = vpack.c.b16 %v2673, %v2672
      %v2685 = vpack.c.b16 %v2675, %v2674
      %v2686 = vpack.c.b16 %v2677, %v2676
      %v2687 = vpack.c.b16 %v2679, %v2678
      %2696 = vmatprep.subr.bf16.mxu0 0
      %2697 = vmatpush1.bf16.msra.mxu0 %v2687
      %2698 = vmatprep.subr.bf16.mxu0 0
      %2699 = vmatpush1.bf16.msra.mxu0 %v2686
      %2700 = vmatprep.subr.bf16.mxu0 0
      %2701 = vmatpush1.bf16.msra.mxu0 %v2685
      %2702 = vmatprep.subr.bf16.mxu0 0
      %2703 = vmatpush1.bf16.msra.mxu0 %v2684
      %2704 = vmatprep.subr.bf16.mxu0 0
      %2705 = vmatpush1.bf16.msra.mxu0 %v2683
      %2706 = vmatprep.subr.bf16.mxu0 0
      %2707 = vmatpush1.bf16.msra.mxu0 %v2682
      %2708 = vmatprep.subr.bf16.mxu0 0
      %2709 = vmatpush1.bf16.msra.mxu0 %v2681
      %2710 = vmatprep.subr.bf16.mxu0 0
      %2711 = vmatpush1.bf16.msra.mxu0 %v2680
      %2712 = vmatprep.subr.bf16.mxu0 0
      %2713 = vmatpush2.bf16.msra.mxu0 0
      %2714 = vmatprep.subr.bf16.mxu0 0
      %2715 = vmatpush2.bf16.msra.mxu0 0
      %2716 = vmatprep.subr.bf16.mxu0 0
      %2717 = vmatpush2.bf16.msra.mxu0 0
      %2718 = vmatprep.subr.bf16.mxu0 0
      %2719 = vmatpush2.bf16.msra.mxu0 0
      %2720 = vmatprep.subr.bf16.mxu0 0
      %2721 = vmatpush2.bf16.msra.mxu0 0
      %2722 = vmatprep.subr.bf16.mxu0 0
      %2723 = vmatpush2.bf16.msra.mxu0 0
      %2724 = vmatprep.subr.bf16.mxu0 0
      %2725 = vmatpush2.bf16.msra.mxu0 0
      %2726 = vmatprep.subr.bf16.mxu0 0
      %2727 = vmatpush2.bf16.msra.mxu0 0
      %2728 = vmatprep.mubr.bf16.mxu0 0
      %2729 = vmatmul.mubr.bf16.gmra.mxu0 %v1080
      %v2730 = vpop.f32.mrf.mxu0
      %v2731 = vadd.f32 0.0, %v2730
      %v2732 = vpop.f32.mrf.mxu0
      %v2733 = vpop.f32.mrf.mxu0
      %v2734 = vadd.f32 0.0, %v2733
      %v2735 = vpop.f32.mrf.mxu0
      %2736 = vmatprep.mubr.bf16.mxu0 0
      %2737 = vmatmul.mubr.bf16.gmra.mxu0 %v1081
      %v2738 = vpop.f32.mrf.mxu0
      %v2739 = vadd.f32 0.0, %v2738
      %v2740 = vpop.f32.mrf.mxu0
      %v2741 = vpop.f32.mrf.mxu0
      %v2742 = vadd.f32 0.0, %v2741
      %v2743 = vpop.f32.mrf.mxu0
      %2744 = vmatprep.mubr.bf16.mxu0 0
      %2745 = vmatmul.mubr.bf16.gmra.mxu0 %v1082
      %v2746 = vpop.f32.mrf.mxu0
      %v2747 = vadd.f32 0.0, %v2746
      %v2748 = vpop.f32.mrf.mxu0
      %v2749 = vpop.f32.mrf.mxu0
      %v2750 = vadd.f32 0.0, %v2749
      %v2751 = vpop.f32.mrf.mxu0
      %2752 = vmatprep.mubr.bf16.mxu0 0
      %2753 = vmatmul.mubr.bf16.gmra.mxu0 %v2646
      %v2754 = vpop.f32.mrf.mxu0
      %v2755 = vadd.f32 0.0, %v2754
      %v2756 = vpop.f32.mrf.mxu0
      %v2757 = vpop.f32.mrf.mxu0
      %v2758 = vadd.f32 0.0, %v2757
      %v2759 = vpop.f32.mrf.mxu0
      %2760 = vdwg.mxu0
      %v2761 = vadd.f32 %v2620, %v2731
      %v2762 = vadd.f32 %v2621, %v2734
      %v2763 = vadd.f32 %v2622, %v2739
      %v2764 = vadd.f32 %v2623, %v2742
      %v2765 = vadd.f32 %v2624, %v2747
      %v2766 = vadd.f32 %v2625, %v2750
      %v2767 = vadd.f32 %v2626, %v2755
      %v2768 = vadd.f32 %v2627, %v2758
      %s2769 = scalar_lea.vmem [#allocation2], 192
      %2770 = vst [vmem:[%s2769] sm:$0xff] %v2761
      %2771 = vst [vmem:[%s2769 + $0x8] sm:$0xff] %v2762
      %2772 = vst [vmem:[%s2769 + $0x10] sm:$0xff] %v2763
      %2773 = vst [vmem:[%s2769 + $0x18] sm:$0xff] %v2764
      %2774 = vst [vmem:[%s2769 + $0x20] sm:$0xff] %v2765
      %2775 = vst [vmem:[%s2769 + $0x28] sm:$0xff] %v2766
      %2776 = vst [vmem:[%s2769 + $0x30] sm:$0xff] %v2767
      %2777 = vst [vmem:[%s2769 + $0x38] sm:$0xff] %v2768
      %v2778 = vadd.f32 %v2761, %v2762
      %v2779 = vadd.f32 %v2778, %v2763
      %v2780 = vadd.f32 %v2779, %v2764
      %v2781 = vadd.f32 %v2780, %v2765
      %v2782 = vadd.f32 %v2781, %v2766
      %v2783 = vadd.f32 %v2782, %v2767
      %v2784 = vadd.f32 %v2783, %v2768
      %v2785 = vrot.slane %v2784, 4
      %v2786 = vadd.f32 %v2784, %v2785
      %v2787 = vrot.slane %v2786, 2
      %v2788 = vadd.f32 %v2786, %v2787
      %v2789 = vrot.slane %v2788, 1
      %v2790 = vadd.f32 %v2788, %v2789
      %v2791 = vadd.f32 %v2207, %v2790
      %v2792 = vmul.f32 %v2761, %v2761
      %v2793 = vmul.f32 %v2762, %v2762
      %v2794 = vmul.f32 %v2763, %v2763
      %v2795 = vmul.f32 %v2764, %v2764
      %v2796 = vmul.f32 %v2765, %v2765
      %v2797 = vmul.f32 %v2766, %v2766
      %v2798 = vmul.f32 %v2767, %v2767
      %v2799 = vmul.f32 %v2768, %v2768
      %v2800 = vadd.f32 %v2792, %v2793
      %v2801 = vadd.f32 %v2800, %v2794
      %v2802 = vadd.f32 %v2801, %v2795
      %v2803 = vadd.f32 %v2802, %v2796
      %v2804 = vadd.f32 %v2803, %v2797
      %v2805 = vadd.f32 %v2804, %v2798
      %v2806 = vadd.f32 %v2805, %v2799
      %v2807 = vrot.slane %v2806, 4
      %v2808 = vadd.f32 %v2806, %v2807
      %v2809 = vrot.slane %v2808, 2
      %v2810 = vadd.f32 %v2808, %v2809
      %v2811 = vrot.slane %v2810, 1
      %v2812 = vadd.f32 %v2810, %v2811
      %v2813 = vadd.f32 %v2229, %v2812
      %v2814 = vmul.f32 %v2791, 0.00390625
      %v2815 = vmul.f32 %v2813, 0.00390625
      %v2816 = vmul.f32 %v2814, %v2814
      %v2817 = vsub.f32 %v2815, %v2816
      %v2818 = vmax.f32 %v2817, 0.0
      %v2819 = vadd.f32 %v2818, 1e-05
      %v2820 = vrsqrt.pop %v2819
      %v2821 = vld [vmem:[#allocation2] sm:$0xff]
      %v2822 = vld [vmem:[#allocation2 + $0x8] sm:$0xff]
      %v2823 = vld [vmem:[#allocation2 + $0x10] sm:$0xff]
      %v2824 = vld [vmem:[#allocation2 + $0x18] sm:$0xff]
      %v2825 = vld [vmem:[#allocation2 + $0x20] sm:$0xff]
      %v2826 = vld [vmem:[#allocation2 + $0x28] sm:$0xff]
      %v2827 = vld [vmem:[#allocation2 + $0x30] sm:$0xff]
      %v2828 = vld [vmem:[#allocation2 + $0x38] sm:$0xff]
      %v2829 = vsub.f32 %v2821, %v2814
      %v2830 = vsub.f32 %v2822, %v2814
      %v2831 = vsub.f32 %v2823, %v2814
      %v2832 = vsub.f32 %v2824, %v2814
      %v2833 = vsub.f32 %v2825, %v2814
      %v2834 = vsub.f32 %v2826, %v2814
      %v2835 = vsub.f32 %v2827, %v2814
      %v2836 = vsub.f32 %v2828, %v2814
      %v2837 = vmul.f32 %v2829, %v2820
      %v2838 = vmul.f32 %v2830, %v2820
      %v2839 = vmul.f32 %v2831, %v2820
      %v2840 = vmul.f32 %v2832, %v2820
      %v2841 = vmul.f32 %v2833, %v2820
      %v2842 = vmul.f32 %v2834, %v2820
      %v2843 = vmul.f32 %v2835, %v2820
      %v2844 = vmul.f32 %v2836, %v2820
      %v2845 = vmax.f32 %v2837, 0.0
      %v2846 = vmax.f32 %v2838, 0.0
      %v2847 = vmax.f32 %v2839, 0.0
      %v2848 = vmax.f32 %v2840, 0.0
      %v2849 = vmax.f32 %v2841, 0.0
      %v2850 = vmax.f32 %v2842, 0.0
      %v2851 = vmax.f32 %v2843, 0.0
      %v2852 = vmax.f32 %v2844, 0.0
      %2853 = vst [vmem:[%s180] sm:$0xff] %v2845
      %2854 = vst [vmem:[%s180 + $0x8] sm:$0xff] %v2846
      %2855 = vst [vmem:[%s180 + $0x10] sm:$0xff] %v2847
      %2856 = vst [vmem:[%s180 + $0x18] sm:$0xff] %v2848
      %2857 = vst [vmem:[%s180 + $0x20] sm:$0xff] %v2849
      %2858 = vst [vmem:[%s180 + $0x28] sm:$0xff] %v2850
      %2859 = vst [vmem:[%s180 + $0x30] sm:$0xff] %v2851
      %2860 = vst [vmem:[%s180 + $0x38] sm:$0xff] %v2852
      %v2861 = vld [vmem:[%s1598] sm:$0xff]
      %v2862 = vld [vmem:[%s1598 + $0x8] sm:$0xff]
      %v2863 = vld [vmem:[%s1598 + $0x10] sm:$0xff]
      %v2864 = vld [vmem:[%s1598 + $0x18] sm:$0xff]
      %v2865 = vld [vmem:[%s1598 + $0x20] sm:$0xff]
      %v2866 = vld [vmem:[%s1598 + $0x28] sm:$0xff]
      %v2867 = vld [vmem:[%s1598 + $0x30] sm:$0xff]
      %v2868 = vld [vmem:[%s1598 + $0x38] sm:$0xff]
      %v2869 = vsub.f32 %v2861, %v2814
      %v2870 = vsub.f32 %v2862, %v2814
      %v2871 = vsub.f32 %v2863, %v2814
      %v2872 = vsub.f32 %v2864, %v2814
      %v2873 = vsub.f32 %v2865, %v2814
      %v2874 = vsub.f32 %v2866, %v2814
      %v2875 = vsub.f32 %v2867, %v2814
      %v2876 = vsub.f32 %v2868, %v2814
      %v2877 = vmul.f32 %v2869, %v2820
      %v2878 = vmul.f32 %v2870, %v2820
      %v2879 = vmul.f32 %v2871, %v2820
      %v2880 = vmul.f32 %v2872, %v2820
      %v2881 = vmul.f32 %v2873, %v2820
      %v2882 = vmul.f32 %v2874, %v2820
      %v2883 = vmul.f32 %v2875, %v2820
      %v2884 = vmul.f32 %v2876, %v2820
      %v2885 = vmax.f32 %v2877, 0.0
      %v2886 = vmax.f32 %v2878, 0.0
      %v2887 = vmax.f32 %v2879, 0.0
      %v2888 = vmax.f32 %v2880, 0.0
      %v2889 = vmax.f32 %v2881, 0.0
      %v2890 = vmax.f32 %v2882, 0.0
      %v2891 = vmax.f32 %v2883, 0.0
      %v2892 = vmax.f32 %v2884, 0.0
      %s2893 = scalar_lea.vmem %s180, 64
      %2894 = vst [vmem:[%s2893] sm:$0xff] %v2885
      %2895 = vst [vmem:[%s2893 + $0x8] sm:$0xff] %v2886
      %2896 = vst [vmem:[%s2893 + $0x10] sm:$0xff] %v2887
      %2897 = vst [vmem:[%s2893 + $0x18] sm:$0xff] %v2888
      %2898 = vst [vmem:[%s2893 + $0x20] sm:$0xff] %v2889
      %2899 = vst [vmem:[%s2893 + $0x28] sm:$0xff] %v2890
      %2900 = vst [vmem:[%s2893 + $0x30] sm:$0xff] %v2891
      %2901 = vst [vmem:[%s2893 + $0x38] sm:$0xff] %v2892
      %v2902 = vld [vmem:[%s2185] sm:$0xff]
      %v2903 = vld [vmem:[%s2185 + $0x8] sm:$0xff]
      %v2904 = vld [vmem:[%s2185 + $0x10] sm:$0xff]
      %v2905 = vld [vmem:[%s2185 + $0x18] sm:$0xff]
      %v2906 = vld [vmem:[%s2185 + $0x20] sm:$0xff]
      %v2907 = vld [vmem:[%s2185 + $0x28] sm:$0xff]
      %v2908 = vld [vmem:[%s2185 + $0x30] sm:$0xff]
      %v2909 = vld [vmem:[%s2185 + $0x38] sm:$0xff]
      %v2910 = vsub.f32 %v2902, %v2814
      %v2911 = vsub.f32 %v2903, %v2814
      %v2912 = vsub.f32 %v2904, %v2814
      %v2913 = vsub.f32 %v2905, %v2814
      %v2914 = vsub.f32 %v2906, %v2814
      %v2915 = vsub.f32 %v2907, %v2814
      %v2916 = vsub.f32 %v2908, %v2814
      %v2917 = vsub.f32 %v2909, %v2814
      %v2918 = vmul.f32 %v2910, %v2820
      %v2919 = vmul.f32 %v2911, %v2820
      %v2920 = vmul.f32 %v2912, %v2820
      %v2921 = vmul.f32 %v2913, %v2820
      %v2922 = vmul.f32 %v2914, %v2820
      %v2923 = vmul.f32 %v2915, %v2820
      %v2924 = vmul.f32 %v2916, %v2820
      %v2925 = vmul.f32 %v2917, %v2820
      %v2926 = vmax.f32 %v2918, 0.0
      %v2927 = vmax.f32 %v2919, 0.0
      %v2928 = vmax.f32 %v2920, 0.0
      %v2929 = vmax.f32 %v2921, 0.0
      %v2930 = vmax.f32 %v2922, 0.0
      %v2931 = vmax.f32 %v2923, 0.0
      %v2932 = vmax.f32 %v2924, 0.0
      %v2933 = vmax.f32 %v2925, 0.0
      %s2934 = scalar_lea.vmem %s180, 128
      %2935 = vst [vmem:[%s2934] sm:$0xff] %v2926
      %2936 = vst [vmem:[%s2934 + $0x8] sm:$0xff] %v2927
      %2937 = vst [vmem:[%s2934 + $0x10] sm:$0xff] %v2928
      %2938 = vst [vmem:[%s2934 + $0x18] sm:$0xff] %v2929
      %2939 = vst [vmem:[%s2934 + $0x20] sm:$0xff] %v2930
      %2940 = vst [vmem:[%s2934 + $0x28] sm:$0xff] %v2931
      %2941 = vst [vmem:[%s2934 + $0x30] sm:$0xff] %v2932
      %2942 = vst [vmem:[%s2934 + $0x38] sm:$0xff] %v2933
      %v2943 = vld [vmem:[%s2769] sm:$0xff]
      %v2944 = vld [vmem:[%s2769 + $0x8] sm:$0xff]
      %v2945 = vld [vmem:[%s2769 + $0x10] sm:$0xff]
      %v2946 = vld [vmem:[%s2769 + $0x18] sm:$0xff]
      %v2947 = vld [vmem:[%s2769 + $0x20] sm:$0xff]
      %v2948 = vld [vmem:[%s2769 + $0x28] sm:$0xff]
      %v2949 = vld [vmem:[%s2769 + $0x30] sm:$0xff]
      %v2950 = vld [vmem:[%s2769 + $0x38] sm:$0xff]
      %v2951 = vsub.f32 %v2943, %v2814
      %v2952 = vsub.f32 %v2944, %v2814
      %v2953 = vsub.f32 %v2945, %v2814
      %v2954 = vsub.f32 %v2946, %v2814
      %v2955 = vsub.f32 %v2947, %v2814
      %v2956 = vsub.f32 %v2948, %v2814
      %v2957 = vsub.f32 %v2949, %v2814
      %v2958 = vsub.f32 %v2950, %v2814
      %v2959 = vmul.f32 %v2951, %v2820
      %v2960 = vmul.f32 %v2952, %v2820
      %v2961 = vmul.f32 %v2953, %v2820
      %v2962 = vmul.f32 %v2954, %v2820
      %v2963 = vmul.f32 %v2955, %v2820
      %v2964 = vmul.f32 %v2956, %v2820
      %v2965 = vmul.f32 %v2957, %v2820
      %v2966 = vmul.f32 %v2958, %v2820
      %v2967 = vmax.f32 %v2959, 0.0
      %v2968 = vmax.f32 %v2960, 0.0
      %v2969 = vmax.f32 %v2961, 0.0
      %v2970 = vmax.f32 %v2962, 0.0
      %v2971 = vmax.f32 %v2963, 0.0
      %v2972 = vmax.f32 %v2964, 0.0
      %v2973 = vmax.f32 %v2965, 0.0
      %v2974 = vmax.f32 %v2966, 0.0
      %s2975 = scalar_lea.vmem %s180, 192
      %2976 = vst [vmem:[%s2975] sm:$0xff] %v2967
      %2977 = vst [vmem:[%s2975 + $0x8] sm:$0xff] %v2968
      %2978 = vst [vmem:[%s2975 + $0x10] sm:$0xff] %v2969
      %2979 = vst [vmem:[%s2975 + $0x18] sm:$0xff] %v2970
      %2980 = vst [vmem:[%s2975 + $0x20] sm:$0xff] %v2971
      %2981 = vst [vmem:[%s2975 + $0x28] sm:$0xff] %v2972
      %2982 = vst [vmem:[%s2975 + $0x30] sm:$0xff] %v2973
      %2983 = vst [vmem:[%s2975 + $0x38] sm:$0xff] %v2974
      %p2984 = scmp.lt.s32.totalorder %s17, 1
      %s2985 = scalar_select %p2984, %s17, 1
      %p2986 = scmp.lt.s32.totalorder %s18, 0
      %s2987 = scalar_select %p2986, %s18, 0
      %s2988 = smul.addr %s2985, 32
      %s2989 = sadd.s32 %s2987, %s2988
      %s2990 = smul.addr %s2989, 8
      %s2991 = scalar_lea.vmem %s2, %s2990
      // Predicated region
      $region29: #{unet_up_forward.1} parent=27 // pred_check
        %p2992 = pneg %p97
      $region30: #{unet_up_forward.1} parent=27 // pred_check_branch
        %2994 = sbr.rel (%p2992) target = $region32
      $region31: #{unet_up_forward.1} parent=27 // pred_region
        _
      $region32: #{unet_up_forward.1} parent=27 // pred_fallthru
        _
    $region28: #{unet_up_forward.1} parent=5 // pred_fallthru
      _
    %p2995 = scmp.le.s32.totalorder 2, %s8
    // Predicated region
    $region33: #{unet_up_forward.1} parent=5 // pred_check
      %p2996 = pneg %p2995
    $region34: #{unet_up_forward.1} parent=5 // pred_check_branch
      %2998 = sbr.rel (%p2996) target = $region36
    $region35: #{unet_up_forward.1} parent=5 // pred_region
      %s2999 = ssub.s32 %s8, 2
      // Predicated region
      $region37: #{unet_up_forward.1} parent=35 // pred_check
        %p3000 = pneg %p103
      $region38: #{unet_up_forward.1} parent=35 // pred_check_branch
        %3002 = sbr.rel (%p3000) target = $region40
      $region39: #{unet_up_forward.1} parent=35 // pred_region
        %p3003 = scmp.lt.s32.totalorder %s19, 1
        %s3004 = scalar_select %p3003, %s19, 1
        %p3005 = scmp.lt.s32.totalorder %s20, 0
        %s3006 = scalar_select %p3005, %s20, 0
        %s3007 = smul.addr %s3004, 32
        %s3008 = sadd.s32 %s3006, %s3007
        %s3009 = smul.addr %s3008, 8
        %s3010 = scalar_lea.vmem %s2, %s3009
      $region40: #{unet_up_forward.1} parent=35 // pred_fallthru
        _
    $region36: #{unet_up_forward.1} parent=5 // pred_fallthru
      _
  $region6: #{unet_up_forward.1} parent=0 // loop_footer
    %s12 = sadd.s32 1, %s8
  $region7: #{unet_up_forward.1} parent=0 // loop_footer_branch
    %7 = sbr.rel target = $region3
  $region8: #{unet_up_forward.1} parent=0 // loop_exit
    _

</llo_original>
